<compile_context>
chip_gen: v6e
topology: v6e:2x2x1
jax: 0.10.0
libtpu: 0.0.40
codegen_flags: <defaults>
</compile_context>

<pallas_src>
import jax
import jax.numpy as jnp
import numpy as np
from jax.experimental import pallas as pl
from jax.experimental.pallas import tpu as pltpu


# ------------------------------ fused forward kernel -------------------------------

def make_fused_kernel(n_layers, T, B, E, H, O, V):
    """Build the fused kernel closure for static sizes."""

    def kernel(ids_ref, emb_ref, *rest):
        # ids_ref: SMEM (T*B,) int32 (scalar prefetch, t-major: row t*B + b == x[b, t])
        # rest = [wih_t, whh_t, bias] * n_layers, fc_w_t, fc_b, h0, c0, sof_out, hn_out, cn_out
        w = rest[:3 * n_layers]
        (fcw_ref, fcb_ref, h0_ref, c0_ref,
         sof_ref, hn_ref, cn_ref) = rest[3 * n_layers:]

        f32 = jnp.float32

        # Column scale folding sigmoid(x) = 0.5*tanh(x/2) + 0.5 into the hoisted weights:
        # i|f|o gate columns get 0.5, g columns keep 1.0 -> the recurrence needs only one
        # tanh (EUP) call over the full (B, 4H) gates vreg per step.
        lane4h = jax.lax.broadcasted_iota(jnp.int32, (1, 4 * H), 1)
        is_g = (lane4h >= 2 * H) & (lane4h < 3 * H)
        col_scale = jnp.where(is_g, 1.0, 0.5).astype(f32)               # (1, 4H)

        # ---- one-hot built from SMEM scalars (sreg->vreg splats; no lane-degenerate
        #      VMEM tile, no XLU broadcast of a 1-lane column). Prologue only. ----
        sub_iota = jax.lax.broadcasted_iota(jnp.int32, (T * B, V), 0)
        lane_iota = jax.lax.broadcasted_iota(jnp.int32, (T * B, V), 1)
        onehot = jnp.zeros((T * B, V), f32)
        for r in range(T * B):
            tok = ids_ref[r]
            onehot = onehot + jnp.where((sub_iota == r) & (lane_iota == tok), 1.0, 0.0)

        h_seq = None      # previous layer's per-timestep outputs, kept in vregs
        h = None
        for l in range(n_layers):
            wih_ref, whh_ref, b_ref = w[3 * l], w[3 * l + 1], w[3 * l + 2]

            # Hoisted per-layer weight loads + sigmoid-scale fold (out of the t loop).
            wih_s = wih_ref[...] * col_scale                             # (in, 4H)
            whh_s = whh_ref[...] * col_scale                             # (H, 4H)
            b_s = b_ref[...] * col_scale                                 # (1, 4H)

            # Hoisted input projection: off the recurrent critical path.
            if l == 0:
                # Fold the embedding gather into layer 0's projection.
                emb_proj = jnp.dot(emb_ref[...], wih_s,
                                   preferred_element_type=f32)           # (V, 4H)
                gx_full = jnp.dot(onehot, emb_proj,
                                  preferred_element_type=f32) + b_s      # (T*B, 4H)
                gx = [gx_full[t * B:(t + 1) * B, :] for t in range(T)]
            else:
                gx = [jnp.dot(h_seq[t], wih_s, preferred_element_type=f32) + b_s
                      for t in range(T)]

            h = h0_ref[l]                                                # (B, H)
            c = c0_ref[l]                                                # (B, H)

            # TODO(synk): stage W_hh in the MXU weight registers across the unrolled time
            # loop (pltpu.matmul_push_rhs / matmul_acc_lhs / matmul_pop) and, on v7x, use
            # the MRB accumulate path to fuse the gx add into the matmul drain.
            h_seq_next = []
            for t in range(T):
                pre = gx[t] + jnp.dot(h, whh_s, preferred_element_type=f32)  # (B, 4H)
                t_all = jnp.tanh(pre)           # single EUP call for all four gates
                sig = t_all * 0.5 + 0.5         # sigmoid(x) = 0.5*tanh(x/2) + 0.5
                i_g = sig[:, 0 * H:1 * H]
                f_g = sig[:, 1 * H:2 * H]
                g_g = t_all[:, 2 * H:3 * H]
                o_g = sig[:, 3 * H:4 * H]
                c = f_g * c + i_g * g_g
                h = o_g * jnp.tanh(c)
                h_seq_next.append(h)            # stays in vregs; no VMEM scratch round-trip
            h_seq = h_seq_next

            hn_ref[l] = h
            cn_ref[l] = c

        # ---- fc + log_softmax on the last timestep's hidden state (dropout = identity) ----
        logits = jnp.dot(h, fcw_ref[...], preferred_element_type=f32) + fcb_ref[...]  # (B, O)
        m = jnp.max(logits, axis=-1, keepdims=True)
        z = logits - m
        lse = jnp.log(jnp.sum(jnp.exp(z), axis=-1, keepdims=True))
        # O=4 < 128 lanes -> masked store; acceptable since the head runs once per forward.
        sof_ref[...] = (z - lse).astype(sof_ref.dtype)

    return kernel


def brokers_rnn_forward(params, x_idx, hidden):
    """x_idx: (B, T) int32 token ids; hidden: ((L, B, H), (L, B, H))."""
    h0_all, c0_all = hidden
    L, B, H = h0_all.shape
    _, T = x_idx.shape
    V, E = params["embedding"].shape
    O = params["fc_w_t"].shape[-1]

    # t-major flattened token ids, scalar-prefetched into SMEM: row t*B + b == x_idx[b, t].
    x_flat = jnp.transpose(x_idx.astype(jnp.int32), (1, 0)).reshape(T * B)

    layer_args = []
    in_specs = [pl.BlockSpec((V, E), lambda i, ids: (0, 0))]            # embedding table
    for layer in params["lstm"]:
        wih_t, whh_t, bias = layer["wih_t"], layer["whh_t"], layer["bias"]
        layer_args += [wih_t, whh_t, bias]
        in_specs += [
            pl.BlockSpec(wih_t.shape, lambda i, ids: (0, 0)),           # W_ih^T
            pl.BlockSpec(whh_t.shape, lambda i, ids: (0, 0)),           # W_hh^T
            pl.BlockSpec(bias.shape, lambda i, ids: (0, 0)),            # b_ih + b_hh
        ]
    in_specs += [
        pl.BlockSpec((H, O), lambda i, ids: (0, 0)),                    # fc weight^T
        pl.BlockSpec((1, O), lambda i, ids: (0, 0)),                    # fc bias
        pl.BlockSpec((L, B, H), lambda i, ids: (0, 0, 0)),              # h0
        pl.BlockSpec((L, B, H), lambda i, ids: (0, 0, 0)),              # c0
    ]

    kernel = make_fused_kernel(L, T, B, E, H, O, V)

    # TODO(synk): for production vocab sizes keep the embedding table in HBM
    # (memory_space=pl.ANY) and DMA only the needed rows; once B grows beyond a few
    # hundred, split the batch over a parallel grid axis so both v7x TensorCores run.
    sof_out, h_n, c_n = pl.pallas_call(
        kernel,
        out_shape=(jax.ShapeDtypeStruct((B, O), jnp.float32),
                   jax.ShapeDtypeStruct((L, B, H), jnp.float32),
                   jax.ShapeDtypeStruct((L, B, H), jnp.float32)),
        grid_spec=pltpu.PrefetchScalarGridSpec(
            num_scalar_prefetch=1,                                       # token ids -> SMEM
            grid=(1,),                                                   # everything fused
            in_specs=in_specs,
            out_specs=(pl.BlockSpec((B, O), lambda i, ids: (0, 0)),
                       pl.BlockSpec((L, B, H), lambda i, ids: (0, 0, 0)),
                       pl.BlockSpec((L, B, H), lambda i, ids: (0, 0, 0))),
        ),
        compiler_params=pltpu.CompilerParams(
            dimension_semantics=("arbitrary",)),
    )(x_flat, params["embedding"], *layer_args,
      params["fc_w_t"], params["fc_b"], h0_all, c0_all)

    return sof_out, (h_n, c_n)


# --------------------------------- parameters ---------------------------------------

def init_params(key, vocab_size, output_size, embedding_dim, hidden_dim, n_layers):
    keys = jax.random.split(key, 3 + 4 * n_layers)
    params = {
        "embedding": jax.random.normal(keys[0], (vocab_size, embedding_dim),
                                       jnp.float32) * 0.1,
        "fc_w_t": jax.random.normal(keys[1], (hidden_dim, output_size),
                                    jnp.float32) * 0.1,
        "fc_b": jax.random.normal(keys[2], (1, output_size), jnp.float32) * 0.1,
        "lstm": [],
    }
    for l in range(n_layers):
        in_dim = embedding_dim if l == 0 else hidden_dim
        k = keys[3 + 4 * l: 3 + 4 * (l + 1)]
        wih_t = jax.random.normal(k[0], (in_dim, 4 * hidden_dim), jnp.float32) * 0.1
        whh_t = jax.random.normal(k[1], (hidden_dim, 4 * hidden_dim), jnp.float32) * 0.1
        b_ih = jax.random.normal(k[2], (4 * hidden_dim,), jnp.float32) * 0.1
        b_hh = jax.random.normal(k[3], (4 * hidden_dim,), jnp.float32) * 0.1
        params["lstm"].append({
            "wih_t": wih_t,
            "whh_t": whh_t,
            "bias": (b_ih + b_hh).reshape(1, 4 * hidden_dim),
        })
    return params


# ------------------------------- pure-JAX reference ---------------------------------

def reference_forward(params, x_idx, hidden):
    h0_all, c0_all = hidden
    embeds = params["embedding"][x_idx]
    seq = jnp.transpose(embeds, (1, 0, 2))
    T = seq.shape[0]
    hn_list, cn_list = [], []
    for l, layer in enumerate(params["lstm"]):
        H = h0_all.shape[-1]
        h, c = h0_all[l], c0_all[l]
        outs = []
        for t in range(T):
            g = seq[t] @ layer["wih_t"] + h @ layer["whh_t"] + layer["bias"]
            i = jax.nn.sigmoid(g[:, :H])
            f = jax.nn.sigmoid(g[:, H:2 * H])
            gg = jnp.tanh(g[:, 2 * H:3 * H])
            o = jax.nn.sigmoid(g[:, 3 * H:])
            c = f * c + i * gg
            h = o * jnp.tanh(c)
            outs.append(h)
        seq = jnp.stack(outs, axis=0)
        hn_list.append(h)
        cn_list.append(c)
    logits = seq[-1] @ params["fc_w_t"] + params["fc_b"]
    sof = jax.nn.log_softmax(logits, axis=-1)
    return sof, (jnp.stack(hn_list), jnp.stack(cn_list))


# ---------------------------------------- main ---------------------------------------

if __name__ == "__main__":
    vocab_size, output_size = 32, 4
    embedding_dim, hidden_dim, n_layers = 16, 32, 2
    batch_size, seq_len = 2, 8

    key = jax.random.PRNGKey(0)
    k_params, k_x = jax.random.split(key)

    params = init_params(k_params, vocab_size, output_size,
                         embedding_dim, hidden_dim, n_layers)

    x = jax.random.randint(k_x, (batch_size, seq_len), 0, vocab_size, dtype=jnp.int32)
    hidden = (jnp.zeros((n_layers, batch_size, hidden_dim), jnp.float32),
              jnp.zeros((n_layers, batch_size, hidden_dim), jnp.float32))

    sof_out, (h_n, c_n) = brokers_rnn_forward(params, x, hidden)
    sof_out = jax.block_until_ready(sof_out)
    h_n = jax.block_until_ready(h_n)
    c_n = jax.block_until_ready(c_n)

    # correctness check against a pure-JAX reference
    ref_sof, (ref_h, ref_c) = reference_forward(params, x, hidden)
    np.testing.assert_allclose(np.asarray(sof_out), np.asarray(ref_sof), rtol=1e-5, atol=1e-5)
    np.testing.assert_allclose(np.asarray(h_n), np.asarray(ref_h), rtol=1e-5, atol=1e-5)
    np.testing.assert_allclose(np.asarray(c_n), np.asarray(ref_c), rtol=1e-5, atol=1e-5)

    print("KERNEL_OK")
</pallas_src>

<mosaic_0001>
module attributes {stable_mosaic.version = 11 : i64} {
  func.func @kernel(%arg0: i32, %arg1: memref<16xi32, #tpu.memory_space<smem>>, %arg2: memref<32x16xf32, #tpu.memory_space<vmem>>, %arg3: memref<16x128xf32, #tpu.memory_space<vmem>>, %arg4: memref<32x128xf32, #tpu.memory_space<vmem>>, %arg5: memref<1x128xf32, #tpu.memory_space<vmem>>, %arg6: memref<32x128xf32, #tpu.memory_space<vmem>>, %arg7: memref<32x128xf32, #tpu.memory_space<vmem>>, %arg8: memref<1x128xf32, #tpu.memory_space<vmem>>, %arg9: memref<32x4xf32, #tpu.memory_space<vmem>>, %arg10: memref<1x4xf32, #tpu.memory_space<vmem>>, %arg11: memref<2x2x32xf32, #tpu.memory_space<vmem>>, %arg12: memref<2x2x32xf32, #tpu.memory_space<vmem>>, %arg13: memref<2x4xf32, #tpu.memory_space<vmem>>, %arg14: memref<2x2x32xf32, #tpu.memory_space<vmem>>, %arg15: memref<2x2x32xf32, #tpu.memory_space<vmem>>) attributes {dimension_semantics = [#tpu.dimension_semantics<arbitrary>], iteration_bounds = array<i64: 1>, scalar_prefetch = 1 : i64, scratch_operands = 0 : i64, tpu.core_type = #tpu.core_type<tc>, window_params = [{pipeline_mode = #tpu.pipeline_mode<synchronous>, transform_indices = @transform_0, window_bounds = array<i64: 32, 16>}, {pipeline_mode = #tpu.pipeline_mode<synchronous>, transform_indices = @transform_1, window_bounds = array<i64: 16, 128>}, {pipeline_mode = #tpu.pipeline_mode<synchronous>, transform_indices = @transform_2, window_bounds = array<i64: 32, 128>}, {pipeline_mode = #tpu.pipeline_mode<synchronous>, transform_indices = @transform_3, window_bounds = array<i64: 1, 128>}, {pipeline_mode = #tpu.pipeline_mode<synchronous>, transform_indices = @transform_4, window_bounds = array<i64: 32, 128>}, {pipeline_mode = #tpu.pipeline_mode<synchronous>, transform_indices = @transform_5, window_bounds = array<i64: 32, 128>}, {pipeline_mode = #tpu.pipeline_mode<synchronous>, transform_indices = @transform_6, window_bounds = array<i64: 1, 128>}, {pipeline_mode = #tpu.pipeline_mode<synchronous>, transform_indices = @transform_7, window_bounds = array<i64: 32, 4>}, {pipeline_mode = #tpu.pipeline_mode<synchronous>, transform_indices = @transform_8, window_bounds = array<i64: 1, 4>}, {pipeline_mode = #tpu.pipeline_mode<synchronous>, transform_indices = @transform_9, window_bounds = array<i64: 2, 2, 32>}, {pipeline_mode = #tpu.pipeline_mode<synchronous>, transform_indices = @transform_10, window_bounds = array<i64: 2, 2, 32>}, {pipeline_mode = #tpu.pipeline_mode<synchronous>, transform_indices = @transform_11, window_bounds = array<i64: 2, 4>}, {pipeline_mode = #tpu.pipeline_mode<synchronous>, transform_indices = @transform_12, window_bounds = array<i64: 2, 2, 32>}, {pipeline_mode = #tpu.pipeline_mode<synchronous>, transform_indices = @transform_13, window_bounds = array<i64: 2, 2, 32>}]} {
    %0 = tpu.iota {dimensions = array<i32: 1>} : vector<1x128xi32>
    %c64_i32 = arith.constant 64 : i32
    %1 = vector.broadcast %c64_i32 : i32 to vector<1x128xi32>
    %2 = arith.cmpi sge, %0, %1 : vector<1x128xi32>
    %c96_i32 = arith.constant 96 : i32
    %3 = vector.broadcast %c96_i32 : i32 to vector<1x128xi32>
    %4 = arith.cmpi slt, %0, %3 : vector<1x128xi32>
    %5 = arith.andi %2, %4 : vector<1x128xi1>
    %cst = arith.constant 1.000000e+00 : f32
    %cst_0 = arith.constant 5.000000e-01 : f32
    %6 = vector.broadcast %cst : f32 to vector<1x128xf32>
    %7 = vector.broadcast %cst_0 : f32 to vector<1x128xf32>
    %8 = arith.select %5, %6, %7 : vector<1x128xi1>, vector<1x128xf32>
    %9 = tpu.iota {dimensions = array<i32: 0>} : vector<16x32xi32>
    %10 = tpu.iota {dimensions = array<i32: 1>} : vector<16x32xi32>
    %cst_1 = arith.constant 0.000000e+00 : f32
    %11 = vector.broadcast %cst_1 : f32 to vector<16x32xf32>
    %c0 = arith.constant 0 : index
    %12 = memref.load %arg1[%c0] : memref<16xi32, #tpu.memory_space<smem>>
    %c0_i32 = arith.constant 0 : i32
    %13 = vector.broadcast %c0_i32 : i32 to vector<16x32xi32>
    %14 = arith.cmpi eq, %9, %13 : vector<16x32xi32>
    %15 = vector.broadcast %12 : i32 to vector<16x32xi32>
    %16 = arith.cmpi eq, %10, %15 : vector<16x32xi32>
    %17 = arith.andi %14, %16 : vector<16x32xi1>
    %cst_2 = arith.constant 1.000000e+00 : f32
    %cst_3 = arith.constant 0.000000e+00 : f32
    %18 = vector.broadcast %cst_2 : f32 to vector<16x32xf32>
    %19 = vector.broadcast %cst_3 : f32 to vector<16x32xf32>
    %20 = arith.select %17, %18, %19 : vector<16x32xi1>, vector<16x32xf32>
    %21 = arith.addf %11, %20 : vector<16x32xf32>
    %c1 = arith.constant 1 : index
    %22 = memref.load %arg1[%c1] : memref<16xi32, #tpu.memory_space<smem>>
    %c1_i32 = arith.constant 1 : i32
    %23 = vector.broadcast %c1_i32 : i32 to vector<16x32xi32>
    %24 = arith.cmpi eq, %9, %23 : vector<16x32xi32>
    %25 = vector.broadcast %22 : i32 to vector<16x32xi32>
    %26 = arith.cmpi eq, %10, %25 : vector<16x32xi32>
    %27 = arith.andi %24, %26 : vector<16x32xi1>
    %cst_4 = arith.constant 1.000000e+00 : f32
    %cst_5 = arith.constant 0.000000e+00 : f32
    %28 = vector.broadcast %cst_4 : f32 to vector<16x32xf32>
    %29 = vector.broadcast %cst_5 : f32 to vector<16x32xf32>
    %30 = arith.select %27, %28, %29 : vector<16x32xi1>, vector<16x32xf32>
    %31 = arith.addf %21, %30 : vector<16x32xf32>
    %c2 = arith.constant 2 : index
    %32 = memref.load %arg1[%c2] : memref<16xi32, #tpu.memory_space<smem>>
    %c2_i32 = arith.constant 2 : i32
    %33 = vector.broadcast %c2_i32 : i32 to vector<16x32xi32>
    %34 = arith.cmpi eq, %9, %33 : vector<16x32xi32>
    %35 = vector.broadcast %32 : i32 to vector<16x32xi32>
    %36 = arith.cmpi eq, %10, %35 : vector<16x32xi32>
    %37 = arith.andi %34, %36 : vector<16x32xi1>
    %cst_6 = arith.constant 1.000000e+00 : f32
    %cst_7 = arith.constant 0.000000e+00 : f32
    %38 = vector.broadcast %cst_6 : f32 to vector<16x32xf32>
    %39 = vector.broadcast %cst_7 : f32 to vector<16x32xf32>
    %40 = arith.select %37, %38, %39 : vector<16x32xi1>, vector<16x32xf32>
    %41 = arith.addf %31, %40 : vector<16x32xf32>
    %c3 = arith.constant 3 : index
    %42 = memref.load %arg1[%c3] : memref<16xi32, #tpu.memory_space<smem>>
    %c3_i32 = arith.constant 3 : i32
    %43 = vector.broadcast %c3_i32 : i32 to vector<16x32xi32>
    %44 = arith.cmpi eq, %9, %43 : vector<16x32xi32>
    %45 = vector.broadcast %42 : i32 to vector<16x32xi32>
    %46 = arith.cmpi eq, %10, %45 : vector<16x32xi32>
    %47 = arith.andi %44, %46 : vector<16x32xi1>
    %cst_8 = arith.constant 1.000000e+00 : f32
    %cst_9 = arith.constant 0.000000e+00 : f32
    %48 = vector.broadcast %cst_8 : f32 to vector<16x32xf32>
    %49 = vector.broadcast %cst_9 : f32 to vector<16x32xf32>
    %50 = arith.select %47, %48, %49 : vector<16x32xi1>, vector<16x32xf32>
    %51 = arith.addf %41, %50 : vector<16x32xf32>
    %c4 = arith.constant 4 : index
    %52 = memref.load %arg1[%c4] : memref<16xi32, #tpu.memory_space<smem>>
    %c4_i32 = arith.constant 4 : i32
    %53 = vector.broadcast %c4_i32 : i32 to vector<16x32xi32>
    %54 = arith.cmpi eq, %9, %53 : vector<16x32xi32>
    %55 = vector.broadcast %52 : i32 to vector<16x32xi32>
    %56 = arith.cmpi eq, %10, %55 : vector<16x32xi32>
    %57 = arith.andi %54, %56 : vector<16x32xi1>
    %cst_10 = arith.constant 1.000000e+00 : f32
    %cst_11 = arith.constant 0.000000e+00 : f32
    %58 = vector.broadcast %cst_10 : f32 to vector<16x32xf32>
    %59 = vector.broadcast %cst_11 : f32 to vector<16x32xf32>
    %60 = arith.select %57, %58, %59 : vector<16x32xi1>, vector<16x32xf32>
    %61 = arith.addf %51, %60 : vector<16x32xf32>
    %c5 = arith.constant 5 : index
    %62 = memref.load %arg1[%c5] : memref<16xi32, #tpu.memory_space<smem>>
    %c5_i32 = arith.constant 5 : i32
    %63 = vector.broadcast %c5_i32 : i32 to vector<16x32xi32>
    %64 = arith.cmpi eq, %9, %63 : vector<16x32xi32>
    %65 = vector.broadcast %62 : i32 to vector<16x32xi32>
    %66 = arith.cmpi eq, %10, %65 : vector<16x32xi32>
    %67 = arith.andi %64, %66 : vector<16x32xi1>
    %cst_12 = arith.constant 1.000000e+00 : f32
    %cst_13 = arith.constant 0.000000e+00 : f32
    %68 = vector.broadcast %cst_12 : f32 to vector<16x32xf32>
    %69 = vector.broadcast %cst_13 : f32 to vector<16x32xf32>
    %70 = arith.select %67, %68, %69 : vector<16x32xi1>, vector<16x32xf32>
    %71 = arith.addf %61, %70 : vector<16x32xf32>
    %c6 = arith.constant 6 : index
    %72 = memref.load %arg1[%c6] : memref<16xi32, #tpu.memory_space<smem>>
    %c6_i32 = arith.constant 6 : i32
    %73 = vector.broadcast %c6_i32 : i32 to vector<16x32xi32>
    %74 = arith.cmpi eq, %9, %73 : vector<16x32xi32>
    %75 = vector.broadcast %72 : i32 to vector<16x32xi32>
    %76 = arith.cmpi eq, %10, %75 : vector<16x32xi32>
    %77 = arith.andi %74, %76 : vector<16x32xi1>
    %cst_14 = arith.constant 1.000000e+00 : f32
    %cst_15 = arith.constant 0.000000e+00 : f32
    %78 = vector.broadcast %cst_14 : f32 to vector<16x32xf32>
    %79 = vector.broadcast %cst_15 : f32 to vector<16x32xf32>
    %80 = arith.select %77, %78, %79 : vector<16x32xi1>, vector<16x32xf32>
    %81 = arith.addf %71, %80 : vector<16x32xf32>
    %c7 = arith.constant 7 : index
    %82 = memref.load %arg1[%c7] : memref<16xi32, #tpu.memory_space<smem>>
    %c7_i32 = arith.constant 7 : i32
    %83 = vector.broadcast %c7_i32 : i32 to vector<16x32xi32>
    %84 = arith.cmpi eq, %9, %83 : vector<16x32xi32>
    %85 = vector.broadcast %82 : i32 to vector<16x32xi32>
    %86 = arith.cmpi eq, %10, %85 : vector<16x32xi32>
    %87 = arith.andi %84, %86 : vector<16x32xi1>
    %cst_16 = arith.constant 1.000000e+00 : f32
    %cst_17 = arith.constant 0.000000e+00 : f32
    %88 = vector.broadcast %cst_16 : f32 to vector<16x32xf32>
    %89 = vector.broadcast %cst_17 : f32 to vector<16x32xf32>
    %90 = arith.select %87, %88, %89 : vector<16x32xi1>, vector<16x32xf32>
    %91 = arith.addf %81, %90 : vector<16x32xf32>
    %c8 = arith.constant 8 : index
    %92 = memref.load %arg1[%c8] : memref<16xi32, #tpu.memory_space<smem>>
    %c8_i32 = arith.constant 8 : i32
    %93 = vector.broadcast %c8_i32 : i32 to vector<16x32xi32>
    %94 = arith.cmpi eq, %9, %93 : vector<16x32xi32>
    %95 = vector.broadcast %92 : i32 to vector<16x32xi32>
    %96 = arith.cmpi eq, %10, %95 : vector<16x32xi32>
    %97 = arith.andi %94, %96 : vector<16x32xi1>
    %cst_18 = arith.constant 1.000000e+00 : f32
    %cst_19 = arith.constant 0.000000e+00 : f32
    %98 = vector.broadcast %cst_18 : f32 to vector<16x32xf32>
    %99 = vector.broadcast %cst_19 : f32 to vector<16x32xf32>
    %100 = arith.select %97, %98, %99 : vector<16x32xi1>, vector<16x32xf32>
    %101 = arith.addf %91, %100 : vector<16x32xf32>
    %c9 = arith.constant 9 : index
    %102 = memref.load %arg1[%c9] : memref<16xi32, #tpu.memory_space<smem>>
    %c9_i32 = arith.constant 9 : i32
    %103 = vector.broadcast %c9_i32 : i32 to vector<16x32xi32>
    %104 = arith.cmpi eq, %9, %103 : vector<16x32xi32>
    %105 = vector.broadcast %102 : i32 to vector<16x32xi32>
    %106 = arith.cmpi eq, %10, %105 : vector<16x32xi32>
    %107 = arith.andi %104, %106 : vector<16x32xi1>
    %cst_20 = arith.constant 1.000000e+00 : f32
    %cst_21 = arith.constant 0.000000e+00 : f32
    %108 = vector.broadcast %cst_20 : f32 to vector<16x32xf32>
    %109 = vector.broadcast %cst_21 : f32 to vector<16x32xf32>
    %110 = arith.select %107, %108, %109 : vector<16x32xi1>, vector<16x32xf32>
    %111 = arith.addf %101, %110 : vector<16x32xf32>
    %c10 = arith.constant 10 : index
    %112 = memref.load %arg1[%c10] : memref<16xi32, #tpu.memory_space<smem>>
    %c10_i32 = arith.constant 10 : i32
    %113 = vector.broadcast %c10_i32 : i32 to vector<16x32xi32>
    %114 = arith.cmpi eq, %9, %113 : vector<16x32xi32>
    %115 = vector.broadcast %112 : i32 to vector<16x32xi32>
    %116 = arith.cmpi eq, %10, %115 : vector<16x32xi32>
    %117 = arith.andi %114, %116 : vector<16x32xi1>
    %cst_22 = arith.constant 1.000000e+00 : f32
    %cst_23 = arith.constant 0.000000e+00 : f32
    %118 = vector.broadcast %cst_22 : f32 to vector<16x32xf32>
    %119 = vector.broadcast %cst_23 : f32 to vector<16x32xf32>
    %120 = arith.select %117, %118, %119 : vector<16x32xi1>, vector<16x32xf32>
    %121 = arith.addf %111, %120 : vector<16x32xf32>
    %c11 = arith.constant 11 : index
    %122 = memref.load %arg1[%c11] : memref<16xi32, #tpu.memory_space<smem>>
    %c11_i32 = arith.constant 11 : i32
    %123 = vector.broadcast %c11_i32 : i32 to vector<16x32xi32>
    %124 = arith.cmpi eq, %9, %123 : vector<16x32xi32>
    %125 = vector.broadcast %122 : i32 to vector<16x32xi32>
    %126 = arith.cmpi eq, %10, %125 : vector<16x32xi32>
    %127 = arith.andi %124, %126 : vector<16x32xi1>
    %cst_24 = arith.constant 1.000000e+00 : f32
    %cst_25 = arith.constant 0.000000e+00 : f32
    %128 = vector.broadcast %cst_24 : f32 to vector<16x32xf32>
    %129 = vector.broadcast %cst_25 : f32 to vector<16x32xf32>
    %130 = arith.select %127, %128, %129 : vector<16x32xi1>, vector<16x32xf32>
    %131 = arith.addf %121, %130 : vector<16x32xf32>
    %c12 = arith.constant 12 : index
    %132 = memref.load %arg1[%c12] : memref<16xi32, #tpu.memory_space<smem>>
    %c12_i32 = arith.constant 12 : i32
    %133 = vector.broadcast %c12_i32 : i32 to vector<16x32xi32>
    %134 = arith.cmpi eq, %9, %133 : vector<16x32xi32>
    %135 = vector.broadcast %132 : i32 to vector<16x32xi32>
    %136 = arith.cmpi eq, %10, %135 : vector<16x32xi32>
    %137 = arith.andi %134, %136 : vector<16x32xi1>
    %cst_26 = arith.constant 1.000000e+00 : f32
    %cst_27 = arith.constant 0.000000e+00 : f32
    %138 = vector.broadcast %cst_26 : f32 to vector<16x32xf32>
    %139 = vector.broadcast %cst_27 : f32 to vector<16x32xf32>
    %140 = arith.select %137, %138, %139 : vector<16x32xi1>, vector<16x32xf32>
    %141 = arith.addf %131, %140 : vector<16x32xf32>
    %c13 = arith.constant 13 : index
    %142 = memref.load %arg1[%c13] : memref<16xi32, #tpu.memory_space<smem>>
    %c13_i32 = arith.constant 13 : i32
    %143 = vector.broadcast %c13_i32 : i32 to vector<16x32xi32>
    %144 = arith.cmpi eq, %9, %143 : vector<16x32xi32>
    %145 = vector.broadcast %142 : i32 to vector<16x32xi32>
    %146 = arith.cmpi eq, %10, %145 : vector<16x32xi32>
    %147 = arith.andi %144, %146 : vector<16x32xi1>
    %cst_28 = arith.constant 1.000000e+00 : f32
    %cst_29 = arith.constant 0.000000e+00 : f32
    %148 = vector.broadcast %cst_28 : f32 to vector<16x32xf32>
    %149 = vector.broadcast %cst_29 : f32 to vector<16x32xf32>
    %150 = arith.select %147, %148, %149 : vector<16x32xi1>, vector<16x32xf32>
    %151 = arith.addf %141, %150 : vector<16x32xf32>
    %c14 = arith.constant 14 : index
    %152 = memref.load %arg1[%c14] : memref<16xi32, #tpu.memory_space<smem>>
    %c14_i32 = arith.constant 14 : i32
    %153 = vector.broadcast %c14_i32 : i32 to vector<16x32xi32>
    %154 = arith.cmpi eq, %9, %153 : vector<16x32xi32>
    %155 = vector.broadcast %152 : i32 to vector<16x32xi32>
    %156 = arith.cmpi eq, %10, %155 : vector<16x32xi32>
    %157 = arith.andi %154, %156 : vector<16x32xi1>
    %cst_30 = arith.constant 1.000000e+00 : f32
    %cst_31 = arith.constant 0.000000e+00 : f32
    %158 = vector.broadcast %cst_30 : f32 to vector<16x32xf32>
    %159 = vector.broadcast %cst_31 : f32 to vector<16x32xf32>
    %160 = arith.select %157, %158, %159 : vector<16x32xi1>, vector<16x32xf32>
    %161 = arith.addf %151, %160 : vector<16x32xf32>
    %c15 = arith.constant 15 : index
    %162 = memref.load %arg1[%c15] : memref<16xi32, #tpu.memory_space<smem>>
    %c15_i32 = arith.constant 15 : i32
    %163 = vector.broadcast %c15_i32 : i32 to vector<16x32xi32>
    %164 = arith.cmpi eq, %9, %163 : vector<16x32xi32>
    %165 = vector.broadcast %162 : i32 to vector<16x32xi32>
    %166 = arith.cmpi eq, %10, %165 : vector<16x32xi32>
    %167 = arith.andi %164, %166 : vector<16x32xi1>
    %cst_32 = arith.constant 1.000000e+00 : f32
    %cst_33 = arith.constant 0.000000e+00 : f32
    %168 = vector.broadcast %cst_32 : f32 to vector<16x32xf32>
    %169 = vector.broadcast %cst_33 : f32 to vector<16x32xf32>
    %170 = arith.select %167, %168, %169 : vector<16x32xi1>, vector<16x32xf32>
    %171 = arith.addf %161, %170 : vector<16x32xf32>
    %c0_34 = arith.constant 0 : index
    %c0_35 = arith.constant 0 : index
    %172 = vector.load %arg3[%c0_34, %c0_35] : memref<16x128xf32, #tpu.memory_space<vmem>>, vector<16x128xf32>
    %173 = vector.broadcast %8 : vector<1x128xf32> to vector<16x128xf32>
    %174 = arith.mulf %172, %173 : vector<16x128xf32>
    %c0_36 = arith.constant 0 : index
    %c0_37 = arith.constant 0 : index
    %175 = vector.load %arg4[%c0_36, %c0_37] : memref<32x128xf32, #tpu.memory_space<vmem>>, vector<32x128xf32>
    %176 = vector.broadcast %8 : vector<1x128xf32> to vector<32x128xf32>
    %177 = arith.mulf %175, %176 : vector<32x128xf32>
    %c0_38 = arith.constant 0 : index
    %c0_39 = arith.constant 0 : index
    %178 = vector.load %arg5[%c0_38, %c0_39] : memref<1x128xf32, #tpu.memory_space<vmem>>, vector<1x128xf32>
    %179 = arith.mulf %178, %8 : vector<1x128xf32>
    %c0_40 = arith.constant 0 : index
    %c0_41 = arith.constant 0 : index
    %180 = vector.load %arg2[%c0_40, %c0_41] : memref<32x16xf32, #tpu.memory_space<vmem>>, vector<32x16xf32>
    %cst_42 = arith.constant dense<0.000000e+00> : vector<32x128xf32>
    %181 = tpu.matmul %180, %174, %cst_42 {dimension_numbers = #tpu.dot_dimension_numbers<[1], [0], [0], [1], [0, 0, 1, 1], [], []>} : vector<32x16xf32>, vector<16x128xf32>, vector<32x128xf32> -> vector<32x128xf32>
    %cst_43 = arith.constant dense<0.000000e+00> : vector<16x128xf32>
    %182 = tpu.matmul %171, %181, %cst_43 {dimension_numbers = #tpu.dot_dimension_numbers<[1], [0], [0], [1], [0, 0, 1, 1], [], []>} : vector<16x32xf32>, vector<32x128xf32>, vector<16x128xf32> -> vector<16x128xf32>
    %183 = vector.broadcast %179 : vector<1x128xf32> to vector<16x128xf32>
    %184 = arith.addf %182, %183 : vector<16x128xf32>
    %185 = vector.extract_strided_slice %184 {offsets = [0, 0], sizes = [2, 128], strides = [1, 1]} : vector<16x128xf32> to vector<2x128xf32>
    %186 = vector.extract_strided_slice %184 {offsets = [2, 0], sizes = [2, 128], strides = [1, 1]} : vector<16x128xf32> to vector<2x128xf32>
    %187 = vector.extract_strided_slice %184 {offsets = [4, 0], sizes = [2, 128], strides = [1, 1]} : vector<16x128xf32> to vector<2x128xf32>
    %188 = vector.extract_strided_slice %184 {offsets = [6, 0], sizes = [2, 128], strides = [1, 1]} : vector<16x128xf32> to vector<2x128xf32>
    %189 = vector.extract_strided_slice %184 {offsets = [8, 0], sizes = [2, 128], strides = [1, 1]} : vector<16x128xf32> to vector<2x128xf32>
    %190 = vector.extract_strided_slice %184 {offsets = [10, 0], sizes = [2, 128], strides = [1, 1]} : vector<16x128xf32> to vector<2x128xf32>
    %191 = vector.extract_strided_slice %184 {offsets = [12, 0], sizes = [2, 128], strides = [1, 1]} : vector<16x128xf32> to vector<2x128xf32>
    %192 = vector.extract_strided_slice %184 {offsets = [14, 0], sizes = [2, 128], strides = [1, 1]} : vector<16x128xf32> to vector<2x128xf32>
    %c0_44 = arith.constant 0 : index
    %c0_45 = arith.constant 0 : index
    %c0_46 = arith.constant 0 : index
    %193 = vector.load %arg11[%c0_44, %c0_45, %c0_46] : memref<2x2x32xf32, #tpu.memory_space<vmem>>, vector<1x2x32xf32>
    %194 = vector.shape_cast %193 : vector<1x2x32xf32> to vector<2x32xf32>
    %c0_47 = arith.constant 0 : index
    %c0_48 = arith.constant 0 : index
    %c0_49 = arith.constant 0 : index
    %195 = vector.load %arg12[%c0_47, %c0_48, %c0_49] : memref<2x2x32xf32, #tpu.memory_space<vmem>>, vector<1x2x32xf32>
    %196 = vector.shape_cast %195 : vector<1x2x32xf32> to vector<2x32xf32>
    %cst_50 = arith.constant dense<0.000000e+00> : vector<2x128xf32>
    %197 = tpu.matmul %194, %177, %cst_50 {dimension_numbers = #tpu.dot_dimension_numbers<[1], [0], [0], [1], [0, 0, 1, 1], [], []>} : vector<2x32xf32>, vector<32x128xf32>, vector<2x128xf32> -> vector<2x128xf32>
    %198 = arith.addf %185, %197 : vector<2x128xf32>
    %199 = math.tanh %198 : vector<2x128xf32>
    %cst_51 = arith.constant 5.000000e-01 : f32
    %200 = vector.broadcast %cst_51 : f32 to vector<2x128xf32>
    %201 = arith.mulf %199, %200 : vector<2x128xf32>
    %cst_52 = arith.constant 5.000000e-01 : f32
    %202 = vector.broadcast %cst_52 : f32 to vector<2x128xf32>
    %203 = arith.addf %201, %202 : vector<2x128xf32>
    %204 = vector.extract_strided_slice %203 {offsets = [0, 0], sizes = [2, 32], strides = [1, 1]} : vector<2x128xf32> to vector<2x32xf32>
    %205 = vector.extract_strided_slice %203 {offsets = [0, 32], sizes = [2, 32], strides = [1, 1]} : vector<2x128xf32> to vector<2x32xf32>
    %206 = vector.extract_strided_slice %199 {offsets = [0, 64], sizes = [2, 32], strides = [1, 1]} : vector<2x128xf32> to vector<2x32xf32>
    %207 = vector.extract_strided_slice %203 {offsets = [0, 96], sizes = [2, 32], strides = [1, 1]} : vector<2x128xf32> to vector<2x32xf32>
    %208 = arith.mulf %205, %196 : vector<2x32xf32>
    %209 = arith.mulf %204, %206 : vector<2x32xf32>
    %210 = arith.addf %208, %209 : vector<2x32xf32>
    %211 = math.tanh %210 : vector<2x32xf32>
    %212 = arith.mulf %207, %211 : vector<2x32xf32>
    %cst_53 = arith.constant dense<0.000000e+00> : vector<2x128xf32>
    %213 = tpu.matmul %212, %177, %cst_53 {dimension_numbers = #tpu.dot_dimension_numbers<[1], [0], [0], [1], [0, 0, 1, 1], [], []>} : vector<2x32xf32>, vector<32x128xf32>, vector<2x128xf32> -> vector<2x128xf32>
    %214 = arith.addf %186, %213 : vector<2x128xf32>
    %215 = math.tanh %214 : vector<2x128xf32>
    %cst_54 = arith.constant 5.000000e-01 : f32
    %216 = vector.broadcast %cst_54 : f32 to vector<2x128xf32>
    %217 = arith.mulf %215, %216 : vector<2x128xf32>
    %cst_55 = arith.constant 5.000000e-01 : f32
    %218 = vector.broadcast %cst_55 : f32 to vector<2x128xf32>
    %219 = arith.addf %217, %218 : vector<2x128xf32>
    %220 = vector.extract_strided_slice %219 {offsets = [0, 0], sizes = [2, 32], strides = [1, 1]} : vector<2x128xf32> to vector<2x32xf32>
    %221 = vector.extract_strided_slice %219 {offsets = [0, 32], sizes = [2, 32], strides = [1, 1]} : vector<2x128xf32> to vector<2x32xf32>
    %222 = vector.extract_strided_slice %215 {offsets = [0, 64], sizes = [2, 32], strides = [1, 1]} : vector<2x128xf32> to vector<2x32xf32>
    %223 = vector.extract_strided_slice %219 {offsets = [0, 96], sizes = [2, 32], strides = [1, 1]} : vector<2x128xf32> to vector<2x32xf32>
    %224 = arith.mulf %221, %210 : vector<2x32xf32>
    %225 = arith.mulf %220, %222 : vector<2x32xf32>
    %226 = arith.addf %224, %225 : vector<2x32xf32>
    %227 = math.tanh %226 : vector<2x32xf32>
    %228 = arith.mulf %223, %227 : vector<2x32xf32>
    %cst_56 = arith.constant dense<0.000000e+00> : vector<2x128xf32>
    %229 = tpu.matmul %228, %177, %cst_56 {dimension_numbers = #tpu.dot_dimension_numbers<[1], [0], [0], [1], [0, 0, 1, 1], [], []>} : vector<2x32xf32>, vector<32x128xf32>, vector<2x128xf32> -> vector<2x128xf32>
    %230 = arith.addf %187, %229 : vector<2x128xf32>
    %231 = math.tanh %230 : vector<2x128xf32>
    %cst_57 = arith.constant 5.000000e-01 : f32
    %232 = vector.broadcast %cst_57 : f32 to vector<2x128xf32>
    %233 = arith.mulf %231, %232 : vector<2x128xf32>
    %cst_58 = arith.constant 5.000000e-01 : f32
    %234 = vector.broadcast %cst_58 : f32 to vector<2x128xf32>
    %235 = arith.addf %233, %234 : vector<2x128xf32>
    %236 = vector.extract_strided_slice %235 {offsets = [0, 0], sizes = [2, 32], strides = [1, 1]} : vector<2x128xf32> to vector<2x32xf32>
    %237 = vector.extract_strided_slice %235 {offsets = [0, 32], sizes = [2, 32], strides = [1, 1]} : vector<2x128xf32> to vector<2x32xf32>
    %238 = vector.extract_strided_slice %231 {offsets = [0, 64], sizes = [2, 32], strides = [1, 1]} : vector<2x128xf32> to vector<2x32xf32>
    %239 = vector.extract_strided_slice %235 {offsets = [0, 96], sizes = [2, 32], strides = [1, 1]} : vector<2x128xf32> to vector<2x32xf32>
    %240 = arith.mulf %237, %226 : vector<2x32xf32>
    %241 = arith.mulf %236, %238 : vector<2x32xf32>
    %242 = arith.addf %240, %241 : vector<2x32xf32>
    %243 = math.tanh %242 : vector<2x32xf32>
    %244 = arith.mulf %239, %243 : vector<2x32xf32>
    %cst_59 = arith.constant dense<0.000000e+00> : vector<2x128xf32>
    %245 = tpu.matmul %244, %177, %cst_59 {dimension_numbers = #tpu.dot_dimension_numbers<[1], [0], [0], [1], [0, 0, 1, 1], [], []>} : vector<2x32xf32>, vector<32x128xf32>, vector<2x128xf32> -> vector<2x128xf32>
    %246 = arith.addf %188, %245 : vector<2x128xf32>
    %247 = math.tanh %246 : vector<2x128xf32>
    %cst_60 = arith.constant 5.000000e-01 : f32
    %248 = vector.broadcast %cst_60 : f32 to vector<2x128xf32>
    %249 = arith.mulf %247, %248 : vector<2x128xf32>
    %cst_61 = arith.constant 5.000000e-01 : f32
    %250 = vector.broadcast %cst_61 : f32 to vector<2x128xf32>
    %251 = arith.addf %249, %250 : vector<2x128xf32>
    %252 = vector.extract_strided_slice %251 {offsets = [0, 0], sizes = [2, 32], strides = [1, 1]} : vector<2x128xf32> to vector<2x32xf32>
    %253 = vector.extract_strided_slice %251 {offsets = [0, 32], sizes = [2, 32], strides = [1, 1]} : vector<2x128xf32> to vector<2x32xf32>
    %254 = vector.extract_strided_slice %247 {offsets = [0, 64], sizes = [2, 32], strides = [1, 1]} : vector<2x128xf32> to vector<2x32xf32>
    %255 = vector.extract_strided_slice %251 {offsets = [0, 96], sizes = [2, 32], strides = [1, 1]} : vector<2x128xf32> to vector<2x32xf32>
    %256 = arith.mulf %253, %242 : vector<2x32xf32>
    %257 = arith.mulf %252, %254 : vector<2x32xf32>
    %258 = arith.addf %256, %257 : vector<2x32xf32>
    %259 = math.tanh %258 : vector<2x32xf32>
    %260 = arith.mulf %255, %259 : vector<2x32xf32>
    %cst_62 = arith.constant dense<0.000000e+00> : vector<2x128xf32>
    %261 = tpu.matmul %260, %177, %cst_62 {dimension_numbers = #tpu.dot_dimension_numbers<[1], [0], [0], [1], [0, 0, 1, 1], [], []>} : vector<2x32xf32>, vector<32x128xf32>, vector<2x128xf32> -> vector<2x128xf32>
    %262 = arith.addf %189, %261 : vector<2x128xf32>
    %263 = math.tanh %262 : vector<2x128xf32>
    %cst_63 = arith.constant 5.000000e-01 : f32
    %264 = vector.broadcast %cst_63 : f32 to vector<2x128xf32>
    %265 = arith.mulf %263, %264 : vector<2x128xf32>
    %cst_64 = arith.constant 5.000000e-01 : f32
    %266 = vector.broadcast %cst_64 : f32 to vector<2x128xf32>
    %267 = arith.addf %265, %266 : vector<2x128xf32>
    %268 = vector.extract_strided_slice %267 {offsets = [0, 0], sizes = [2, 32], strides = [1, 1]} : vector<2x128xf32> to vector<2x32xf32>
    %269 = vector.extract_strided_slice %267 {offsets = [0, 32], sizes = [2, 32], strides = [1, 1]} : vector<2x128xf32> to vector<2x32xf32>
    %270 = vector.extract_strided_slice %263 {offsets = [0, 64], sizes = [2, 32], strides = [1, 1]} : vector<2x128xf32> to vector<2x32xf32>
    %271 = vector.extract_strided_slice %267 {offsets = [0, 96], sizes = [2, 32], strides = [1, 1]} : vector<2x128xf32> to vector<2x32xf32>
    %272 = arith.mulf %269, %258 : vector<2x32xf32>
    %273 = arith.mulf %268, %270 : vector<2x32xf32>
    %274 = arith.addf %272, %273 : vector<2x32xf32>
    %275 = math.tanh %274 : vector<2x32xf32>
    %276 = arith.mulf %271, %275 : vector<2x32xf32>
    %cst_65 = arith.constant dense<0.000000e+00> : vector<2x128xf32>
    %277 = tpu.matmul %276, %177, %cst_65 {dimension_numbers = #tpu.dot_dimension_numbers<[1], [0], [0], [1], [0, 0, 1, 1], [], []>} : vector<2x32xf32>, vector<32x128xf32>, vector<2x128xf32> -> vector<2x128xf32>
    %278 = arith.addf %190, %277 : vector<2x128xf32>
    %279 = math.tanh %278 : vector<2x128xf32>
    %cst_66 = arith.constant 5.000000e-01 : f32
    %280 = vector.broadcast %cst_66 : f32 to vector<2x128xf32>
    %281 = arith.mulf %279, %280 : vector<2x128xf32>
    %cst_67 = arith.constant 5.000000e-01 : f32
    %282 = vector.broadcast %cst_67 : f32 to vector<2x128xf32>
    %283 = arith.addf %281, %282 : vector<2x128xf32>
    %284 = vector.extract_strided_slice %283 {offsets = [0, 0], sizes = [2, 32], strides = [1, 1]} : vector<2x128xf32> to vector<2x32xf32>
    %285 = vector.extract_strided_slice %283 {offsets = [0, 32], sizes = [2, 32], strides = [1, 1]} : vector<2x128xf32> to vector<2x32xf32>
    %286 = vector.extract_strided_slice %279 {offsets = [0, 64], sizes = [2, 32], strides = [1, 1]} : vector<2x128xf32> to vector<2x32xf32>
    %287 = vector.extract_strided_slice %283 {offsets = [0, 96], sizes = [2, 32], strides = [1, 1]} : vector<2x128xf32> to vector<2x32xf32>
    %288 = arith.mulf %285, %274 : vector<2x32xf32>
    %289 = arith.mulf %284, %286 : vector<2x32xf32>
    %290 = arith.addf %288, %289 : vector<2x32xf32>
    %291 = math.tanh %290 : vector<2x32xf32>
    %292 = arith.mulf %287, %291 : vector<2x32xf32>
    %cst_68 = arith.constant dense<0.000000e+00> : vector<2x128xf32>
    %293 = tpu.matmul %292, %177, %cst_68 {dimension_numbers = #tpu.dot_dimension_numbers<[1], [0], [0], [1], [0, 0, 1, 1], [], []>} : vector<2x32xf32>, vector<32x128xf32>, vector<2x128xf32> -> vector<2x128xf32>
    %294 = arith.addf %191, %293 : vector<2x128xf32>
    %295 = math.tanh %294 : vector<2x128xf32>
    %cst_69 = arith.constant 5.000000e-01 : f32
    %296 = vector.broadcast %cst_69 : f32 to vector<2x128xf32>
    %297 = arith.mulf %295, %296 : vector<2x128xf32>
    %cst_70 = arith.constant 5.000000e-01 : f32
    %298 = vector.broadcast %cst_70 : f32 to vector<2x128xf32>
    %299 = arith.addf %297, %298 : vector<2x128xf32>
    %300 = vector.extract_strided_slice %299 {offsets = [0, 0], sizes = [2, 32], strides = [1, 1]} : vector<2x128xf32> to vector<2x32xf32>
    %301 = vector.extract_strided_slice %299 {offsets = [0, 32], sizes = [2, 32], strides = [1, 1]} : vector<2x128xf32> to vector<2x32xf32>
    %302 = vector.extract_strided_slice %295 {offsets = [0, 64], sizes = [2, 32], strides = [1, 1]} : vector<2x128xf32> to vector<2x32xf32>
    %303 = vector.extract_strided_slice %299 {offsets = [0, 96], sizes = [2, 32], strides = [1, 1]} : vector<2x128xf32> to vector<2x32xf32>
    %304 = arith.mulf %301, %290 : vector<2x32xf32>
    %305 = arith.mulf %300, %302 : vector<2x32xf32>
    %306 = arith.addf %304, %305 : vector<2x32xf32>
    %307 = math.tanh %306 : vector<2x32xf32>
    %308 = arith.mulf %303, %307 : vector<2x32xf32>
    %cst_71 = arith.constant dense<0.000000e+00> : vector<2x128xf32>
    %309 = tpu.matmul %308, %177, %cst_71 {dimension_numbers = #tpu.dot_dimension_numbers<[1], [0], [0], [1], [0, 0, 1, 1], [], []>} : vector<2x32xf32>, vector<32x128xf32>, vector<2x128xf32> -> vector<2x128xf32>
    %310 = arith.addf %192, %309 : vector<2x128xf32>
    %311 = math.tanh %310 : vector<2x128xf32>
    %cst_72 = arith.constant 5.000000e-01 : f32
    %312 = vector.broadcast %cst_72 : f32 to vector<2x128xf32>
    %313 = arith.mulf %311, %312 : vector<2x128xf32>
    %cst_73 = arith.constant 5.000000e-01 : f32
    %314 = vector.broadcast %cst_73 : f32 to vector<2x128xf32>
    %315 = arith.addf %313, %314 : vector<2x128xf32>
    %316 = vector.extract_strided_slice %315 {offsets = [0, 0], sizes = [2, 32], strides = [1, 1]} : vector<2x128xf32> to vector<2x32xf32>
    %317 = vector.extract_strided_slice %315 {offsets = [0, 32], sizes = [2, 32], strides = [1, 1]} : vector<2x128xf32> to vector<2x32xf32>
    %318 = vector.extract_strided_slice %311 {offsets = [0, 64], sizes = [2, 32], strides = [1, 1]} : vector<2x128xf32> to vector<2x32xf32>
    %319 = vector.extract_strided_slice %315 {offsets = [0, 96], sizes = [2, 32], strides = [1, 1]} : vector<2x128xf32> to vector<2x32xf32>
    %320 = arith.mulf %317, %306 : vector<2x32xf32>
    %321 = arith.mulf %316, %318 : vector<2x32xf32>
    %322 = arith.addf %320, %321 : vector<2x32xf32>
    %323 = math.tanh %322 : vector<2x32xf32>
    %324 = arith.mulf %319, %323 : vector<2x32xf32>
    %c0_74 = arith.constant 0 : index
    %c0_75 = arith.constant 0 : index
    %c0_76 = arith.constant 0 : index
    %325 = vector.load %arg14[%c0_74, %c0_75, %c0_76] : memref<2x2x32xf32, #tpu.memory_space<vmem>>, vector<1x2x32xf32>
    %326 = vector.shape_cast %325 : vector<1x2x32xf32> to vector<2x32xf32>
    %327 = vector.shape_cast %324 : vector<2x32xf32> to vector<1x2x32xf32>
    tpu.vector_store %arg14[%c0_74, %c0_75, %c0_76], %327 {strides = array<i32>} : memref<2x2x32xf32, #tpu.memory_space<vmem>>, vector<1x2x32xf32>,
    %c0_77 = arith.constant 0 : index
    %c0_78 = arith.constant 0 : index
    %c0_79 = arith.constant 0 : index
    %328 = vector.load %arg15[%c0_77, %c0_78, %c0_79] : memref<2x2x32xf32, #tpu.memory_space<vmem>>, vector<1x2x32xf32>
    %329 = vector.shape_cast %328 : vector<1x2x32xf32> to vector<2x32xf32>
    %330 = vector.shape_cast %322 : vector<2x32xf32> to vector<1x2x32xf32>
    tpu.vector_store %arg15[%c0_77, %c0_78, %c0_79], %330 {strides = array<i32>} : memref<2x2x32xf32, #tpu.memory_space<vmem>>, vector<1x2x32xf32>,
    %c0_80 = arith.constant 0 : index
    %c0_81 = arith.constant 0 : index
    %331 = vector.load %arg6[%c0_80, %c0_81] : memref<32x128xf32, #tpu.memory_space<vmem>>, vector<32x128xf32>
    %332 = vector.broadcast %8 : vector<1x128xf32> to vector<32x128xf32>
    %333 = arith.mulf %331, %332 : vector<32x128xf32>
    %c0_82 = arith.constant 0 : index
    %c0_83 = arith.constant 0 : index
    %334 = vector.load %arg7[%c0_82, %c0_83] : memref<32x128xf32, #tpu.memory_space<vmem>>, vector<32x128xf32>
    %335 = vector.broadcast %8 : vector<1x128xf32> to vector<32x128xf32>
    %336 = arith.mulf %334, %335 : vector<32x128xf32>
    %c0_84 = arith.constant 0 : index
    %c0_85 = arith.constant 0 : index
    %337 = vector.load %arg8[%c0_84, %c0_85] : memref<1x128xf32, #tpu.memory_space<vmem>>, vector<1x128xf32>
    %338 = arith.mulf %337, %8 : vector<1x128xf32>
    %cst_86 = arith.constant dense<0.000000e+00> : vector<2x128xf32>
    %339 = tpu.matmul %212, %333, %cst_86 {dimension_numbers = #tpu.dot_dimension_numbers<[1], [0], [0], [1], [0, 0, 1, 1], [], []>} : vector<2x32xf32>, vector<32x128xf32>, vector<2x128xf32> -> vector<2x128xf32>
    %340 = vector.broadcast %338 : vector<1x128xf32> to vector<2x128xf32>
    %341 = arith.addf %339, %340 : vector<2x128xf32>
    %cst_87 = arith.constant dense<0.000000e+00> : vector<2x128xf32>
    %342 = tpu.matmul %228, %333, %cst_87 {dimension_numbers = #tpu.dot_dimension_numbers<[1], [0], [0], [1], [0, 0, 1, 1], [], []>} : vector<2x32xf32>, vector<32x128xf32>, vector<2x128xf32> -> vector<2x128xf32>
    %343 = vector.broadcast %338 : vector<1x128xf32> to vector<2x128xf32>
    %344 = arith.addf %342, %343 : vector<2x128xf32>
    %cst_88 = arith.constant dense<0.000000e+00> : vector<2x128xf32>
    %345 = tpu.matmul %244, %333, %cst_88 {dimension_numbers = #tpu.dot_dimension_numbers<[1], [0], [0], [1], [0, 0, 1, 1], [], []>} : vector<2x32xf32>, vector<32x128xf32>, vector<2x128xf32> -> vector<2x128xf32>
    %346 = vector.broadcast %338 : vector<1x128xf32> to vector<2x128xf32>
    %347 = arith.addf %345, %346 : vector<2x128xf32>
    %cst_89 = arith.constant dense<0.000000e+00> : vector<2x128xf32>
    %348 = tpu.matmul %260, %333, %cst_89 {dimension_numbers = #tpu.dot_dimension_numbers<[1], [0], [0], [1], [0, 0, 1, 1], [], []>} : vector<2x32xf32>, vector<32x128xf32>, vector<2x128xf32> -> vector<2x128xf32>
    %349 = vector.broadcast %338 : vector<1x128xf32> to vector<2x128xf32>
    %350 = arith.addf %348, %349 : vector<2x128xf32>
    %cst_90 = arith.constant dense<0.000000e+00> : vector<2x128xf32>
    %351 = tpu.matmul %276, %333, %cst_90 {dimension_numbers = #tpu.dot_dimension_numbers<[1], [0], [0], [1], [0, 0, 1, 1], [], []>} : vector<2x32xf32>, vector<32x128xf32>, vector<2x128xf32> -> vector<2x128xf32>
    %352 = vector.broadcast %338 : vector<1x128xf32> to vector<2x128xf32>
    %353 = arith.addf %351, %352 : vector<2x128xf32>
    %cst_91 = arith.constant dense<0.000000e+00> : vector<2x128xf32>
    %354 = tpu.matmul %292, %333, %cst_91 {dimension_numbers = #tpu.dot_dimension_numbers<[1], [0], [0], [1], [0, 0, 1, 1], [], []>} : vector<2x32xf32>, vector<32x128xf32>, vector<2x128xf32> -> vector<2x128xf32>
    %355 = vector.broadcast %338 : vector<1x128xf32> to vector<2x128xf32>
    %356 = arith.addf %354, %355 : vector<2x128xf32>
    %cst_92 = arith.constant dense<0.000000e+00> : vector<2x128xf32>
    %357 = tpu.matmul %308, %333, %cst_92 {dimension_numbers = #tpu.dot_dimension_numbers<[1], [0], [0], [1], [0, 0, 1, 1], [], []>} : vector<2x32xf32>, vector<32x128xf32>, vector<2x128xf32> -> vector<2x128xf32>
    %358 = vector.broadcast %338 : vector<1x128xf32> to vector<2x128xf32>
    %359 = arith.addf %357, %358 : vector<2x128xf32>
    %cst_93 = arith.constant dense<0.000000e+00> : vector<2x128xf32>
    %360 = tpu.matmul %324, %333, %cst_93 {dimension_numbers = #tpu.dot_dimension_numbers<[1], [0], [0], [1], [0, 0, 1, 1], [], []>} : vector<2x32xf32>, vector<32x128xf32>, vector<2x128xf32> -> vector<2x128xf32>
    %361 = vector.broadcast %338 : vector<1x128xf32> to vector<2x128xf32>
    %362 = arith.addf %360, %361 : vector<2x128xf32>
    %c1_94 = arith.constant 1 : index
    %c0_95 = arith.constant 0 : index
    %c0_96 = arith.constant 0 : index
    %363 = vector.load %arg11[%c1_94, %c0_95, %c0_96] : memref<2x2x32xf32, #tpu.memory_space<vmem>>, vector<1x2x32xf32>
    %364 = vector.shape_cast %363 : vector<1x2x32xf32> to vector<2x32xf32>
    %c1_97 = arith.constant 1 : index
    %c0_98 = arith.constant 0 : index
    %c0_99 = arith.constant 0 : index
    %365 = vector.load %arg12[%c1_97, %c0_98, %c0_99] : memref<2x2x32xf32, #tpu.memory_space<vmem>>, vector<1x2x32xf32>
    %366 = vector.shape_cast %365 : vector<1x2x32xf32> to vector<2x32xf32>
    %cst_100 = arith.constant dense<0.000000e+00> : vector<2x128xf32>
    %367 = tpu.matmul %364, %336, %cst_100 {dimension_numbers = #tpu.dot_dimension_numbers<[1], [0], [0], [1], [0, 0, 1, 1], [], []>} : vector<2x32xf32>, vector<32x128xf32>, vector<2x128xf32> -> vector<2x128xf32>
    %368 = arith.addf %341, %367 : vector<2x128xf32>
    %369 = math.tanh %368 : vector<2x128xf32>
    %cst_101 = arith.constant 5.000000e-01 : f32
    %370 = vector.broadcast %cst_101 : f32 to vector<2x128xf32>
    %371 = arith.mulf %369, %370 : vector<2x128xf32>
    %cst_102 = arith.constant 5.000000e-01 : f32
    %372 = vector.broadcast %cst_102 : f32 to vector<2x128xf32>
    %373 = arith.addf %371, %372 : vector<2x128xf32>
    %374 = vector.extract_strided_slice %373 {offsets = [0, 0], sizes = [2, 32], strides = [1, 1]} : vector<2x128xf32> to vector<2x32xf32>
    %375 = vector.extract_strided_slice %373 {offsets = [0, 32], sizes = [2, 32], strides = [1, 1]} : vector<2x128xf32> to vector<2x32xf32>
    %376 = vector.extract_strided_slice %369 {offsets = [0, 64], sizes = [2, 32], strides = [1, 1]} : vector<2x128xf32> to vector<2x32xf32>
    %377 = vector.extract_strided_slice %373 {offsets = [0, 96], sizes = [2, 32], strides = [1, 1]} : vector<2x128xf32> to vector<2x32xf32>
    %378 = arith.mulf %375, %366 : vector<2x32xf32>
    %379 = arith.mulf %374, %376 : vector<2x32xf32>
    %380 = arith.addf %378, %379 : vector<2x32xf32>
    %381 = math.tanh %380 : vector<2x32xf32>
    %382 = arith.mulf %377, %381 : vector<2x32xf32>
    %cst_103 = arith.constant dense<0.000000e+00> : vector<2x128xf32>
    %383 = tpu.matmul %382, %336, %cst_103 {dimension_numbers = #tpu.dot_dimension_numbers<[1], [0], [0], [1], [0, 0, 1, 1], [], []>} : vector<2x32xf32>, vector<32x128xf32>, vector<2x128xf32> -> vector<2x128xf32>
    %384 = arith.addf %344, %383 : vector<2x128xf32>
    %385 = math.tanh %384 : vector<2x128xf32>
    %cst_104 = arith.constant 5.000000e-01 : f32
    %386 = vector.broadcast %cst_104 : f32 to vector<2x128xf32>
    %387 = arith.mulf %385, %386 : vector<2x128xf32>
    %cst_105 = arith.constant 5.000000e-01 : f32
    %388 = vector.broadcast %cst_105 : f32 to vector<2x128xf32>
    %389 = arith.addf %387, %388 : vector<2x128xf32>
    %390 = vector.extract_strided_slice %389 {offsets = [0, 0], sizes = [2, 32], strides = [1, 1]} : vector<2x128xf32> to vector<2x32xf32>
    %391 = vector.extract_strided_slice %389 {offsets = [0, 32], sizes = [2, 32], strides = [1, 1]} : vector<2x128xf32> to vector<2x32xf32>
    %392 = vector.extract_strided_slice %385 {offsets = [0, 64], sizes = [2, 32], strides = [1, 1]} : vector<2x128xf32> to vector<2x32xf32>
    %393 = vector.extract_strided_slice %389 {offsets = [0, 96], sizes = [2, 32], strides = [1, 1]} : vector<2x128xf32> to vector<2x32xf32>
    %394 = arith.mulf %391, %380 : vector<2x32xf32>
    %395 = arith.mulf %390, %392 : vector<2x32xf32>
    %396 = arith.addf %394, %395 : vector<2x32xf32>
    %397 = math.tanh %396 : vector<2x32xf32>
    %398 = arith.mulf %393, %397 : vector<2x32xf32>
    %cst_106 = arith.constant dense<0.000000e+00> : vector<2x128xf32>
    %399 = tpu.matmul %398, %336, %cst_106 {dimension_numbers = #tpu.dot_dimension_numbers<[1], [0], [0], [1], [0, 0, 1, 1], [], []>} : vector<2x32xf32>, vector<32x128xf32>, vector<2x128xf32> -> vector<2x128xf32>
    %400 = arith.addf %347, %399 : vector<2x128xf32>
    %401 = math.tanh %400 : vector<2x128xf32>
    %cst_107 = arith.constant 5.000000e-01 : f32
    %402 = vector.broadcast %cst_107 : f32 to vector<2x128xf32>
    %403 = arith.mulf %401, %402 : vector<2x128xf32>
    %cst_108 = arith.constant 5.000000e-01 : f32
    %404 = vector.broadcast %cst_108 : f32 to vector<2x128xf32>
    %405 = arith.addf %403, %404 : vector<2x128xf32>
    %406 = vector.extract_strided_slice %405 {offsets = [0, 0], sizes = [2, 32], strides = [1, 1]} : vector<2x128xf32> to vector<2x32xf32>
    %407 = vector.extract_strided_slice %405 {offsets = [0, 32], sizes = [2, 32], strides = [1, 1]} : vector<2x128xf32> to vector<2x32xf32>
    %408 = vector.extract_strided_slice %401 {offsets = [0, 64], sizes = [2, 32], strides = [1, 1]} : vector<2x128xf32> to vector<2x32xf32>
    %409 = vector.extract_strided_slice %405 {offsets = [0, 96], sizes = [2, 32], strides = [1, 1]} : vector<2x128xf32> to vector<2x32xf32>
    %410 = arith.mulf %407, %396 : vector<2x32xf32>
    %411 = arith.mulf %406, %408 : vector<2x32xf32>
    %412 = arith.addf %410, %411 : vector<2x32xf32>
    %413 = math.tanh %412 : vector<2x32xf32>
    %414 = arith.mulf %409, %413 : vector<2x32xf32>
    %cst_109 = arith.constant dense<0.000000e+00> : vector<2x128xf32>
    %415 = tpu.matmul %414, %336, %cst_109 {dimension_numbers = #tpu.dot_dimension_numbers<[1], [0], [0], [1], [0, 0, 1, 1], [], []>} : vector<2x32xf32>, vector<32x128xf32>, vector<2x128xf32> -> vector<2x128xf32>
    %416 = arith.addf %350, %415 : vector<2x128xf32>
    %417 = math.tanh %416 : vector<2x128xf32>
    %cst_110 = arith.constant 5.000000e-01 : f32
    %418 = vector.broadcast %cst_110 : f32 to vector<2x128xf32>
    %419 = arith.mulf %417, %418 : vector<2x128xf32>
    %cst_111 = arith.constant 5.000000e-01 : f32
    %420 = vector.broadcast %cst_111 : f32 to vector<2x128xf32>
    %421 = arith.addf %419, %420 : vector<2x128xf32>
    %422 = vector.extract_strided_slice %421 {offsets = [0, 0], sizes = [2, 32], strides = [1, 1]} : vector<2x128xf32> to vector<2x32xf32>
    %423 = vector.extract_strided_slice %421 {offsets = [0, 32], sizes = [2, 32], strides = [1, 1]} : vector<2x128xf32> to vector<2x32xf32>
    %424 = vector.extract_strided_slice %417 {offsets = [0, 64], sizes = [2, 32], strides = [1, 1]} : vector<2x128xf32> to vector<2x32xf32>
    %425 = vector.extract_strided_slice %421 {offsets = [0, 96], sizes = [2, 32], strides = [1, 1]} : vector<2x128xf32> to vector<2x32xf32>
    %426 = arith.mulf %423, %412 : vector<2x32xf32>
    %427 = arith.mulf %422, %424 : vector<2x32xf32>
    %428 = arith.addf %426, %427 : vector<2x32xf32>
    %429 = math.tanh %428 : vector<2x32xf32>
    %430 = arith.mulf %425, %429 : vector<2x32xf32>
    %cst_112 = arith.constant dense<0.000000e+00> : vector<2x128xf32>
    %431 = tpu.matmul %430, %336, %cst_112 {dimension_numbers = #tpu.dot_dimension_numbers<[1], [0], [0], [1], [0, 0, 1, 1], [], []>} : vector<2x32xf32>, vector<32x128xf32>, vector<2x128xf32> -> vector<2x128xf32>
    %432 = arith.addf %353, %431 : vector<2x128xf32>
    %433 = math.tanh %432 : vector<2x128xf32>
    %cst_113 = arith.constant 5.000000e-01 : f32
    %434 = vector.broadcast %cst_113 : f32 to vector<2x128xf32>
    %435 = arith.mulf %433, %434 : vector<2x128xf32>
    %cst_114 = arith.constant 5.000000e-01 : f32
    %436 = vector.broadcast %cst_114 : f32 to vector<2x128xf32>
    %437 = arith.addf %435, %436 : vector<2x128xf32>
    %438 = vector.extract_strided_slice %437 {offsets = [0, 0], sizes = [2, 32], strides = [1, 1]} : vector<2x128xf32> to vector<2x32xf32>
    %439 = vector.extract_strided_slice %437 {offsets = [0, 32], sizes = [2, 32], strides = [1, 1]} : vector<2x128xf32> to vector<2x32xf32>
    %440 = vector.extract_strided_slice %433 {offsets = [0, 64], sizes = [2, 32], strides = [1, 1]} : vector<2x128xf32> to vector<2x32xf32>
    %441 = vector.extract_strided_slice %437 {offsets = [0, 96], sizes = [2, 32], strides = [1, 1]} : vector<2x128xf32> to vector<2x32xf32>
    %442 = arith.mulf %439, %428 : vector<2x32xf32>
    %443 = arith.mulf %438, %440 : vector<2x32xf32>
    %444 = arith.addf %442, %443 : vector<2x32xf32>
    %445 = math.tanh %444 : vector<2x32xf32>
    %446 = arith.mulf %441, %445 : vector<2x32xf32>
    %cst_115 = arith.constant dense<0.000000e+00> : vector<2x128xf32>
    %447 = tpu.matmul %446, %336, %cst_115 {dimension_numbers = #tpu.dot_dimension_numbers<[1], [0], [0], [1], [0, 0, 1, 1], [], []>} : vector<2x32xf32>, vector<32x128xf32>, vector<2x128xf32> -> vector<2x128xf32>
    %448 = arith.addf %356, %447 : vector<2x128xf32>
    %449 = math.tanh %448 : vector<2x128xf32>
    %cst_116 = arith.constant 5.000000e-01 : f32
    %450 = vector.broadcast %cst_116 : f32 to vector<2x128xf32>
    %451 = arith.mulf %449, %450 : vector<2x128xf32>
    %cst_117 = arith.constant 5.000000e-01 : f32
    %452 = vector.broadcast %cst_117 : f32 to vector<2x128xf32>
    %453 = arith.addf %451, %452 : vector<2x128xf32>
    %454 = vector.extract_strided_slice %453 {offsets = [0, 0], sizes = [2, 32], strides = [1, 1]} : vector<2x128xf32> to vector<2x32xf32>
    %455 = vector.extract_strided_slice %453 {offsets = [0, 32], sizes = [2, 32], strides = [1, 1]} : vector<2x128xf32> to vector<2x32xf32>
    %456 = vector.extract_strided_slice %449 {offsets = [0, 64], sizes = [2, 32], strides = [1, 1]} : vector<2x128xf32> to vector<2x32xf32>
    %457 = vector.extract_strided_slice %453 {offsets = [0, 96], sizes = [2, 32], strides = [1, 1]} : vector<2x128xf32> to vector<2x32xf32>
    %458 = arith.mulf %455, %444 : vector<2x32xf32>
    %459 = arith.mulf %454, %456 : vector<2x32xf32>
    %460 = arith.addf %458, %459 : vector<2x32xf32>
    %461 = math.tanh %460 : vector<2x32xf32>
    %462 = arith.mulf %457, %461 : vector<2x32xf32>
    %cst_118 = arith.constant dense<0.000000e+00> : vector<2x128xf32>
    %463 = tpu.matmul %462, %336, %cst_118 {dimension_numbers = #tpu.dot_dimension_numbers<[1], [0], [0], [1], [0, 0, 1, 1], [], []>} : vector<2x32xf32>, vector<32x128xf32>, vector<2x128xf32> -> vector<2x128xf32>
    %464 = arith.addf %359, %463 : vector<2x128xf32>
    %465 = math.tanh %464 : vector<2x128xf32>
    %cst_119 = arith.constant 5.000000e-01 : f32
    %466 = vector.broadcast %cst_119 : f32 to vector<2x128xf32>
    %467 = arith.mulf %465, %466 : vector<2x128xf32>
    %cst_120 = arith.constant 5.000000e-01 : f32
    %468 = vector.broadcast %cst_120 : f32 to vector<2x128xf32>
    %469 = arith.addf %467, %468 : vector<2x128xf32>
    %470 = vector.extract_strided_slice %469 {offsets = [0, 0], sizes = [2, 32], strides = [1, 1]} : vector<2x128xf32> to vector<2x32xf32>
    %471 = vector.extract_strided_slice %469 {offsets = [0, 32], sizes = [2, 32], strides = [1, 1]} : vector<2x128xf32> to vector<2x32xf32>
    %472 = vector.extract_strided_slice %465 {offsets = [0, 64], sizes = [2, 32], strides = [1, 1]} : vector<2x128xf32> to vector<2x32xf32>
    %473 = vector.extract_strided_slice %469 {offsets = [0, 96], sizes = [2, 32], strides = [1, 1]} : vector<2x128xf32> to vector<2x32xf32>
    %474 = arith.mulf %471, %460 : vector<2x32xf32>
    %475 = arith.mulf %470, %472 : vector<2x32xf32>
    %476 = arith.addf %474, %475 : vector<2x32xf32>
    %477 = math.tanh %476 : vector<2x32xf32>
    %478 = arith.mulf %473, %477 : vector<2x32xf32>
    %cst_121 = arith.constant dense<0.000000e+00> : vector<2x128xf32>
    %479 = tpu.matmul %478, %336, %cst_121 {dimension_numbers = #tpu.dot_dimension_numbers<[1], [0], [0], [1], [0, 0, 1, 1], [], []>} : vector<2x32xf32>, vector<32x128xf32>, vector<2x128xf32> -> vector<2x128xf32>
    %480 = arith.addf %362, %479 : vector<2x128xf32>
    %481 = math.tanh %480 : vector<2x128xf32>
    %cst_122 = arith.constant 5.000000e-01 : f32
    %482 = vector.broadcast %cst_122 : f32 to vector<2x128xf32>
    %483 = arith.mulf %481, %482 : vector<2x128xf32>
    %cst_123 = arith.constant 5.000000e-01 : f32
    %484 = vector.broadcast %cst_123 : f32 to vector<2x128xf32>
    %485 = arith.addf %483, %484 : vector<2x128xf32>
    %486 = vector.extract_strided_slice %485 {offsets = [0, 0], sizes = [2, 32], strides = [1, 1]} : vector<2x128xf32> to vector<2x32xf32>
    %487 = vector.extract_strided_slice %485 {offsets = [0, 32], sizes = [2, 32], strides = [1, 1]} : vector<2x128xf32> to vector<2x32xf32>
    %488 = vector.extract_strided_slice %481 {offsets = [0, 64], sizes = [2, 32], strides = [1, 1]} : vector<2x128xf32> to vector<2x32xf32>
    %489 = vector.extract_strided_slice %485 {offsets = [0, 96], sizes = [2, 32], strides = [1, 1]} : vector<2x128xf32> to vector<2x32xf32>
    %490 = arith.mulf %487, %476 : vector<2x32xf32>
    %491 = arith.mulf %486, %488 : vector<2x32xf32>
    %492 = arith.addf %490, %491 : vector<2x32xf32>
    %493 = math.tanh %492 : vector<2x32xf32>
    %494 = arith.mulf %489, %493 : vector<2x32xf32>
    %c1_124 = arith.constant 1 : index
    %c0_125 = arith.constant 0 : index
    %c0_126 = arith.constant 0 : index
    %495 = vector.load %arg14[%c1_124, %c0_125, %c0_126] : memref<2x2x32xf32, #tpu.memory_space<vmem>>, vector<1x2x32xf32>
    %496 = vector.shape_cast %495 : vector<1x2x32xf32> to vector<2x32xf32>
    %497 = vector.shape_cast %494 : vector<2x32xf32> to vector<1x2x32xf32>
    tpu.vector_store %arg14[%c1_124, %c0_125, %c0_126], %497 {strides = array<i32>} : memref<2x2x32xf32, #tpu.memory_space<vmem>>, vector<1x2x32xf32>,
    %c1_127 = arith.constant 1 : index
    %c0_128 = arith.constant 0 : index
    %c0_129 = arith.constant 0 : index
    %498 = vector.load %arg15[%c1_127, %c0_128, %c0_129] : memref<2x2x32xf32, #tpu.memory_space<vmem>>, vector<1x2x32xf32>
    %499 = vector.shape_cast %498 : vector<1x2x32xf32> to vector<2x32xf32>
    %500 = vector.shape_cast %492 : vector<2x32xf32> to vector<1x2x32xf32>
    tpu.vector_store %arg15[%c1_127, %c0_128, %c0_129], %500 {strides = array<i32>} : memref<2x2x32xf32, #tpu.memory_space<vmem>>, vector<1x2x32xf32>,
    %c0_130 = arith.constant 0 : index
    %c0_131 = arith.constant 0 : index
    %501 = vector.load %arg9[%c0_130, %c0_131] : memref<32x4xf32, #tpu.memory_space<vmem>>, vector<32x4xf32>
    %cst_132 = arith.constant dense<0.000000e+00> : vector<2x4xf32>
    %502 = tpu.matmul %494, %501, %cst_132 {dimension_numbers = #tpu.dot_dimension_numbers<[1], [0], [0], [1], [0, 0, 1, 1], [], []>} : vector<2x32xf32>, vector<32x4xf32>, vector<2x4xf32> -> vector<2x4xf32>
    %c0_133 = arith.constant 0 : index
    %c0_134 = arith.constant 0 : index
    %503 = vector.load %arg10[%c0_133, %c0_134] : memref<1x4xf32, #tpu.memory_space<vmem>>, vector<1x4xf32>
    %504 = vector.broadcast %503 : vector<1x4xf32> to vector<2x4xf32>
    %505 = arith.addf %502, %504 : vector<2x4xf32>
    %cst_135 = arith.constant dense<0xFF800000> : vector<2xf32>
    %506 = vector.multi_reduction <maximumf>, %505, %cst_135 [1] : vector<2x4xf32> to vector<2xf32>
    %507 = vector.shape_cast %506 : vector<2xf32> to vector<2x1xf32>
    %508 = vector.broadcast %507 : vector<2x1xf32> to vector<2x4xf32>
    %509 = arith.subf %505, %508 : vector<2x4xf32>
    %510 = math.exp %509 : vector<2x4xf32>
    %cst_136 = arith.constant dense<0.000000e+00> : vector<2xf32>
    %511 = vector.multi_reduction <add>, %510, %cst_136 [1] : vector<2x4xf32> to vector<2xf32>
    %512 = vector.shape_cast %511 : vector<2xf32> to vector<2x1xf32>
    %513 = math.log %512 : vector<2x1xf32>
    %514 = vector.broadcast %513 : vector<2x1xf32> to vector<2x4xf32>
    %515 = arith.subf %509, %514 : vector<2x4xf32>
    %c0_137 = arith.constant 0 : index
    %c0_138 = arith.constant 0 : index
    %516 = vector.load %arg13[%c0_137, %c0_138] : memref<2x4xf32, #tpu.memory_space<vmem>>, vector<2x4xf32>
    tpu.vector_store %arg13[%c0_137, %c0_138], %515 {strides = array<i32>} : memref<2x4xf32, #tpu.memory_space<vmem>>, vector<2x4xf32>,
    return
  }
  func.func @transform_0(%arg0: i32, %arg1: memref<16xi32, #tpu.memory_space<smem>>) -> (i32, i32) {
    %c0_i32 = arith.constant 0 : i32
    %c0_i32_0 = arith.constant 0 : i32
    %c0_i32_1 = arith.constant 0 : i32
    return %c0_i32, %c0_i32_0 : i32, i32
  }
  func.func @transform_1(%arg0: i32, %arg1: memref<16xi32, #tpu.memory_space<smem>>) -> (i32, i32) {
    %c0_i32 = arith.constant 0 : i32
    %c0_i32_0 = arith.constant 0 : i32
    %c0_i32_1 = arith.constant 0 : i32
    return %c0_i32, %c0_i32_0 : i32, i32
  }
  func.func @transform_2(%arg0: i32, %arg1: memref<16xi32, #tpu.memory_space<smem>>) -> (i32, i32) {
    %c0_i32 = arith.constant 0 : i32
    %c0_i32_0 = arith.constant 0 : i32
    %c0_i32_1 = arith.constant 0 : i32
    return %c0_i32, %c0_i32_0 : i32, i32
  }
  func.func @transform_3(%arg0: i32, %arg1: memref<16xi32, #tpu.memory_space<smem>>) -> (i32, i32) {
    %c0_i32 = arith.constant 0 : i32
    %c0_i32_0 = arith.constant 0 : i32
    %c0_i32_1 = arith.constant 0 : i32
    return %c0_i32, %c0_i32_0 : i32, i32
  }
  func.func @transform_4(%arg0: i32, %arg1: memref<16xi32, #tpu.memory_space<smem>>) -> (i32, i32) {
    %c0_i32 = arith.constant 0 : i32
    %c0_i32_0 = arith.constant 0 : i32
    %c0_i32_1 = arith.constant 0 : i32
    return %c0_i32, %c0_i32_0 : i32, i32
  }
  func.func @transform_5(%arg0: i32, %arg1: memref<16xi32, #tpu.memory_space<smem>>) -> (i32, i32) {
    %c0_i32 = arith.constant 0 : i32
    %c0_i32_0 = arith.constant 0 : i32
    %c0_i32_1 = arith.constant 0 : i32
    return %c0_i32, %c0_i32_0 : i32, i32
  }
  func.func @transform_6(%arg0: i32, %arg1: memref<16xi32, #tpu.memory_space<smem>>) -> (i32, i32) {
    %c0_i32 = arith.constant 0 : i32
    %c0_i32_0 = arith.constant 0 : i32
    %c0_i32_1 = arith.constant 0 : i32
    return %c0_i32, %c0_i32_0 : i32, i32
  }
  func.func @transform_7(%arg0: i32, %arg1: memref<16xi32, #tpu.memory_space<smem>>) -> (i32, i32) {
    %c0_i32 = arith.constant 0 : i32
    %c0_i32_0 = arith.constant 0 : i32
    %c0_i32_1 = arith.constant 0 : i32
    return %c0_i32, %c0_i32_0 : i32, i32
  }
  func.func @transform_8(%arg0: i32, %arg1: memref<16xi32, #tpu.memory_space<smem>>) -> (i32, i32) {
    %c0_i32 = arith.constant 0 : i32
    %c0_i32_0 = arith.constant 0 : i32
    %c0_i32_1 = arith.constant 0 : i32
    return %c0_i32, %c0_i32_0 : i32, i32
  }
  func.func @transform_9(%arg0: i32, %arg1: memref<16xi32, #tpu.memory_space<smem>>) -> (i32, i32, i32) {
    %c0_i32 = arith.constant 0 : i32
    %c0_i32_0 = arith.constant 0 : i32
    %c0_i32_1 = arith.constant 0 : i32
    %c0_i32_2 = arith.constant 0 : i32
    return %c0_i32, %c0_i32_0, %c0_i32_1 : i32, i32, i32
  }
  func.func @transform_10(%arg0: i32, %arg1: memref<16xi32, #tpu.memory_space<smem>>) -> (i32, i32, i32) {
    %c0_i32 = arith.constant 0 : i32
    %c0_i32_0 = arith.constant 0 : i32
    %c0_i32_1 = arith.constant 0 : i32
    %c0_i32_2 = arith.constant 0 : i32
    return %c0_i32, %c0_i32_0, %c0_i32_1 : i32, i32, i32
  }
  func.func @transform_11(%arg0: i32, %arg1: memref<16xi32, #tpu.memory_space<smem>>) -> (i32, i32) {
    %c0_i32 = arith.constant 0 : i32
    %c0_i32_0 = arith.constant 0 : i32
    %c0_i32_1 = arith.constant 0 : i32
    return %c0_i32, %c0_i32_0 : i32, i32
  }
  func.func @transform_12(%arg0: i32, %arg1: memref<16xi32, #tpu.memory_space<smem>>) -> (i32, i32, i32) {
    %c0_i32 = arith.constant 0 : i32
    %c0_i32_0 = arith.constant 0 : i32
    %c0_i32_1 = arith.constant 0 : i32
    %c0_i32_2 = arith.constant 0 : i32
    return %c0_i32, %c0_i32_0, %c0_i32_1 : i32, i32, i32
  }
  func.func @transform_13(%arg0: i32, %arg1: memref<16xi32, #tpu.memory_space<smem>>) -> (i32, i32, i32) {
    %c0_i32 = arith.constant 0 : i32
    %c0_i32_0 = arith.constant 0 : i32
    %c0_i32_1 = arith.constant 0 : i32
    %c0_i32_2 = arith.constant 0 : i32
    return %c0_i32, %c0_i32_0, %c0_i32_1 : i32, i32, i32
  }
}

</mosaic_0001>

<llo_original>
// kernel: tpu_custom_call.1
$region0: #{tpu_custom_call.1}
  #allocation0 [shape = 'u32[]', space=smem, size = 0x4, offset = 0x4, fixed_abs, tag = 'smem constant byte address 0x4 - core index']
  #allocation1 [shape = 'u32[144,128]{1,0:T(1,128)}', space=vmem, size = 0x12000, scoped, tag = 'internal scratch']
  #allocation2 [shape = 's32[1]{0}', space=sflag, size = 0x4, scoped, tag = 'scoped memory for tpu_custom_call.1']
  #allocation3 [shape = 'u8[512]{0}', space=smem, size = 0x200, scoped, tag = 'prefetched SMEM operand 0']
  %s0 = inlined_call_operand.vmem [shape: s32[16], index: 0, kind: input, shape index: {}]
  %s1 = inlined_call_operand.vmem [shape: f32[32,16], index: 1, kind: input, shape index: {}]
  %s2 = inlined_call_operand.vmem [shape: f32[16,128], index: 2, kind: input, shape index: {}]
  %s3 = inlined_call_operand.vmem [shape: f32[32,128], index: 3, kind: input, shape index: {}]
  %s4 = inlined_call_operand.hbm [shape: f32[1,128], index: 4, kind: input, shape index: {}]
  %s5 = inlined_call_operand.vmem [shape: f32[32,128], index: 5, kind: input, shape index: {}]
  %s6 = inlined_call_operand.hbm [shape: f32[32,128], index: 6, kind: input, shape index: {}]
  %s7 = inlined_call_operand.vmem [shape: f32[1,128], index: 7, kind: input, shape index: {}]
  %s8 = inlined_call_operand.vmem [shape: f32[32,4], index: 8, kind: input, shape index: {}]
  %s9 = inlined_call_operand.vmem [shape: f32[1,4], index: 9, kind: input, shape index: {}]
  %s10 = inlined_call_operand.vmem [shape: f32[2,2,32], index: 10, kind: input, shape index: {}]
  %s11 = inlined_call_operand.vmem [shape: f32[2,2,32], index: 11, kind: input, shape index: {}]
  %s12 = inlined_call_operand.hbm [shape: f32[2,4], index: 12, kind: output, shape index: {0}]
  %s13 = inlined_call_operand.hbm [shape: f32[2,2,32], index: 13, kind: output, shape index: {1}]
  %s14 = inlined_call_operand.hbm [shape: f32[2,2,32], index: 14, kind: output, shape index: {2}]
  %15 = xla_tuple %s12, %s13, %s14
  %s16 = sld [smem:[#allocation0]]
  $region78: #{tpu_custom_call.1} parent=0
    _
  %s18 = ssub.s32 1, %s16
  %s19 = scalar_select 0, %s18, %s16
  %s20 = sshll.u32 %s0, 4
  %s21 = int_to_ptr.vmem [resolvable:$true] %s20
  %23 = dma.vmem_to_smem %s21, 16, [#allocation3], [#allocation2]
  %24 = dma.done [#allocation2], 16
  %25 = sfence
  $region1: #{tpu_custom_call.1} parent=0
    #allocation4 [shape = 'u8[512]{0}', space=vmem, size = 0x400, scoped, tag = 'input window, operand 4, single buffered']
    #allocation5 [shape = 's32[1]{0}', space=sflag, size = 0x4, scoped, tag = 'scoped memory for tpu_custom_call.1']
    #allocation6 [shape = 's32[1]{0}', space=sflag, size = 0x4, scoped, tag = 'scoped memory for tpu_custom_call.1']
    #allocation7 [shape = 'u8[16384]{0}', space=vmem, size = 0x4000, scoped, tag = 'input window, operand 6, single buffered']
    #allocation8 [shape = 's32[1]{0}', space=sflag, size = 0x4, scoped, tag = 'scoped memory for tpu_custom_call.1']
    #allocation9 [shape = 'u8[1024]{0}', space=vmem, size = 0x400, scoped, tag = 'output window, operand 0, single buffered']
    #allocation10 [shape = 'u8[2048]{0}', space=vmem, size = 0x800, scoped, tag = 'output window, operand 1, single buffered']
    #allocation11 [shape = 's32[1]{0}', space=sflag, size = 0x4, scoped, tag = 'scoped memory for tpu_custom_call.1']
    #allocation12 [shape = 'u8[2048]{0}', space=vmem, size = 0x800, scoped, tag = 'output window, operand 2, single buffered']
    %26 = vsyncpa [#allocation5], 0
    %27 = vsyncpa [#allocation8], 0
    %28 = vsyncpa [#allocation6], 0
    %29 = vsyncpa [#allocation11], 0
    // Predicated region
    $region2: #{tpu_custom_call.1} parent=1 // pred_check
      _
    $region3: #{tpu_custom_call.1} parent=1 // pred_check_branch
      %31 = sbr.rel (0) target = $region5
    $region4: #{tpu_custom_call.1} parent=1 // pred_region
      _
    $region5: #{tpu_custom_call.1} parent=1 // pred_fallthru
      _
    // Predicated region
    $region6: #{tpu_custom_call.1} parent=1 // pred_check
      _
    $region7: #{tpu_custom_call.1} parent=1 // pred_check_branch
      %33 = sbr.rel (0) target = $region9
    $region8: #{tpu_custom_call.1} parent=1 // pred_region
      _
    $region9: #{tpu_custom_call.1} parent=1 // pred_fallthru
      _
    // Predicated region
    $region10: #{tpu_custom_call.1} parent=1 // pred_check
      _
    $region11: #{tpu_custom_call.1} parent=1 // pred_check_branch
      %35 = sbr.rel (0) target = $region13
    $region12: #{tpu_custom_call.1} parent=1 // pred_region
      _
    $region13: #{tpu_custom_call.1} parent=1 // pred_fallthru
      _
    // Predicated region
    $region14: #{tpu_custom_call.1} parent=1 // pred_check
      _
    $region15: #{tpu_custom_call.1} parent=1 // pred_check_branch
      %37 = sbr.rel (0) target = $region17
    $region16: #{tpu_custom_call.1} parent=1 // pred_region
      %s39 = ssub.s32 16, 16
      %40 = vsyncadd [#allocation5], %s39
      %s42 = sshll.u32 [#allocation4], 4
      %s43 = int_to_ptr.vmem [resolvable:$true] %s42
      %45 = dma.hbm_to_vmem [thread:$0]  %s4, 16, %s43, [#allocation5]
    $region17: #{tpu_custom_call.1} parent=1 // pred_fallthru
      _
    // Predicated region
    $region18: #{tpu_custom_call.1} parent=1 // pred_check
      _
    $region19: #{tpu_custom_call.1} parent=1 // pred_check_branch
      %47 = sbr.rel (0) target = $region21
    $region20: #{tpu_custom_call.1} parent=1 // pred_region
      _
    $region21: #{tpu_custom_call.1} parent=1 // pred_fallthru
      _
    // Predicated region
    $region22: #{tpu_custom_call.1} parent=1 // pred_check
      _
    $region23: #{tpu_custom_call.1} parent=1 // pred_check_branch
      %49 = sbr.rel (0) target = $region25
    $region24: #{tpu_custom_call.1} parent=1 // pred_region
      %s51 = ssub.s32 512, 512
      %52 = vsyncadd [#allocation8], %s51
      %s53 = sshll.u32 [#allocation7], 4
      %s54 = int_to_ptr.vmem [resolvable:$true] %s53
      %59 = dma.hbm_to_vmem [thread:$0]  %s6, 512, %s54, [#allocation8], 128, 128, 8
    $region25: #{tpu_custom_call.1} parent=1 // pred_fallthru
      _
    // Predicated region
    $region26: #{tpu_custom_call.1} parent=1 // pred_check
      _
    $region27: #{tpu_custom_call.1} parent=1 // pred_check_branch
      %61 = sbr.rel (0) target = $region29
    $region28: #{tpu_custom_call.1} parent=1 // pred_region
      _
    $region29: #{tpu_custom_call.1} parent=1 // pred_fallthru
      _
    // Predicated region
    $region30: #{tpu_custom_call.1} parent=1 // pred_check
      _
    $region31: #{tpu_custom_call.1} parent=1 // pred_check_branch
      %63 = sbr.rel (0) target = $region33
    $region32: #{tpu_custom_call.1} parent=1 // pred_region
      _
    $region33: #{tpu_custom_call.1} parent=1 // pred_fallthru
      _
    // Predicated region
    $region34: #{tpu_custom_call.1} parent=1 // pred_check
      _
    $region35: #{tpu_custom_call.1} parent=1 // pred_check_branch
      %65 = sbr.rel (0) target = $region37
    $region36: #{tpu_custom_call.1} parent=1 // pred_region
      _
    $region37: #{tpu_custom_call.1} parent=1 // pred_fallthru
      _
    // Predicated region
    $region38: #{tpu_custom_call.1} parent=1 // pred_check
      _
    $region39: #{tpu_custom_call.1} parent=1 // pred_check_branch
      %67 = sbr.rel (0) target = $region41
    $region40: #{tpu_custom_call.1} parent=1 // pred_region
      _
    $region41: #{tpu_custom_call.1} parent=1 // pred_fallthru
      _
    // Predicated region
    $region42: #{tpu_custom_call.1} parent=1 // pred_check
      _
    $region43: #{tpu_custom_call.1} parent=1 // pred_check_branch
      %69 = sbr.rel (0) target = $region45
    $region44: #{tpu_custom_call.1} parent=1 // pred_region
      _
    $region45: #{tpu_custom_call.1} parent=1 // pred_fallthru
      _
    // Predicated region
    $region46: #{tpu_custom_call.1} parent=1 // pred_check
      _
    $region47: #{tpu_custom_call.1} parent=1 // pred_check_branch
      %71 = sbr.rel (0) target = $region49
    $region48: #{tpu_custom_call.1} parent=1 // pred_region
      %72 = dma.done [#allocation5], 16
    $region49: #{tpu_custom_call.1} parent=1 // pred_fallthru
      _
    // Predicated region
    $region50: #{tpu_custom_call.1} parent=1 // pred_check
      _
    $region51: #{tpu_custom_call.1} parent=1 // pred_check_branch
      %74 = sbr.rel (0) target = $region53
    $region52: #{tpu_custom_call.1} parent=1 // pred_region
      %75 = dma.done [#allocation8], 512
    $region53: #{tpu_custom_call.1} parent=1 // pred_fallthru
      _
    %v76 = vlaneseq
    %v77 = vand.u32 %v76, 127
    %vm78 = vcmp.ge.s32.totalorder %v77, 64
    %vm79 = vcmp.lt.s32.totalorder %v77, 96
    %vm80 = vmand %vm78, %vm79
    %v81 = vsel %vm80, 1.0, 0.5
    %v82 = vlaneseq
    %v83 = vshrl.u32 %v82, 7
    %v84 = vadd.s32 %v83, 8
    %s85 = sld [smem:[#allocation3]]
    %vm86 = vcmp.eq.s32.totalorder %v83, 0
    %vm87 = vcmp.eq.s32.totalorder %v84, 0
    %v88 = vstv %s85
    %vm89 = vcmp.eq.s32.totalorder %v77, %v88
    %vm90 = vmand %vm86, %vm89
    %vm91 = vmand %vm87, %vm89
    %v92 = vsel %vm90, 1.0, 0.0
    %v93 = vsel %vm91, 1.0, 0.0
    %v94 = vadd.f32 %v92, 0.0
    %v95 = vadd.f32 %v93, 0.0
    %s96 = sld [smem:[#allocation3 + $0x1]]
    %vm97 = vcmp.eq.s32.totalorder %v83, 1
    %vm98 = vcmp.eq.s32.totalorder %v84, 1
    %v99 = vstv %s96
    %vm100 = vcmp.eq.s32.totalorder %v77, %v99
    %vm101 = vmand %vm97, %vm100
    %vm102 = vmand %vm98, %vm100
    %v103 = vsel %vm101, 1.0, 0.0
    %v104 = vsel %vm102, 1.0, 0.0
    %v105 = vadd.f32 %v94, %v103
    %v106 = vadd.f32 %v95, %v104
    %s107 = sld [smem:[#allocation3 + $0x2]]
    %vm108 = vcmp.eq.s32.totalorder %v83, 2
    %vm109 = vcmp.eq.s32.totalorder %v84, 2
    %v110 = vstv %s107
    %vm111 = vcmp.eq.s32.totalorder %v77, %v110
    %vm112 = vmand %vm108, %vm111
    %vm113 = vmand %vm109, %vm111
    %v114 = vsel %vm112, 1.0, 0.0
    %v115 = vsel %vm113, 1.0, 0.0
    %v116 = vadd.f32 %v105, %v114
    %v117 = vadd.f32 %v106, %v115
    %s118 = sld [smem:[#allocation3 + $0x3]]
    %vm119 = vcmp.eq.s32.totalorder %v83, 3
    %vm120 = vcmp.eq.s32.totalorder %v84, 3
    %v121 = vstv %s118
    %vm122 = vcmp.eq.s32.totalorder %v77, %v121
    %vm123 = vmand %vm119, %vm122
    %vm124 = vmand %vm120, %vm122
    %v125 = vsel %vm123, 1.0, 0.0
    %v126 = vsel %vm124, 1.0, 0.0
    %v127 = vadd.f32 %v116, %v125
    %v128 = vadd.f32 %v117, %v126
    %s129 = sld [smem:[#allocation3 + $0x4]]
    %vm130 = vcmp.eq.s32.totalorder %v83, 4
    %vm131 = vcmp.eq.s32.totalorder %v84, 4
    %v132 = vstv %s129
    %vm133 = vcmp.eq.s32.totalorder %v77, %v132
    %vm134 = vmand %vm130, %vm133
    %vm135 = vmand %vm131, %vm133
    %v136 = vsel %vm134, 1.0, 0.0
    %v137 = vsel %vm135, 1.0, 0.0
    %v138 = vadd.f32 %v127, %v136
    %v139 = vadd.f32 %v128, %v137
    %s140 = sld [smem:[#allocation3 + $0x5]]
    %vm141 = vcmp.eq.s32.totalorder %v83, 5
    %vm142 = vcmp.eq.s32.totalorder %v84, 5
    %v143 = vstv %s140
    %vm144 = vcmp.eq.s32.totalorder %v77, %v143
    %vm145 = vmand %vm141, %vm144
    %vm146 = vmand %vm142, %vm144
    %v147 = vsel %vm145, 1.0, 0.0
    %v148 = vsel %vm146, 1.0, 0.0
    %v149 = vadd.f32 %v138, %v147
    %v150 = vadd.f32 %v139, %v148
    %s151 = sld [smem:[#allocation3 + $0x6]]
    %vm152 = vcmp.eq.s32.totalorder %v83, 6
    %vm153 = vcmp.eq.s32.totalorder %v84, 6
    %v154 = vstv %s151
    %vm155 = vcmp.eq.s32.totalorder %v77, %v154
    %vm156 = vmand %vm152, %vm155
    %vm157 = vmand %vm153, %vm155
    %v158 = vsel %vm156, 1.0, 0.0
    %v159 = vsel %vm157, 1.0, 0.0
    %v160 = vadd.f32 %v149, %v158
    %v161 = vadd.f32 %v150, %v159
    %s162 = sld [smem:[#allocation3 + $0x7]]
    %vm163 = vcmp.eq.s32.totalorder %v83, 7
    %vm164 = vcmp.eq.s32.totalorder %v84, 7
    %v165 = vstv %s162
    %vm166 = vcmp.eq.s32.totalorder %v77, %v165
    %vm167 = vmand %vm163, %vm166
    %vm168 = vmand %vm164, %vm166
    %v169 = vsel %vm167, 1.0, 0.0
    %v170 = vsel %vm168, 1.0, 0.0
    %v171 = vadd.f32 %v160, %v169
    %v172 = vadd.f32 %v161, %v170
    %s173 = sld [smem:[#allocation3 + $0x8]]
    %vm174 = vcmp.eq.s32.totalorder %v83, 8
    %vm175 = vcmp.eq.s32.totalorder %v84, 8
    %v176 = vstv %s173
    %vm177 = vcmp.eq.s32.totalorder %v77, %v176
    %vm178 = vmand %vm174, %vm177
    %vm179 = vmand %vm175, %vm177
    %v180 = vsel %vm178, 1.0, 0.0
    %v181 = vsel %vm179, 1.0, 0.0
    %v182 = vadd.f32 %v171, %v180
    %v183 = vadd.f32 %v172, %v181
    %s184 = sld [smem:[#allocation3 + $0x9]]
    %vm185 = vcmp.eq.s32.totalorder %v83, 9
    %vm186 = vcmp.eq.s32.totalorder %v84, 9
    %v187 = vstv %s184
    %vm188 = vcmp.eq.s32.totalorder %v77, %v187
    %vm189 = vmand %vm185, %vm188
    %vm190 = vmand %vm186, %vm188
    %v191 = vsel %vm189, 1.0, 0.0
    %v192 = vsel %vm190, 1.0, 0.0
    %v193 = vadd.f32 %v182, %v191
    %v194 = vadd.f32 %v183, %v192
    %s195 = sld [smem:[#allocation3 + $0xa]]
    %vm196 = vcmp.eq.s32.totalorder %v83, 10
    %vm197 = vcmp.eq.s32.totalorder %v84, 10
    %v198 = vstv %s195
    %vm199 = vcmp.eq.s32.totalorder %v77, %v198
    %vm200 = vmand %vm196, %vm199
    %vm201 = vmand %vm197, %vm199
    %v202 = vsel %vm200, 1.0, 0.0
    %v203 = vsel %vm201, 1.0, 0.0
    %v204 = vadd.f32 %v193, %v202
    %v205 = vadd.f32 %v194, %v203
    %s206 = sld [smem:[#allocation3 + $0xb]]
    %vm207 = vcmp.eq.s32.totalorder %v83, 11
    %vm208 = vcmp.eq.s32.totalorder %v84, 11
    %v209 = vstv %s206
    %vm210 = vcmp.eq.s32.totalorder %v77, %v209
    %vm211 = vmand %vm207, %vm210
    %vm212 = vmand %vm208, %vm210
    %v213 = vsel %vm211, 1.0, 0.0
    %v214 = vsel %vm212, 1.0, 0.0
    %v215 = vadd.f32 %v204, %v213
    %v216 = vadd.f32 %v205, %v214
    %s217 = sld [smem:[#allocation3 + $0xc]]
    %vm218 = vcmp.eq.s32.totalorder %v83, 12
    %vm219 = vcmp.eq.s32.totalorder %v84, 12
    %v220 = vstv %s217
    %vm221 = vcmp.eq.s32.totalorder %v77, %v220
    %vm222 = vmand %vm218, %vm221
    %vm223 = vmand %vm219, %vm221
    %v224 = vsel %vm222, 1.0, 0.0
    %v225 = vsel %vm223, 1.0, 0.0
    %v226 = vadd.f32 %v215, %v224
    %v227 = vadd.f32 %v216, %v225
    %s228 = sld [smem:[#allocation3 + $0xd]]
    %vm229 = vcmp.eq.s32.totalorder %v83, 13
    %vm230 = vcmp.eq.s32.totalorder %v84, 13
    %v231 = vstv %s228
    %vm232 = vcmp.eq.s32.totalorder %v77, %v231
    %vm233 = vmand %vm229, %vm232
    %vm234 = vmand %vm230, %vm232
    %v235 = vsel %vm233, 1.0, 0.0
    %v236 = vsel %vm234, 1.0, 0.0
    %v237 = vadd.f32 %v226, %v235
    %v238 = vadd.f32 %v227, %v236
    %s239 = sld [smem:[#allocation3 + $0xe]]
    %vm240 = vcmp.eq.s32.totalorder %v83, 14
    %vm241 = vcmp.eq.s32.totalorder %v84, 14
    %v242 = vstv %s239
    %vm243 = vcmp.eq.s32.totalorder %v77, %v242
    %vm244 = vmand %vm240, %vm243
    %vm245 = vmand %vm241, %vm243
    %v246 = vsel %vm244, 1.0, 0.0
    %v247 = vsel %vm245, 1.0, 0.0
    %v248 = vadd.f32 %v237, %v246
    %v249 = vadd.f32 %v238, %v247
    %s250 = sld [smem:[#allocation3 + $0xf]]
    %vm251 = vcmp.eq.s32.totalorder %v83, 15
    %vm252 = vcmp.eq.s32.totalorder %v84, 15
    %v253 = vstv %s250
    %vm254 = vcmp.eq.s32.totalorder %v77, %v253
    %vm255 = vmand %vm251, %vm254
    %vm256 = vmand %vm252, %vm254
    %v257 = vsel %vm255, 1.0, 0.0
    %v258 = vsel %vm256, 1.0, 0.0
    %v259 = vadd.f32 %v248, %v257
    %v260 = vadd.f32 %v249, %v258
    %v261 = vld [vmem:[%s2] sm:$0xff]
    %v262 = vld [vmem:[%s2 + $0x8] sm:$0xff]
    %v263 = vmul.f32 %v261, %v81
    %v264 = vmul.f32 %v262, %v81
    %v265 = vld [vmem:[%s3] sm:$0xff]
    %v266 = vld [vmem:[%s3 + $0x8] sm:$0xff]
    %v267 = vld [vmem:[%s3 + $0x10] sm:$0xff]
    %v268 = vld [vmem:[%s3 + $0x18] sm:$0xff]
    %v269 = vmul.f32 %v265, %v81
    %v270 = vmul.f32 %v266, %v81
    %v271 = vmul.f32 %v267, %v81
    %v272 = vmul.f32 %v268, %v81
    %v273 = vld [vmem:[#allocation4] sm:$0x1]
    %v274 = vmul.f32 %v273, %v81
    %v275 = vld [vmem:[%s1] sm:$0xff]
    %v276 = vld [vmem:[%s1 + $0x8] sm:$0xff]
    %v277 = vld [vmem:[%s1 + $0x10] sm:$0xff]
    %v278 = vld [vmem:[%s1 + $0x18] sm:$0xff]
    %vm279 = vcmask 130048
    %v281 = vsel %vm279, %v275, 0
    %v284 = vsel %vm279, %v276, 0
    %v287 = vsel %vm279, %v277, 0
    %v290 = vsel %vm279, %v278, 0
    %292 = vmatprep.subr.mxu0 0.0
    %293 = vmatpush1.msra.mxu0 0.0
    %294 = vmatprep.subr.mxu0 0.0
    %295 = vmatpush1.msra.mxu0 0.0
    %296 = vmatprep.subr.mxu0 0.0
    %297 = vmatpush1.msra.mxu0 0.0
    %298 = vmatprep.subr.mxu0 0.0
    %299 = vmatpush1.msra.mxu0 0.0
    %300 = vmatprep.subr.mxu0 0.0
    %301 = vmatpush1.msra.mxu0 0.0
    %302 = vmatprep.subr.mxu0 0.0
    %303 = vmatpush1.msra.mxu0 0.0
    %304 = vmatprep.subr.mxu0 0.0
    %305 = vmatpush1.msra.mxu0 0.0
    %306 = vmatprep.subr.mxu0 0.0
    %307 = vmatpush1.msra.mxu0 0.0
    %308 = vmatprep.subr.mxu0 0.0
    %309 = vmatpush1.msra.mxu0 0.0
    %310 = vmatprep.subr.mxu0 0.0
    %311 = vmatpush1.msra.mxu0 0.0
    %312 = vmatprep.subr.mxu0 0.0
    %313 = vmatpush1.msra.mxu0 0.0
    %314 = vmatprep.subr.mxu0 0.0
    %315 = vmatpush1.msra.mxu0 0.0
    %316 = vmatprep.subr.mxu0 0.0
    %317 = vmatpush1.msra.mxu0 0.0
    %318 = vmatprep.subr.mxu0 0.0
    %319 = vmatpush1.msra.mxu0 0.0
    %320 = vmatprep.subr.mxu0 0.0
    %321 = vmatpush1.msra.mxu0 %v264
    %322 = vmatprep.subr.mxu0 0.0
    %323 = vmatpush1.msra.mxu0 %v263
    %324 = vmatprep.subr.mxu0 0.0
    %325 = vmatpush2.msra.mxu0 0.0
    %326 = vmatprep.subr.mxu0 0.0
    %327 = vmatpush2.msra.mxu0 0.0
    %328 = vmatprep.subr.mxu0 0.0
    %329 = vmatpush2.msra.mxu0 0.0
    %330 = vmatprep.subr.mxu0 0.0
    %331 = vmatpush2.msra.mxu0 0.0
    %332 = vmatprep.subr.mxu0 0.0
    %333 = vmatpush2.msra.mxu0 0.0
    %334 = vmatprep.subr.mxu0 0.0
    %335 = vmatpush2.msra.mxu0 0.0
    %336 = vmatprep.subr.mxu0 0.0
    %337 = vmatpush2.msra.mxu0 0.0
    %338 = vmatprep.subr.mxu0 0.0
    %339 = vmatpush2.msra.mxu0 0.0
    %340 = vmatprep.subr.mxu0 0.0
    %341 = vmatpush2.msra.mxu0 0.0
    %342 = vmatprep.subr.mxu0 0.0
    %343 = vmatpush2.msra.mxu0 0.0
    %344 = vmatprep.subr.mxu0 0.0
    %345 = vmatpush2.msra.mxu0 0.0
    %346 = vmatprep.subr.mxu0 0.0
    %347 = vmatpush2.msra.mxu0 0.0
    %348 = vmatprep.subr.mxu0 0.0
    %349 = vmatpush2.msra.mxu0 0.0
    %350 = vmatprep.subr.mxu0 0.0
    %351 = vmatpush2.msra.mxu0 0.0
    %352 = vmatprep.subr.mxu0 0.0
    %353 = vmatpush2.msra.mxu0 0.0
    %354 = vmatprep.subr.mxu0 0.0
    %355 = vmatpush2.msra.mxu0 0.0
    %356 = vmatprep.mubr.f32.mxu0 0.0
    %357 = vmatmul.mubr.f32.gmra.mxu0 %v281
    %v358 = vpop.f32.mrf.mxu0
    %v359 = vadd.f32 0.0, %v358
    %v360 = vpop.f32.mrf.mxu0
    %361 = vmatprep.mubr.f32.mxu0 0.0
    %362 = vmatmul.mubr.f32.gmra.mxu0 %v284
    %v363 = vpop.f32.mrf.mxu0
    %v364 = vadd.f32 0.0, %v363
    %v365 = vpop.f32.mrf.mxu0
    %366 = vmatprep.mubr.f32.mxu0 0.0
    %367 = vmatmul.mubr.f32.gmra.mxu0 %v287
    %v368 = vpop.f32.mrf.mxu0
    %v369 = vadd.f32 0.0, %v368
    %v370 = vpop.f32.mrf.mxu0
    %371 = vmatprep.mubr.f32.mxu0 0.0
    %372 = vmatmul.mubr.f32.gmra.mxu0 %v290
    %v373 = vpop.f32.mrf.mxu0
    %v374 = vadd.f32 0.0, %v373
    %v375 = vpop.f32.mrf.mxu0
    %376 = vdwg.mxu0
    %v378 = vlaneseq
    %v379 = vshrl.u32 %v378, 7
    %v380 = vsub.s32 0, %v379
    %v381 = vrot.slane %v274, %v380
    %vm383 = vcmask 261120
    %v385 = vsel %vm383, %v259, 0
    %v388 = vsel %vm383, %v260, 0
    %390 = vmatprep.subr.mxu0 0.0
    %391 = vmatpush1.msra.mxu0 0.0
    %392 = vmatprep.subr.mxu0 0.0
    %393 = vmatpush1.msra.mxu0 0.0
    %394 = vmatprep.subr.mxu0 0.0
    %395 = vmatpush1.msra.mxu0 0.0
    %396 = vmatprep.subr.mxu0 0.0
    %397 = vmatpush1.msra.mxu0 0.0
    %398 = vmatprep.subr.mxu0 0.0
    %399 = vmatpush1.msra.mxu0 0.0
    %400 = vmatprep.subr.mxu0 0.0
    %401 = vmatpush1.msra.mxu0 0.0
    %402 = vmatprep.subr.mxu0 0.0
    %403 = vmatpush1.msra.mxu0 0.0
    %404 = vmatprep.subr.mxu0 0.0
    %405 = vmatpush1.msra.mxu0 0.0
    %406 = vmatprep.subr.mxu0 0.0
    %407 = vmatpush1.msra.mxu0 0.0
    %408 = vmatprep.subr.mxu0 0.0
    %409 = vmatpush1.msra.mxu0 0.0
    %410 = vmatprep.subr.mxu0 0.0
    %411 = vmatpush1.msra.mxu0 0.0
    %412 = vmatprep.subr.mxu0 0.0
    %413 = vmatpush1.msra.mxu0 0.0
    %414 = vmatprep.subr.mxu0 0.0
    %415 = vmatpush1.msra.mxu0 %v374
    %416 = vmatprep.subr.mxu0 0.0
    %417 = vmatpush1.msra.mxu0 %v369
    %418 = vmatprep.subr.mxu0 0.0
    %419 = vmatpush1.msra.mxu0 %v364
    %420 = vmatprep.subr.mxu0 0.0
    %421 = vmatpush1.msra.mxu0 %v359
    %422 = vmatprep.subr.mxu0 0.0
    %423 = vmatpush2.msra.mxu0 0.0
    %424 = vmatprep.subr.mxu0 0.0
    %425 = vmatpush2.msra.mxu0 0.0
    %426 = vmatprep.subr.mxu0 0.0
    %427 = vmatpush2.msra.mxu0 0.0
    %428 = vmatprep.subr.mxu0 0.0
    %429 = vmatpush2.msra.mxu0 0.0
    %430 = vmatprep.subr.mxu0 0.0
    %431 = vmatpush2.msra.mxu0 0.0
    %432 = vmatprep.subr.mxu0 0.0
    %433 = vmatpush2.msra.mxu0 0.0
    %434 = vmatprep.subr.mxu0 0.0
    %435 = vmatpush2.msra.mxu0 0.0
    %436 = vmatprep.subr.mxu0 0.0
    %437 = vmatpush2.msra.mxu0 0.0
    %438 = vmatprep.subr.mxu0 0.0
    %439 = vmatpush2.msra.mxu0 0.0
    %440 = vmatprep.subr.mxu0 0.0
    %441 = vmatpush2.msra.mxu0 0.0
    %442 = vmatprep.subr.mxu0 0.0
    %443 = vmatpush2.msra.mxu0 0.0
    %444 = vmatprep.subr.mxu0 0.0
    %445 = vmatpush2.msra.mxu0 0.0
    %446 = vmatprep.subr.mxu0 0.0
    %447 = vmatpush2.msra.mxu0 0.0
    %448 = vmatprep.subr.mxu0 0.0
    %449 = vmatpush2.msra.mxu0 0.0
    %450 = vmatprep.subr.mxu0 0.0
    %451 = vmatpush2.msra.mxu0 0.0
    %452 = vmatprep.subr.mxu0 0.0
    %453 = vmatpush2.msra.mxu0 0.0
    %454 = vmatprep.mubr.f32.mxu0 0.0
    %455 = vmatmul.mubr.f32.gmra.mxu0 %v385
    %v456 = vpop.f32.mrf.mxu0
    %v457 = vadd.f32 %v381, %v456
    %v458 = vpop.f32.mrf.mxu0
    %459 = vmatprep.mubr.f32.mxu0 0.0
    %460 = vmatmul.mubr.f32.gmra.mxu0 %v388
    %v461 = vpop.f32.mrf.mxu0
    %v462 = vadd.f32 %v381, %v461
    %v463 = vpop.f32.mrf.mxu0
    %464 = vdwg.mxu0
    %v465 = vld [vmem:[%s10] sm:$0x3]
    %v466 = vld [vmem:[%s11] sm:$0x3]
    %v468 = vsel %vm383, %v465, 0
    %470 = vmatprep.subr.mxu0 0.0
    %471 = vmatpush1.msra.mxu0 0.0
    %472 = vmatprep.subr.mxu0 0.0
    %473 = vmatpush1.msra.mxu0 0.0
    %474 = vmatprep.subr.mxu0 0.0
    %475 = vmatpush1.msra.mxu0 0.0
    %476 = vmatprep.subr.mxu0 0.0
    %477 = vmatpush1.msra.mxu0 0.0
    %478 = vmatprep.subr.mxu0 0.0
    %479 = vmatpush1.msra.mxu0 0.0
    %480 = vmatprep.subr.mxu0 0.0
    %481 = vmatpush1.msra.mxu0 0.0
    %482 = vmatprep.subr.mxu0 0.0
    %483 = vmatpush1.msra.mxu0 0.0
    %484 = vmatprep.subr.mxu0 0.0
    %485 = vmatpush1.msra.mxu0 0.0
    %486 = vmatprep.subr.mxu0 0.0
    %487 = vmatpush1.msra.mxu0 0.0
    %488 = vmatprep.subr.mxu0 0.0
    %489 = vmatpush1.msra.mxu0 0.0
    %490 = vmatprep.subr.mxu0 0.0
    %491 = vmatpush1.msra.mxu0 0.0
    %492 = vmatprep.subr.mxu0 0.0
    %493 = vmatpush1.msra.mxu0 0.0
    %494 = vmatprep.subr.mxu0 0.0
    %495 = vmatpush1.msra.mxu0 %v272
    %496 = vmatprep.subr.mxu0 0.0
    %497 = vmatpush1.msra.mxu0 %v271
    %498 = vmatprep.subr.mxu0 0.0
    %499 = vmatpush1.msra.mxu0 %v270
    %500 = vmatprep.subr.mxu0 0.0
    %501 = vmatpush1.msra.mxu0 %v269
    %502 = vmatprep.subr.mxu0 0.0
    %503 = vmatpush2.msra.mxu0 0.0
    %504 = vmatprep.subr.mxu0 0.0
    %505 = vmatpush2.msra.mxu0 0.0
    %506 = vmatprep.subr.mxu0 0.0
    %507 = vmatpush2.msra.mxu0 0.0
    %508 = vmatprep.subr.mxu0 0.0
    %509 = vmatpush2.msra.mxu0 0.0
    %510 = vmatprep.subr.mxu0 0.0
    %511 = vmatpush2.msra.mxu0 0.0
    %512 = vmatprep.subr.mxu0 0.0
    %513 = vmatpush2.msra.mxu0 0.0
    %514 = vmatprep.subr.mxu0 0.0
    %515 = vmatpush2.msra.mxu0 0.0
    %516 = vmatprep.subr.mxu0 0.0
    %517 = vmatpush2.msra.mxu0 0.0
    %518 = vmatprep.subr.mxu0 0.0
    %519 = vmatpush2.msra.mxu0 0.0
    %520 = vmatprep.subr.mxu0 0.0
    %521 = vmatpush2.msra.mxu0 0.0
    %522 = vmatprep.subr.mxu0 0.0
    %523 = vmatpush2.msra.mxu0 0.0
    %524 = vmatprep.subr.mxu0 0.0
    %525 = vmatpush2.msra.mxu0 0.0
    %526 = vmatprep.subr.mxu0 0.0
    %527 = vmatpush2.msra.mxu0 0.0
    %528 = vmatprep.subr.mxu0 0.0
    %529 = vmatpush2.msra.mxu0 0.0
    %530 = vmatprep.subr.mxu0 0.0
    %531 = vmatpush2.msra.mxu0 0.0
    %532 = vmatprep.subr.mxu0 0.0
    %533 = vmatpush2.msra.mxu0 0.0
    %534 = vmatprep.mubr.f32.mxu0 0.0
    %535 = vmatmul.mubr.f32.gmra.mxu0 %v468
    %v536 = vpop.f32.mrf.mxu0
    %v537 = vadd.f32 0.0, %v536
    %v538 = vpop.f32.mrf.mxu0
    %539 = vdwg.mxu0
    %v540 = vadd.f32 %v457, %v537
    %v541 = vtanh.pop %v540
    %v542 = vmul.f32 %v541, 0.5
    %v543 = vadd.f32 %v542, 0.5
    %545 = vrot.lane.b32.xlu0 %v466, 32
    %v546 = vpop.permute.xlu0 %545
    %v548 = vmul.f32 %v543, %v546
    %550 = vrot.lane.b32.xlu0 %v541, 64
    %v551 = vpop.permute.xlu0 %550
    %v553 = vmul.f32 %v543, %v551
    %555 = vrot.lane.b32.xlu0 %v553, 32
    %v556 = vpop.permute.xlu0 %555
    %v558 = vadd.f32 %v548, %v556
    %v559 = vtanh.pop %v558
    %561 = vrot.lane.b32.xlu0 %v559, 64
    %v562 = vpop.permute.xlu0 %561
    %v564 = vmul.f32 %v543, %v562
    %566 = vrot.lane.b32.xlu0 %v564, 32
    %v567 = vpop.permute.xlu0 %566
    %v568 = vsel %vm383, %v567, 0
    %570 = vmatprep.subr.mxu0 0.0
    %571 = vmatpush1.msra.mxu0 0.0
    %572 = vmatprep.subr.mxu0 0.0
    %573 = vmatpush1.msra.mxu0 0.0
    %574 = vmatprep.subr.mxu0 0.0
    %575 = vmatpush1.msra.mxu0 0.0
    %576 = vmatprep.subr.mxu0 0.0
    %577 = vmatpush1.msra.mxu0 0.0
    %578 = vmatprep.subr.mxu0 0.0
    %579 = vmatpush1.msra.mxu0 0.0
    %580 = vmatprep.subr.mxu0 0.0
    %581 = vmatpush1.msra.mxu0 0.0
    %582 = vmatprep.subr.mxu0 0.0
    %583 = vmatpush1.msra.mxu0 0.0
    %584 = vmatprep.subr.mxu0 0.0
    %585 = vmatpush1.msra.mxu0 0.0
    %586 = vmatprep.subr.mxu0 0.0
    %587 = vmatpush1.msra.mxu0 0.0
    %588 = vmatprep.subr.mxu0 0.0
    %589 = vmatpush1.msra.mxu0 0.0
    %590 = vmatprep.subr.mxu0 0.0
    %591 = vmatpush1.msra.mxu0 0.0
    %592 = vmatprep.subr.mxu0 0.0
    %593 = vmatpush1.msra.mxu0 0.0
    %594 = vmatprep.subr.mxu0 0.0
    %595 = vmatpush1.msra.mxu0 %v272
    %596 = vmatprep.subr.mxu0 0.0
    %597 = vmatpush1.msra.mxu0 %v271
    %598 = vmatprep.subr.mxu0 0.0
    %599 = vmatpush1.msra.mxu0 %v270
    %600 = vmatprep.subr.mxu0 0.0
    %601 = vmatpush1.msra.mxu0 %v269
    %602 = vmatprep.subr.mxu0 0.0
    %603 = vmatpush2.msra.mxu0 0.0
    %604 = vmatprep.subr.mxu0 0.0
    %605 = vmatpush2.msra.mxu0 0.0
    %606 = vmatprep.subr.mxu0 0.0
    %607 = vmatpush2.msra.mxu0 0.0
    %608 = vmatprep.subr.mxu0 0.0
    %609 = vmatpush2.msra.mxu0 0.0
    %610 = vmatprep.subr.mxu0 0.0
    %611 = vmatpush2.msra.mxu0 0.0
    %612 = vmatprep.subr.mxu0 0.0
    %613 = vmatpush2.msra.mxu0 0.0
    %614 = vmatprep.subr.mxu0 0.0
    %615 = vmatpush2.msra.mxu0 0.0
    %616 = vmatprep.subr.mxu0 0.0
    %617 = vmatpush2.msra.mxu0 0.0
    %618 = vmatprep.subr.mxu0 0.0
    %619 = vmatpush2.msra.mxu0 0.0
    %620 = vmatprep.subr.mxu0 0.0
    %621 = vmatpush2.msra.mxu0 0.0
    %622 = vmatprep.subr.mxu0 0.0
    %623 = vmatpush2.msra.mxu0 0.0
    %624 = vmatprep.subr.mxu0 0.0
    %625 = vmatpush2.msra.mxu0 0.0
    %626 = vmatprep.subr.mxu0 0.0
    %627 = vmatpush2.msra.mxu0 0.0
    %628 = vmatprep.subr.mxu0 0.0
    %629 = vmatpush2.msra.mxu0 0.0
    %630 = vmatprep.subr.mxu0 0.0
    %631 = vmatpush2.msra.mxu0 0.0
    %632 = vmatprep.subr.mxu0 0.0
    %633 = vmatpush2.msra.mxu0 0.0
    %634 = vmatprep.mubr.f32.mxu0 0.0
    %635 = vmatmul.mubr.f32.gmra.mxu0 %v568
    %v636 = vpop.f32.mrf.mxu0
    %v637 = vadd.f32 0.0, %v636
    %v638 = vpop.f32.mrf.mxu0
    %639 = vdwg.mxu0
    %v641 = vrot.slane %v637, 6
    %v643 = vadd.f32 %v457, %v641
    %v644 = vtanh.pop %v643
    %v645 = vmul.f32 %v644, 0.5
    %v646 = vadd.f32 %v645, 0.5
    %v648 = vrot.slane %v558, 6
    %v650 = vmul.f32 %v646, %v648
    %652 = vrot.lane.b32.xlu0 %v644, 64
    %v653 = vpop.permute.xlu0 %652
    %v655 = vmul.f32 %v646, %v653
    %657 = vrot.lane.b32.xlu0 %v655, 32
    %v658 = vpop.permute.xlu0 %657
    %v660 = vadd.f32 %v650, %v658
    %v661 = vtanh.pop %v660
    %663 = vrot.lane.b32.xlu0 %v661, 64
    %v664 = vpop.permute.xlu0 %663
    %v666 = vmul.f32 %v646, %v664
    %v668 = vrot.slane %v666, 2
    %669 = vrot.lane.b32.xlu0 %v668, 32
    %v670 = vpop.permute.xlu0 %669
    %v671 = vsel %vm383, %v670, 0
    %673 = vmatprep.subr.mxu0 0.0
    %674 = vmatpush1.msra.mxu0 0.0
    %675 = vmatprep.subr.mxu0 0.0
    %676 = vmatpush1.msra.mxu0 0.0
    %677 = vmatprep.subr.mxu0 0.0
    %678 = vmatpush1.msra.mxu0 0.0
    %679 = vmatprep.subr.mxu0 0.0
    %680 = vmatpush1.msra.mxu0 0.0
    %681 = vmatprep.subr.mxu0 0.0
    %682 = vmatpush1.msra.mxu0 0.0
    %683 = vmatprep.subr.mxu0 0.0
    %684 = vmatpush1.msra.mxu0 0.0
    %685 = vmatprep.subr.mxu0 0.0
    %686 = vmatpush1.msra.mxu0 0.0
    %687 = vmatprep.subr.mxu0 0.0
    %688 = vmatpush1.msra.mxu0 0.0
    %689 = vmatprep.subr.mxu0 0.0
    %690 = vmatpush1.msra.mxu0 0.0
    %691 = vmatprep.subr.mxu0 0.0
    %692 = vmatpush1.msra.mxu0 0.0
    %693 = vmatprep.subr.mxu0 0.0
    %694 = vmatpush1.msra.mxu0 0.0
    %695 = vmatprep.subr.mxu0 0.0
    %696 = vmatpush1.msra.mxu0 0.0
    %697 = vmatprep.subr.mxu0 0.0
    %698 = vmatpush1.msra.mxu0 %v272
    %699 = vmatprep.subr.mxu0 0.0
    %700 = vmatpush1.msra.mxu0 %v271
    %701 = vmatprep.subr.mxu0 0.0
    %702 = vmatpush1.msra.mxu0 %v270
    %703 = vmatprep.subr.mxu0 0.0
    %704 = vmatpush1.msra.mxu0 %v269
    %705 = vmatprep.subr.mxu0 0.0
    %706 = vmatpush2.msra.mxu0 0.0
    %707 = vmatprep.subr.mxu0 0.0
    %708 = vmatpush2.msra.mxu0 0.0
    %709 = vmatprep.subr.mxu0 0.0
    %710 = vmatpush2.msra.mxu0 0.0
    %711 = vmatprep.subr.mxu0 0.0
    %712 = vmatpush2.msra.mxu0 0.0
    %713 = vmatprep.subr.mxu0 0.0
    %714 = vmatpush2.msra.mxu0 0.0
    %715 = vmatprep.subr.mxu0 0.0
    %716 = vmatpush2.msra.mxu0 0.0
    %717 = vmatprep.subr.mxu0 0.0
    %718 = vmatpush2.msra.mxu0 0.0
    %719 = vmatprep.subr.mxu0 0.0
    %720 = vmatpush2.msra.mxu0 0.0
    %721 = vmatprep.subr.mxu0 0.0
    %722 = vmatpush2.msra.mxu0 0.0
    %723 = vmatprep.subr.mxu0 0.0
    %724 = vmatpush2.msra.mxu0 0.0
    %725 = vmatprep.subr.mxu0 0.0
    %726 = vmatpush2.msra.mxu0 0.0
    %727 = vmatprep.subr.mxu0 0.0
    %728 = vmatpush2.msra.mxu0 0.0
    %729 = vmatprep.subr.mxu0 0.0
    %730 = vmatpush2.msra.mxu0 0.0
    %731 = vmatprep.subr.mxu0 0.0
    %732 = vmatpush2.msra.mxu0 0.0
    %733 = vmatprep.subr.mxu0 0.0
    %734 = vmatpush2.msra.mxu0 0.0
    %735 = vmatprep.subr.mxu0 0.0
    %736 = vmatpush2.msra.mxu0 0.0
    %737 = vmatprep.mubr.f32.mxu0 0.0
    %738 = vmatmul.mubr.f32.gmra.mxu0 %v671
    %v739 = vpop.f32.mrf.mxu0
    %v740 = vadd.f32 0.0, %v739
    %v741 = vpop.f32.mrf.mxu0
    %742 = vdwg.mxu0
    %v744 = vrot.slane %v740, 4
    %v746 = vadd.f32 %v457, %v744
    %v747 = vtanh.pop %v746
    %v748 = vmul.f32 %v747, 0.5
    %v749 = vadd.f32 %v748, 0.5
    %v751 = vrot.slane %v660, 6
    %v753 = vmul.f32 %v749, %v751
    %755 = vrot.lane.b32.xlu0 %v747, 64
    %v756 = vpop.permute.xlu0 %755
    %v758 = vmul.f32 %v749, %v756
    %760 = vrot.lane.b32.xlu0 %v758, 32
    %v761 = vpop.permute.xlu0 %760
    %v763 = vadd.f32 %v753, %v761
    %v764 = vtanh.pop %v763
    %766 = vrot.lane.b32.xlu0 %v764, 64
    %v767 = vpop.permute.xlu0 %766
    %v769 = vmul.f32 %v749, %v767
    %v771 = vrot.slane %v769, 4
    %772 = vrot.lane.b32.xlu0 %v771, 32
    %v773 = vpop.permute.xlu0 %772
    %v774 = vsel %vm383, %v773, 0
    %776 = vmatprep.subr.mxu0 0.0
    %777 = vmatpush1.msra.mxu0 0.0
    %778 = vmatprep.subr.mxu0 0.0
    %779 = vmatpush1.msra.mxu0 0.0
    %780 = vmatprep.subr.mxu0 0.0
    %781 = vmatpush1.msra.mxu0 0.0
    %782 = vmatprep.subr.mxu0 0.0
    %783 = vmatpush1.msra.mxu0 0.0
    %784 = vmatprep.subr.mxu0 0.0
    %785 = vmatpush1.msra.mxu0 0.0
    %786 = vmatprep.subr.mxu0 0.0
    %787 = vmatpush1.msra.mxu0 0.0
    %788 = vmatprep.subr.mxu0 0.0
    %789 = vmatpush1.msra.mxu0 0.0
    %790 = vmatprep.subr.mxu0 0.0
    %791 = vmatpush1.msra.mxu0 0.0
    %792 = vmatprep.subr.mxu0 0.0
    %793 = vmatpush1.msra.mxu0 0.0
    %794 = vmatprep.subr.mxu0 0.0
    %795 = vmatpush1.msra.mxu0 0.0
    %796 = vmatprep.subr.mxu0 0.0
    %797 = vmatpush1.msra.mxu0 0.0
    %798 = vmatprep.subr.mxu0 0.0
    %799 = vmatpush1.msra.mxu0 0.0
    %800 = vmatprep.subr.mxu0 0.0
    %801 = vmatpush1.msra.mxu0 %v272
    %802 = vmatprep.subr.mxu0 0.0
    %803 = vmatpush1.msra.mxu0 %v271
    %804 = vmatprep.subr.mxu0 0.0
    %805 = vmatpush1.msra.mxu0 %v270
    %806 = vmatprep.subr.mxu0 0.0
    %807 = vmatpush1.msra.mxu0 %v269
    %808 = vmatprep.subr.mxu0 0.0
    %809 = vmatpush2.msra.mxu0 0.0
    %810 = vmatprep.subr.mxu0 0.0
    %811 = vmatpush2.msra.mxu0 0.0
    %812 = vmatprep.subr.mxu0 0.0
    %813 = vmatpush2.msra.mxu0 0.0
    %814 = vmatprep.subr.mxu0 0.0
    %815 = vmatpush2.msra.mxu0 0.0
    %816 = vmatprep.subr.mxu0 0.0
    %817 = vmatpush2.msra.mxu0 0.0
    %818 = vmatprep.subr.mxu0 0.0
    %819 = vmatpush2.msra.mxu0 0.0
    %820 = vmatprep.subr.mxu0 0.0
    %821 = vmatpush2.msra.mxu0 0.0
    %822 = vmatprep.subr.mxu0 0.0
    %823 = vmatpush2.msra.mxu0 0.0
    %824 = vmatprep.subr.mxu0 0.0
    %825 = vmatpush2.msra.mxu0 0.0
    %826 = vmatprep.subr.mxu0 0.0
    %827 = vmatpush2.msra.mxu0 0.0
    %828 = vmatprep.subr.mxu0 0.0
    %829 = vmatpush2.msra.mxu0 0.0
    %830 = vmatprep.subr.mxu0 0.0
    %831 = vmatpush2.msra.mxu0 0.0
    %832 = vmatprep.subr.mxu0 0.0
    %833 = vmatpush2.msra.mxu0 0.0
    %834 = vmatprep.subr.mxu0 0.0
    %835 = vmatpush2.msra.mxu0 0.0
    %836 = vmatprep.subr.mxu0 0.0
    %837 = vmatpush2.msra.mxu0 0.0
    %838 = vmatprep.subr.mxu0 0.0
    %839 = vmatpush2.msra.mxu0 0.0
    %840 = vmatprep.mubr.f32.mxu0 0.0
    %841 = vmatmul.mubr.f32.gmra.mxu0 %v774
    %v842 = vpop.f32.mrf.mxu0
    %v843 = vadd.f32 0.0, %v842
    %v844 = vpop.f32.mrf.mxu0
    %845 = vdwg.mxu0
    %v847 = vrot.slane %v843, 2
    %v849 = vadd.f32 %v457, %v847
    %v850 = vtanh.pop %v849
    %v851 = vmul.f32 %v850, 0.5
    %v852 = vadd.f32 %v851, 0.5
    %v854 = vrot.slane %v763, 6
    %v856 = vmul.f32 %v852, %v854
    %858 = vrot.lane.b32.xlu0 %v850, 64
    %v859 = vpop.permute.xlu0 %858
    %v861 = vmul.f32 %v852, %v859
    %863 = vrot.lane.b32.xlu0 %v861, 32
    %v864 = vpop.permute.xlu0 %863
    %v866 = vadd.f32 %v856, %v864
    %v867 = vtanh.pop %v866
    %869 = vrot.lane.b32.xlu0 %v867, 64
    %v870 = vpop.permute.xlu0 %869
    %v872 = vmul.f32 %v852, %v870
    %v874 = vrot.slane %v872, 6
    %875 = vrot.lane.b32.xlu0 %v874, 32
    %v876 = vpop.permute.xlu0 %875
    %v877 = vsel %vm383, %v876, 0
    %879 = vmatprep.subr.mxu0 0.0
    %880 = vmatpush1.msra.mxu0 0.0
    %881 = vmatprep.subr.mxu0 0.0
    %882 = vmatpush1.msra.mxu0 0.0
    %883 = vmatprep.subr.mxu0 0.0
    %884 = vmatpush1.msra.mxu0 0.0
    %885 = vmatprep.subr.mxu0 0.0
    %886 = vmatpush1.msra.mxu0 0.0
    %887 = vmatprep.subr.mxu0 0.0
    %888 = vmatpush1.msra.mxu0 0.0
    %889 = vmatprep.subr.mxu0 0.0
    %890 = vmatpush1.msra.mxu0 0.0
    %891 = vmatprep.subr.mxu0 0.0
    %892 = vmatpush1.msra.mxu0 0.0
    %893 = vmatprep.subr.mxu0 0.0
    %894 = vmatpush1.msra.mxu0 0.0
    %895 = vmatprep.subr.mxu0 0.0
    %896 = vmatpush1.msra.mxu0 0.0
    %897 = vmatprep.subr.mxu0 0.0
    %898 = vmatpush1.msra.mxu0 0.0
    %899 = vmatprep.subr.mxu0 0.0
    %900 = vmatpush1.msra.mxu0 0.0
    %901 = vmatprep.subr.mxu0 0.0
    %902 = vmatpush1.msra.mxu0 0.0
    %903 = vmatprep.subr.mxu0 0.0
    %904 = vmatpush1.msra.mxu0 %v272
    %905 = vmatprep.subr.mxu0 0.0
    %906 = vmatpush1.msra.mxu0 %v271
    %907 = vmatprep.subr.mxu0 0.0
    %908 = vmatpush1.msra.mxu0 %v270
    %909 = vmatprep.subr.mxu0 0.0
    %910 = vmatpush1.msra.mxu0 %v269
    %911 = vmatprep.subr.mxu0 0.0
    %912 = vmatpush2.msra.mxu0 0.0
    %913 = vmatprep.subr.mxu0 0.0
    %914 = vmatpush2.msra.mxu0 0.0
    %915 = vmatprep.subr.mxu0 0.0
    %916 = vmatpush2.msra.mxu0 0.0
    %917 = vmatprep.subr.mxu0 0.0
    %918 = vmatpush2.msra.mxu0 0.0
    %919 = vmatprep.subr.mxu0 0.0
    %920 = vmatpush2.msra.mxu0 0.0
    %921 = vmatprep.subr.mxu0 0.0
    %922 = vmatpush2.msra.mxu0 0.0
    %923 = vmatprep.subr.mxu0 0.0
    %924 = vmatpush2.msra.mxu0 0.0
    %925 = vmatprep.subr.mxu0 0.0
    %926 = vmatpush2.msra.mxu0 0.0
    %927 = vmatprep.subr.mxu0 0.0
    %928 = vmatpush2.msra.mxu0 0.0
    %929 = vmatprep.subr.mxu0 0.0
    %930 = vmatpush2.msra.mxu0 0.0
    %931 = vmatprep.subr.mxu0 0.0
    %932 = vmatpush2.msra.mxu0 0.0
    %933 = vmatprep.subr.mxu0 0.0
    %934 = vmatpush2.msra.mxu0 0.0
    %935 = vmatprep.subr.mxu0 0.0
    %936 = vmatpush2.msra.mxu0 0.0
    %937 = vmatprep.subr.mxu0 0.0
    %938 = vmatpush2.msra.mxu0 0.0
    %939 = vmatprep.subr.mxu0 0.0
    %940 = vmatpush2.msra.mxu0 0.0
    %941 = vmatprep.subr.mxu0 0.0
    %942 = vmatpush2.msra.mxu0 0.0
    %943 = vmatprep.mubr.f32.mxu0 0.0
    %944 = vmatmul.mubr.f32.gmra.mxu0 %v877
    %v945 = vpop.f32.mrf.mxu0
    %v946 = vadd.f32 0.0, %v945
    %v947 = vpop.f32.mrf.mxu0
    %948 = vdwg.mxu0
    %v949 = vadd.f32 %v462, %v946
    %v950 = vtanh.pop %v949
    %v951 = vmul.f32 %v950, 0.5
    %v952 = vadd.f32 %v951, 0.5
    %v954 = vrot.slane %v866, 6
    %v956 = vmul.f32 %v952, %v954
    %958 = vrot.lane.b32.xlu0 %v950, 64
    %v959 = vpop.permute.xlu0 %958
    %v961 = vmul.f32 %v952, %v959
    %963 = vrot.lane.b32.xlu0 %v961, 32
    %v964 = vpop.permute.xlu0 %963
    %v966 = vadd.f32 %v956, %v964
    %v967 = vtanh.pop %v966
    %969 = vrot.lane.b32.xlu0 %v967, 64
    %v970 = vpop.permute.xlu0 %969
    %v972 = vmul.f32 %v952, %v970
    %974 = vrot.lane.b32.xlu0 %v972, 32
    %v975 = vpop.permute.xlu0 %974
    %v976 = vsel %vm383, %v975, 0
    %978 = vmatprep.subr.mxu0 0.0
    %979 = vmatpush1.msra.mxu0 0.0
    %980 = vmatprep.subr.mxu0 0.0
    %981 = vmatpush1.msra.mxu0 0.0
    %982 = vmatprep.subr.mxu0 0.0
    %983 = vmatpush1.msra.mxu0 0.0
    %984 = vmatprep.subr.mxu0 0.0
    %985 = vmatpush1.msra.mxu0 0.0
    %986 = vmatprep.subr.mxu0 0.0
    %987 = vmatpush1.msra.mxu0 0.0
    %988 = vmatprep.subr.mxu0 0.0
    %989 = vmatpush1.msra.mxu0 0.0
    %990 = vmatprep.subr.mxu0 0.0
    %991 = vmatpush1.msra.mxu0 0.0
    %992 = vmatprep.subr.mxu0 0.0
    %993 = vmatpush1.msra.mxu0 0.0
    %994 = vmatprep.subr.mxu0 0.0
    %995 = vmatpush1.msra.mxu0 0.0
    %996 = vmatprep.subr.mxu0 0.0
    %997 = vmatpush1.msra.mxu0 0.0
    %998 = vmatprep.subr.mxu0 0.0
    %999 = vmatpush1.msra.mxu0 0.0
    %1000 = vmatprep.subr.mxu0 0.0
    %1001 = vmatpush1.msra.mxu0 0.0
    %1002 = vmatprep.subr.mxu0 0.0
    %1003 = vmatpush1.msra.mxu0 %v272
    %1004 = vmatprep.subr.mxu0 0.0
    %1005 = vmatpush1.msra.mxu0 %v271
    %1006 = vmatprep.subr.mxu0 0.0
    %1007 = vmatpush1.msra.mxu0 %v270
    %1008 = vmatprep.subr.mxu0 0.0
    %1009 = vmatpush1.msra.mxu0 %v269
    %1010 = vmatprep.subr.mxu0 0.0
    %1011 = vmatpush2.msra.mxu0 0.0
    %1012 = vmatprep.subr.mxu0 0.0
    %1013 = vmatpush2.msra.mxu0 0.0
    %1014 = vmatprep.subr.mxu0 0.0
    %1015 = vmatpush2.msra.mxu0 0.0
    %1016 = vmatprep.subr.mxu0 0.0
    %1017 = vmatpush2.msra.mxu0 0.0
    %1018 = vmatprep.subr.mxu0 0.0
    %1019 = vmatpush2.msra.mxu0 0.0
    %1020 = vmatprep.subr.mxu0 0.0
    %1021 = vmatpush2.msra.mxu0 0.0
    %1022 = vmatprep.subr.mxu0 0.0
    %1023 = vmatpush2.msra.mxu0 0.0
    %1024 = vmatprep.subr.mxu0 0.0
    %1025 = vmatpush2.msra.mxu0 0.0
    %1026 = vmatprep.subr.mxu0 0.0
    %1027 = vmatpush2.msra.mxu0 0.0
    %1028 = vmatprep.subr.mxu0 0.0
    %1029 = vmatpush2.msra.mxu0 0.0
    %1030 = vmatprep.subr.mxu0 0.0
    %1031 = vmatpush2.msra.mxu0 0.0
    %1032 = vmatprep.subr.mxu0 0.0
    %1033 = vmatpush2.msra.mxu0 0.0
    %1034 = vmatprep.subr.mxu0 0.0
    %1035 = vmatpush2.msra.mxu0 0.0
    %1036 = vmatprep.subr.mxu0 0.0
    %1037 = vmatpush2.msra.mxu0 0.0
    %1038 = vmatprep.subr.mxu0 0.0
    %1039 = vmatpush2.msra.mxu0 0.0
    %1040 = vmatprep.subr.mxu0 0.0
    %1041 = vmatpush2.msra.mxu0 0.0
    %1042 = vmatprep.mubr.f32.mxu0 0.0
    %1043 = vmatmul.mubr.f32.gmra.mxu0 %v976
    %v1044 = vpop.f32.mrf.mxu0
    %v1045 = vadd.f32 0.0, %v1044
    %v1046 = vpop.f32.mrf.mxu0
    %1047 = vdwg.mxu0
    %v1049 = vrot.slane %v1045, 6
    %v1051 = vadd.f32 %v462, %v1049
    %v1052 = vtanh.pop %v1051
    %v1053 = vmul.f32 %v1052, 0.5
    %v1054 = vadd.f32 %v1053, 0.5
    %v1056 = vrot.slane %v966, 6
    %v1058 = vmul.f32 %v1054, %v1056
    %1060 = vrot.lane.b32.xlu0 %v1052, 64
    %v1061 = vpop.permute.xlu0 %1060
    %v1063 = vmul.f32 %v1054, %v1061
    %1065 = vrot.lane.b32.xlu0 %v1063, 32
    %v1066 = vpop.permute.xlu0 %1065
    %v1068 = vadd.f32 %v1058, %v1066
    %v1069 = vtanh.pop %v1068
    %1071 = vrot.lane.b32.xlu0 %v1069, 64
    %v1072 = vpop.permute.xlu0 %1071
    %v1074 = vmul.f32 %v1054, %v1072
    %v1076 = vrot.slane %v1074, 2
    %1077 = vrot.lane.b32.xlu0 %v1076, 32
    %v1078 = vpop.permute.xlu0 %1077
    %v1079 = vsel %vm383, %v1078, 0
    %1081 = vmatprep.subr.mxu0 0.0
    %1082 = vmatpush1.msra.mxu0 0.0
    %1083 = vmatprep.subr.mxu0 0.0
    %1084 = vmatpush1.msra.mxu0 0.0
    %1085 = vmatprep.subr.mxu0 0.0
    %1086 = vmatpush1.msra.mxu0 0.0
    %1087 = vmatprep.subr.mxu0 0.0
    %1088 = vmatpush1.msra.mxu0 0.0
    %1089 = vmatprep.subr.mxu0 0.0
    %1090 = vmatpush1.msra.mxu0 0.0
    %1091 = vmatprep.subr.mxu0 0.0
    %1092 = vmatpush1.msra.mxu0 0.0
    %1093 = vmatprep.subr.mxu0 0.0
    %1094 = vmatpush1.msra.mxu0 0.0
    %1095 = vmatprep.subr.mxu0 0.0
    %1096 = vmatpush1.msra.mxu0 0.0
    %1097 = vmatprep.subr.mxu0 0.0
    %1098 = vmatpush1.msra.mxu0 0.0
    %1099 = vmatprep.subr.mxu0 0.0
    %1100 = vmatpush1.msra.mxu0 0.0
    %1101 = vmatprep.subr.mxu0 0.0
    %1102 = vmatpush1.msra.mxu0 0.0
    %1103 = vmatprep.subr.mxu0 0.0
    %1104 = vmatpush1.msra.mxu0 0.0
    %1105 = vmatprep.subr.mxu0 0.0
    %1106 = vmatpush1.msra.mxu0 %v272
    %1107 = vmatprep.subr.mxu0 0.0
    %1108 = vmatpush1.msra.mxu0 %v271
    %1109 = vmatprep.subr.mxu0 0.0
    %1110 = vmatpush1.msra.mxu0 %v270
    %1111 = vmatprep.subr.mxu0 0.0
    %1112 = vmatpush1.msra.mxu0 %v269
    %1113 = vmatprep.subr.mxu0 0.0
    %1114 = vmatpush2.msra.mxu0 0.0
    %1115 = vmatprep.subr.mxu0 0.0
    %1116 = vmatpush2.msra.mxu0 0.0
    %1117 = vmatprep.subr.mxu0 0.0
    %1118 = vmatpush2.msra.mxu0 0.0
    %1119 = vmatprep.subr.mxu0 0.0
    %1120 = vmatpush2.msra.mxu0 0.0
    %1121 = vmatprep.subr.mxu0 0.0
    %1122 = vmatpush2.msra.mxu0 0.0
    %1123 = vmatprep.subr.mxu0 0.0
    %1124 = vmatpush2.msra.mxu0 0.0
    %1125 = vmatprep.subr.mxu0 0.0
    %1126 = vmatpush2.msra.mxu0 0.0
    %1127 = vmatprep.subr.mxu0 0.0
    %1128 = vmatpush2.msra.mxu0 0.0
    %1129 = vmatprep.subr.mxu0 0.0
    %1130 = vmatpush2.msra.mxu0 0.0
    %1131 = vmatprep.subr.mxu0 0.0
    %1132 = vmatpush2.msra.mxu0 0.0
    %1133 = vmatprep.subr.mxu0 0.0
    %1134 = vmatpush2.msra.mxu0 0.0
    %1135 = vmatprep.subr.mxu0 0.0
    %1136 = vmatpush2.msra.mxu0 0.0
    %1137 = vmatprep.subr.mxu0 0.0
    %1138 = vmatpush2.msra.mxu0 0.0
    %1139 = vmatprep.subr.mxu0 0.0
    %1140 = vmatpush2.msra.mxu0 0.0
    %1141 = vmatprep.subr.mxu0 0.0
    %1142 = vmatpush2.msra.mxu0 0.0
    %1143 = vmatprep.subr.mxu0 0.0
    %1144 = vmatpush2.msra.mxu0 0.0
    %1145 = vmatprep.mubr.f32.mxu0 0.0
    %1146 = vmatmul.mubr.f32.gmra.mxu0 %v1079
    %v1147 = vpop.f32.mrf.mxu0
    %v1148 = vadd.f32 0.0, %v1147
    %v1149 = vpop.f32.mrf.mxu0
    %1150 = vdwg.mxu0
    %v1152 = vrot.slane %v1148, 4
    %v1154 = vadd.f32 %v462, %v1152
    %v1155 = vtanh.pop %v1154
    %v1156 = vmul.f32 %v1155, 0.5
    %v1157 = vadd.f32 %v1156, 0.5
    %v1159 = vrot.slane %v1068, 6
    %v1161 = vmul.f32 %v1157, %v1159
    %1163 = vrot.lane.b32.xlu0 %v1155, 64
    %v1164 = vpop.permute.xlu0 %1163
    %v1166 = vmul.f32 %v1157, %v1164
    %1168 = vrot.lane.b32.xlu0 %v1166, 32
    %v1169 = vpop.permute.xlu0 %1168
    %v1171 = vadd.f32 %v1161, %v1169
    %v1172 = vtanh.pop %v1171
    %1174 = vrot.lane.b32.xlu0 %v1172, 64
    %v1175 = vpop.permute.xlu0 %1174
    %v1177 = vmul.f32 %v1157, %v1175
    %v1179 = vrot.slane %v1177, 4
    %1180 = vrot.lane.b32.xlu0 %v1179, 32
    %v1181 = vpop.permute.xlu0 %1180
    %v1182 = vsel %vm383, %v1181, 0
    %1184 = vmatprep.subr.mxu0 0.0
    %1185 = vmatpush1.msra.mxu0 0.0
    %1186 = vmatprep.subr.mxu0 0.0
    %1187 = vmatpush1.msra.mxu0 0.0
    %1188 = vmatprep.subr.mxu0 0.0
    %1189 = vmatpush1.msra.mxu0 0.0
    %1190 = vmatprep.subr.mxu0 0.0
    %1191 = vmatpush1.msra.mxu0 0.0
    %1192 = vmatprep.subr.mxu0 0.0
    %1193 = vmatpush1.msra.mxu0 0.0
    %1194 = vmatprep.subr.mxu0 0.0
    %1195 = vmatpush1.msra.mxu0 0.0
    %1196 = vmatprep.subr.mxu0 0.0
    %1197 = vmatpush1.msra.mxu0 0.0
    %1198 = vmatprep.subr.mxu0 0.0
    %1199 = vmatpush1.msra.mxu0 0.0
    %1200 = vmatprep.subr.mxu0 0.0
    %1201 = vmatpush1.msra.mxu0 0.0
    %1202 = vmatprep.subr.mxu0 0.0
    %1203 = vmatpush1.msra.mxu0 0.0
    %1204 = vmatprep.subr.mxu0 0.0
    %1205 = vmatpush1.msra.mxu0 0.0
    %1206 = vmatprep.subr.mxu0 0.0
    %1207 = vmatpush1.msra.mxu0 0.0
    %1208 = vmatprep.subr.mxu0 0.0
    %1209 = vmatpush1.msra.mxu0 %v272
    %1210 = vmatprep.subr.mxu0 0.0
    %1211 = vmatpush1.msra.mxu0 %v271
    %1212 = vmatprep.subr.mxu0 0.0
    %1213 = vmatpush1.msra.mxu0 %v270
    %1214 = vmatprep.subr.mxu0 0.0
    %1215 = vmatpush1.msra.mxu0 %v269
    %1216 = vmatprep.subr.mxu0 0.0
    %1217 = vmatpush2.msra.mxu0 0.0
    %1218 = vmatprep.subr.mxu0 0.0
    %1219 = vmatpush2.msra.mxu0 0.0
    %1220 = vmatprep.subr.mxu0 0.0
    %1221 = vmatpush2.msra.mxu0 0.0
    %1222 = vmatprep.subr.mxu0 0.0
    %1223 = vmatpush2.msra.mxu0 0.0
    %1224 = vmatprep.subr.mxu0 0.0
    %1225 = vmatpush2.msra.mxu0 0.0
    %1226 = vmatprep.subr.mxu0 0.0
    %1227 = vmatpush2.msra.mxu0 0.0
    %1228 = vmatprep.subr.mxu0 0.0
    %1229 = vmatpush2.msra.mxu0 0.0
    %1230 = vmatprep.subr.mxu0 0.0
    %1231 = vmatpush2.msra.mxu0 0.0
    %1232 = vmatprep.subr.mxu0 0.0
    %1233 = vmatpush2.msra.mxu0 0.0
    %1234 = vmatprep.subr.mxu0 0.0
    %1235 = vmatpush2.msra.mxu0 0.0
    %1236 = vmatprep.subr.mxu0 0.0
    %1237 = vmatpush2.msra.mxu0 0.0
    %1238 = vmatprep.subr.mxu0 0.0
    %1239 = vmatpush2.msra.mxu0 0.0
    %1240 = vmatprep.subr.mxu0 0.0
    %1241 = vmatpush2.msra.mxu0 0.0
    %1242 = vmatprep.subr.mxu0 0.0
    %1243 = vmatpush2.msra.mxu0 0.0
    %1244 = vmatprep.subr.mxu0 0.0
    %1245 = vmatpush2.msra.mxu0 0.0
    %1246 = vmatprep.subr.mxu0 0.0
    %1247 = vmatpush2.msra.mxu0 0.0
    %1248 = vmatprep.mubr.f32.mxu0 0.0
    %1249 = vmatmul.mubr.f32.gmra.mxu0 %v1182
    %v1250 = vpop.f32.mrf.mxu0
    %v1251 = vadd.f32 0.0, %v1250
    %v1252 = vpop.f32.mrf.mxu0
    %1253 = vdwg.mxu0
    %v1255 = vrot.slane %v1251, 2
    %v1257 = vadd.f32 %v462, %v1255
    %v1258 = vtanh.pop %v1257
    %v1259 = vmul.f32 %v1258, 0.5
    %v1260 = vadd.f32 %v1259, 0.5
    %v1262 = vrot.slane %v1171, 6
    %v1264 = vmul.f32 %v1260, %v1262
    %1266 = vrot.lane.b32.xlu0 %v1258, 64
    %v1267 = vpop.permute.xlu0 %1266
    %v1269 = vmul.f32 %v1260, %v1267
    %1271 = vrot.lane.b32.xlu0 %v1269, 32
    %v1272 = vpop.permute.xlu0 %1271
    %v1274 = vadd.f32 %v1264, %v1272
    %v1275 = vtanh.pop %v1274
    %1277 = vrot.lane.b32.xlu0 %v1275, 64
    %v1278 = vpop.permute.xlu0 %1277
    %v1280 = vmul.f32 %v1260, %v1278
    %1282 = vrot.lane.b32.xlu0 %v1280, 32
    %v1283 = vpop.permute.xlu0 %1282
    %vm1285 = vcmask 261126
    %1286 = vst.msk [vmem:[#allocation10 - $0x6] sm:$0xc0] %vm1285, %v1283
    %1288 = vrot.lane.b32.xlu0 %v1274, 96
    %v1289 = vpop.permute.xlu0 %1288
    %1291 = vst.msk [vmem:[#allocation12 - $0x6] sm:$0xc0] %vm1285, %v1289
    %v1292 = vld [vmem:[%s5] sm:$0xff]
    %v1293 = vld [vmem:[%s5 + $0x8] sm:$0xff]
    %v1294 = vld [vmem:[%s5 + $0x10] sm:$0xff]
    %v1295 = vld [vmem:[%s5 + $0x18] sm:$0xff]
    %v1296 = vmul.f32 %v1292, %v81
    %v1297 = vmul.f32 %v1293, %v81
    %v1298 = vmul.f32 %v1294, %v81
    %v1299 = vmul.f32 %v1295, %v81
    %v1300 = vld [vmem:[#allocation7] sm:$0xff]
    %v1301 = vld [vmem:[#allocation7 + $0x8] sm:$0xff]
    %v1302 = vld [vmem:[#allocation7 + $0x10] sm:$0xff]
    %v1303 = vld [vmem:[#allocation7 + $0x18] sm:$0xff]
    %v1304 = vmul.f32 %v1300, %v81
    %v1305 = vmul.f32 %v1301, %v81
    %v1306 = vmul.f32 %v1302, %v81
    %v1307 = vmul.f32 %v1303, %v81
    %v1308 = vld [vmem:[%s7] sm:$0x1]
    %v1309 = vmul.f32 %v1308, %v81
    %v1311 = vlaneseq
    %v1312 = vshrl.u32 %v1311, 7
    %v1313 = vsub.s32 0, %v1312
    %v1314 = vrot.slane %v1309, %v1313
    %1316 = vmatprep.subr.mxu0 0.0
    %1317 = vmatpush1.msra.mxu0 0.0
    %1318 = vmatprep.subr.mxu0 0.0
    %1319 = vmatpush1.msra.mxu0 0.0
    %1320 = vmatprep.subr.mxu0 0.0
    %1321 = vmatpush1.msra.mxu0 0.0
    %1322 = vmatprep.subr.mxu0 0.0
    %1323 = vmatpush1.msra.mxu0 0.0
    %1324 = vmatprep.subr.mxu0 0.0
    %1325 = vmatpush1.msra.mxu0 0.0
    %1326 = vmatprep.subr.mxu0 0.0
    %1327 = vmatpush1.msra.mxu0 0.0
    %1328 = vmatprep.subr.mxu0 0.0
    %1329 = vmatpush1.msra.mxu0 0.0
    %1330 = vmatprep.subr.mxu0 0.0
    %1331 = vmatpush1.msra.mxu0 0.0
    %1332 = vmatprep.subr.mxu0 0.0
    %1333 = vmatpush1.msra.mxu0 0.0
    %1334 = vmatprep.subr.mxu0 0.0
    %1335 = vmatpush1.msra.mxu0 0.0
    %1336 = vmatprep.subr.mxu0 0.0
    %1337 = vmatpush1.msra.mxu0 0.0
    %1338 = vmatprep.subr.mxu0 0.0
    %1339 = vmatpush1.msra.mxu0 0.0
    %1340 = vmatprep.subr.mxu0 0.0
    %1341 = vmatpush1.msra.mxu0 %v1299
    %1342 = vmatprep.subr.mxu0 0.0
    %1343 = vmatpush1.msra.mxu0 %v1298
    %1344 = vmatprep.subr.mxu0 0.0
    %1345 = vmatpush1.msra.mxu0 %v1297
    %1346 = vmatprep.subr.mxu0 0.0
    %1347 = vmatpush1.msra.mxu0 %v1296
    %1348 = vmatprep.subr.mxu0 0.0
    %1349 = vmatpush2.msra.mxu0 0.0
    %1350 = vmatprep.subr.mxu0 0.0
    %1351 = vmatpush2.msra.mxu0 0.0
    %1352 = vmatprep.subr.mxu0 0.0
    %1353 = vmatpush2.msra.mxu0 0.0
    %1354 = vmatprep.subr.mxu0 0.0
    %1355 = vmatpush2.msra.mxu0 0.0
    %1356 = vmatprep.subr.mxu0 0.0
    %1357 = vmatpush2.msra.mxu0 0.0
    %1358 = vmatprep.subr.mxu0 0.0
    %1359 = vmatpush2.msra.mxu0 0.0
    %1360 = vmatprep.subr.mxu0 0.0
    %1361 = vmatpush2.msra.mxu0 0.0
    %1362 = vmatprep.subr.mxu0 0.0
    %1363 = vmatpush2.msra.mxu0 0.0
    %1364 = vmatprep.subr.mxu0 0.0
    %1365 = vmatpush2.msra.mxu0 0.0
    %1366 = vmatprep.subr.mxu0 0.0
    %1367 = vmatpush2.msra.mxu0 0.0
    %1368 = vmatprep.subr.mxu0 0.0
    %1369 = vmatpush2.msra.mxu0 0.0
    %1370 = vmatprep.subr.mxu0 0.0
    %1371 = vmatpush2.msra.mxu0 0.0
    %1372 = vmatprep.subr.mxu0 0.0
    %1373 = vmatpush2.msra.mxu0 0.0
    %1374 = vmatprep.subr.mxu0 0.0
    %1375 = vmatpush2.msra.mxu0 0.0
    %1376 = vmatprep.subr.mxu0 0.0
    %1377 = vmatpush2.msra.mxu0 0.0
    %1378 = vmatprep.subr.mxu0 0.0
    %1379 = vmatpush2.msra.mxu0 0.0
    %1380 = vmatprep.mubr.f32.mxu0 0.0
    %1381 = vmatmul.mubr.f32.gmra.mxu0 %v568
    %v1382 = vpop.f32.mrf.mxu0
    %v1383 = vadd.f32 %v1314, %v1382
    %v1384 = vpop.f32.mrf.mxu0
    %1385 = vdwg.mxu0
    %1386 = vmatprep.subr.mxu0 0.0
    %1387 = vmatpush1.msra.mxu0 0.0
    %1388 = vmatprep.subr.mxu0 0.0
    %1389 = vmatpush1.msra.mxu0 0.0
    %1390 = vmatprep.subr.mxu0 0.0
    %1391 = vmatpush1.msra.mxu0 0.0
    %1392 = vmatprep.subr.mxu0 0.0
    %1393 = vmatpush1.msra.mxu0 0.0
    %1394 = vmatprep.subr.mxu0 0.0
    %1395 = vmatpush1.msra.mxu0 0.0
    %1396 = vmatprep.subr.mxu0 0.0
    %1397 = vmatpush1.msra.mxu0 0.0
    %1398 = vmatprep.subr.mxu0 0.0
    %1399 = vmatpush1.msra.mxu0 0.0
    %1400 = vmatprep.subr.mxu0 0.0
    %1401 = vmatpush1.msra.mxu0 0.0
    %1402 = vmatprep.subr.mxu0 0.0
    %1403 = vmatpush1.msra.mxu0 0.0
    %1404 = vmatprep.subr.mxu0 0.0
    %1405 = vmatpush1.msra.mxu0 0.0
    %1406 = vmatprep.subr.mxu0 0.0
    %1407 = vmatpush1.msra.mxu0 0.0
    %1408 = vmatprep.subr.mxu0 0.0
    %1409 = vmatpush1.msra.mxu0 0.0
    %1410 = vmatprep.subr.mxu0 0.0
    %1411 = vmatpush1.msra.mxu0 %v1299
    %1412 = vmatprep.subr.mxu0 0.0
    %1413 = vmatpush1.msra.mxu0 %v1298
    %1414 = vmatprep.subr.mxu0 0.0
    %1415 = vmatpush1.msra.mxu0 %v1297
    %1416 = vmatprep.subr.mxu0 0.0
    %1417 = vmatpush1.msra.mxu0 %v1296
    %1418 = vmatprep.subr.mxu0 0.0
    %1419 = vmatpush2.msra.mxu0 0.0
    %1420 = vmatprep.subr.mxu0 0.0
    %1421 = vmatpush2.msra.mxu0 0.0
    %1422 = vmatprep.subr.mxu0 0.0
    %1423 = vmatpush2.msra.mxu0 0.0
    %1424 = vmatprep.subr.mxu0 0.0
    %1425 = vmatpush2.msra.mxu0 0.0
    %1426 = vmatprep.subr.mxu0 0.0
    %1427 = vmatpush2.msra.mxu0 0.0
    %1428 = vmatprep.subr.mxu0 0.0
    %1429 = vmatpush2.msra.mxu0 0.0
    %1430 = vmatprep.subr.mxu0 0.0
    %1431 = vmatpush2.msra.mxu0 0.0
    %1432 = vmatprep.subr.mxu0 0.0
    %1433 = vmatpush2.msra.mxu0 0.0
    %1434 = vmatprep.subr.mxu0 0.0
    %1435 = vmatpush2.msra.mxu0 0.0
    %1436 = vmatprep.subr.mxu0 0.0
    %1437 = vmatpush2.msra.mxu0 0.0
    %1438 = vmatprep.subr.mxu0 0.0
    %1439 = vmatpush2.msra.mxu0 0.0
    %1440 = vmatprep.subr.mxu0 0.0
    %1441 = vmatpush2.msra.mxu0 0.0
    %1442 = vmatprep.subr.mxu0 0.0
    %1443 = vmatpush2.msra.mxu0 0.0
    %1444 = vmatprep.subr.mxu0 0.0
    %1445 = vmatpush2.msra.mxu0 0.0
    %1446 = vmatprep.subr.mxu0 0.0
    %1447 = vmatpush2.msra.mxu0 0.0
    %1448 = vmatprep.subr.mxu0 0.0
    %1449 = vmatpush2.msra.mxu0 0.0
    %1450 = vmatprep.mubr.f32.mxu0 0.0
    %1451 = vmatmul.mubr.f32.gmra.mxu0 %v671
    %v1452 = vpop.f32.mrf.mxu0
    %v1453 = vadd.f32 %v1314, %v1452
    %v1454 = vpop.f32.mrf.mxu0
    %1455 = vdwg.mxu0
    %1456 = vmatprep.subr.mxu0 0.0
    %1457 = vmatpush1.msra.mxu0 0.0
    %1458 = vmatprep.subr.mxu0 0.0
    %1459 = vmatpush1.msra.mxu0 0.0
    %1460 = vmatprep.subr.mxu0 0.0
    %1461 = vmatpush1.msra.mxu0 0.0
    %1462 = vmatprep.subr.mxu0 0.0
    %1463 = vmatpush1.msra.mxu0 0.0
    %1464 = vmatprep.subr.mxu0 0.0
    %1465 = vmatpush1.msra.mxu0 0.0
    %1466 = vmatprep.subr.mxu0 0.0
    %1467 = vmatpush1.msra.mxu0 0.0
    %1468 = vmatprep.subr.mxu0 0.0
    %1469 = vmatpush1.msra.mxu0 0.0
    %1470 = vmatprep.subr.mxu0 0.0
    %1471 = vmatpush1.msra.mxu0 0.0
    %1472 = vmatprep.subr.mxu0 0.0
    %1473 = vmatpush1.msra.mxu0 0.0
    %1474 = vmatprep.subr.mxu0 0.0
    %1475 = vmatpush1.msra.mxu0 0.0
    %1476 = vmatprep.subr.mxu0 0.0
    %1477 = vmatpush1.msra.mxu0 0.0
    %1478 = vmatprep.subr.mxu0 0.0
    %1479 = vmatpush1.msra.mxu0 0.0
    %1480 = vmatprep.subr.mxu0 0.0
    %1481 = vmatpush1.msra.mxu0 %v1299
    %1482 = vmatprep.subr.mxu0 0.0
    %1483 = vmatpush1.msra.mxu0 %v1298
    %1484 = vmatprep.subr.mxu0 0.0
    %1485 = vmatpush1.msra.mxu0 %v1297
    %1486 = vmatprep.subr.mxu0 0.0
    %1487 = vmatpush1.msra.mxu0 %v1296
    %1488 = vmatprep.subr.mxu0 0.0
    %1489 = vmatpush2.msra.mxu0 0.0
    %1490 = vmatprep.subr.mxu0 0.0
    %1491 = vmatpush2.msra.mxu0 0.0
    %1492 = vmatprep.subr.mxu0 0.0
    %1493 = vmatpush2.msra.mxu0 0.0
    %1494 = vmatprep.subr.mxu0 0.0
    %1495 = vmatpush2.msra.mxu0 0.0
    %1496 = vmatprep.subr.mxu0 0.0
    %1497 = vmatpush2.msra.mxu0 0.0
    %1498 = vmatprep.subr.mxu0 0.0
    %1499 = vmatpush2.msra.mxu0 0.0
    %1500 = vmatprep.subr.mxu0 0.0
    %1501 = vmatpush2.msra.mxu0 0.0
    %1502 = vmatprep.subr.mxu0 0.0
    %1503 = vmatpush2.msra.mxu0 0.0
    %1504 = vmatprep.subr.mxu0 0.0
    %1505 = vmatpush2.msra.mxu0 0.0
    %1506 = vmatprep.subr.mxu0 0.0
    %1507 = vmatpush2.msra.mxu0 0.0
    %1508 = vmatprep.subr.mxu0 0.0
    %1509 = vmatpush2.msra.mxu0 0.0
    %1510 = vmatprep.subr.mxu0 0.0
    %1511 = vmatpush2.msra.mxu0 0.0
    %1512 = vmatprep.subr.mxu0 0.0
    %1513 = vmatpush2.msra.mxu0 0.0
    %1514 = vmatprep.subr.mxu0 0.0
    %1515 = vmatpush2.msra.mxu0 0.0
    %1516 = vmatprep.subr.mxu0 0.0
    %1517 = vmatpush2.msra.mxu0 0.0
    %1518 = vmatprep.subr.mxu0 0.0
    %1519 = vmatpush2.msra.mxu0 0.0
    %1520 = vmatprep.mubr.f32.mxu0 0.0
    %1521 = vmatmul.mubr.f32.gmra.mxu0 %v774
    %v1522 = vpop.f32.mrf.mxu0
    %v1523 = vadd.f32 %v1314, %v1522
    %v1524 = vpop.f32.mrf.mxu0
    %1525 = vdwg.mxu0
    %1526 = vmatprep.subr.mxu0 0.0
    %1527 = vmatpush1.msra.mxu0 0.0
    %1528 = vmatprep.subr.mxu0 0.0
    %1529 = vmatpush1.msra.mxu0 0.0
    %1530 = vmatprep.subr.mxu0 0.0
    %1531 = vmatpush1.msra.mxu0 0.0
    %1532 = vmatprep.subr.mxu0 0.0
    %1533 = vmatpush1.msra.mxu0 0.0
    %1534 = vmatprep.subr.mxu0 0.0
    %1535 = vmatpush1.msra.mxu0 0.0
    %1536 = vmatprep.subr.mxu0 0.0
    %1537 = vmatpush1.msra.mxu0 0.0
    %1538 = vmatprep.subr.mxu0 0.0
    %1539 = vmatpush1.msra.mxu0 0.0
    %1540 = vmatprep.subr.mxu0 0.0
    %1541 = vmatpush1.msra.mxu0 0.0
    %1542 = vmatprep.subr.mxu0 0.0
    %1543 = vmatpush1.msra.mxu0 0.0
    %1544 = vmatprep.subr.mxu0 0.0
    %1545 = vmatpush1.msra.mxu0 0.0
    %1546 = vmatprep.subr.mxu0 0.0
    %1547 = vmatpush1.msra.mxu0 0.0
    %1548 = vmatprep.subr.mxu0 0.0
    %1549 = vmatpush1.msra.mxu0 0.0
    %1550 = vmatprep.subr.mxu0 0.0
    %1551 = vmatpush1.msra.mxu0 %v1299
    %1552 = vmatprep.subr.mxu0 0.0
    %1553 = vmatpush1.msra.mxu0 %v1298
    %1554 = vmatprep.subr.mxu0 0.0
    %1555 = vmatpush1.msra.mxu0 %v1297
    %1556 = vmatprep.subr.mxu0 0.0
    %1557 = vmatpush1.msra.mxu0 %v1296
    %1558 = vmatprep.subr.mxu0 0.0
    %1559 = vmatpush2.msra.mxu0 0.0
    %1560 = vmatprep.subr.mxu0 0.0
    %1561 = vmatpush2.msra.mxu0 0.0
    %1562 = vmatprep.subr.mxu0 0.0
    %1563 = vmatpush2.msra.mxu0 0.0
    %1564 = vmatprep.subr.mxu0 0.0
    %1565 = vmatpush2.msra.mxu0 0.0
    %1566 = vmatprep.subr.mxu0 0.0
    %1567 = vmatpush2.msra.mxu0 0.0
    %1568 = vmatprep.subr.mxu0 0.0
    %1569 = vmatpush2.msra.mxu0 0.0
    %1570 = vmatprep.subr.mxu0 0.0
    %1571 = vmatpush2.msra.mxu0 0.0
    %1572 = vmatprep.subr.mxu0 0.0
    %1573 = vmatpush2.msra.mxu0 0.0
    %1574 = vmatprep.subr.mxu0 0.0
    %1575 = vmatpush2.msra.mxu0 0.0
    %1576 = vmatprep.subr.mxu0 0.0
    %1577 = vmatpush2.msra.mxu0 0.0
    %1578 = vmatprep.subr.mxu0 0.0
    %1579 = vmatpush2.msra.mxu0 0.0
    %1580 = vmatprep.subr.mxu0 0.0
    %1581 = vmatpush2.msra.mxu0 0.0
    %1582 = vmatprep.subr.mxu0 0.0
    %1583 = vmatpush2.msra.mxu0 0.0
    %1584 = vmatprep.subr.mxu0 0.0
    %1585 = vmatpush2.msra.mxu0 0.0
    %1586 = vmatprep.subr.mxu0 0.0
    %1587 = vmatpush2.msra.mxu0 0.0
    %1588 = vmatprep.subr.mxu0 0.0
    %1589 = vmatpush2.msra.mxu0 0.0
    %1590 = vmatprep.mubr.f32.mxu0 0.0
    %1591 = vmatmul.mubr.f32.gmra.mxu0 %v877
    %v1592 = vpop.f32.mrf.mxu0
    %v1593 = vadd.f32 %v1314, %v1592
    %v1594 = vpop.f32.mrf.mxu0
    %1595 = vdwg.mxu0
    %1596 = vmatprep.subr.mxu0 0.0
    %1597 = vmatpush1.msra.mxu0 0.0
    %1598 = vmatprep.subr.mxu0 0.0
    %1599 = vmatpush1.msra.mxu0 0.0
    %1600 = vmatprep.subr.mxu0 0.0
    %1601 = vmatpush1.msra.mxu0 0.0
    %1602 = vmatprep.subr.mxu0 0.0
    %1603 = vmatpush1.msra.mxu0 0.0
    %1604 = vmatprep.subr.mxu0 0.0
    %1605 = vmatpush1.msra.mxu0 0.0
    %1606 = vmatprep.subr.mxu0 0.0
    %1607 = vmatpush1.msra.mxu0 0.0
    %1608 = vmatprep.subr.mxu0 0.0
    %1609 = vmatpush1.msra.mxu0 0.0
    %1610 = vmatprep.subr.mxu0 0.0
    %1611 = vmatpush1.msra.mxu0 0.0
    %1612 = vmatprep.subr.mxu0 0.0
    %1613 = vmatpush1.msra.mxu0 0.0
    %1614 = vmatprep.subr.mxu0 0.0
    %1615 = vmatpush1.msra.mxu0 0.0
    %1616 = vmatprep.subr.mxu0 0.0
    %1617 = vmatpush1.msra.mxu0 0.0
    %1618 = vmatprep.subr.mxu0 0.0
    %1619 = vmatpush1.msra.mxu0 0.0
    %1620 = vmatprep.subr.mxu0 0.0
    %1621 = vmatpush1.msra.mxu0 %v1299
    %1622 = vmatprep.subr.mxu0 0.0
    %1623 = vmatpush1.msra.mxu0 %v1298
    %1624 = vmatprep.subr.mxu0 0.0
    %1625 = vmatpush1.msra.mxu0 %v1297
    %1626 = vmatprep.subr.mxu0 0.0
    %1627 = vmatpush1.msra.mxu0 %v1296
    %1628 = vmatprep.subr.mxu0 0.0
    %1629 = vmatpush2.msra.mxu0 0.0
    %1630 = vmatprep.subr.mxu0 0.0
    %1631 = vmatpush2.msra.mxu0 0.0
    %1632 = vmatprep.subr.mxu0 0.0
    %1633 = vmatpush2.msra.mxu0 0.0
    %1634 = vmatprep.subr.mxu0 0.0
    %1635 = vmatpush2.msra.mxu0 0.0
    %1636 = vmatprep.subr.mxu0 0.0
    %1637 = vmatpush2.msra.mxu0 0.0
    %1638 = vmatprep.subr.mxu0 0.0
    %1639 = vmatpush2.msra.mxu0 0.0
    %1640 = vmatprep.subr.mxu0 0.0
    %1641 = vmatpush2.msra.mxu0 0.0
    %1642 = vmatprep.subr.mxu0 0.0
    %1643 = vmatpush2.msra.mxu0 0.0
    %1644 = vmatprep.subr.mxu0 0.0
    %1645 = vmatpush2.msra.mxu0 0.0
    %1646 = vmatprep.subr.mxu0 0.0
    %1647 = vmatpush2.msra.mxu0 0.0
    %1648 = vmatprep.subr.mxu0 0.0
    %1649 = vmatpush2.msra.mxu0 0.0
    %1650 = vmatprep.subr.mxu0 0.0
    %1651 = vmatpush2.msra.mxu0 0.0
    %1652 = vmatprep.subr.mxu0 0.0
    %1653 = vmatpush2.msra.mxu0 0.0
    %1654 = vmatprep.subr.mxu0 0.0
    %1655 = vmatpush2.msra.mxu0 0.0
    %1656 = vmatprep.subr.mxu0 0.0
    %1657 = vmatpush2.msra.mxu0 0.0
    %1658 = vmatprep.subr.mxu0 0.0
    %1659 = vmatpush2.msra.mxu0 0.0
    %1660 = vmatprep.mubr.f32.mxu0 0.0
    %1661 = vmatmul.mubr.f32.gmra.mxu0 %v976
    %v1662 = vpop.f32.mrf.mxu0
    %v1663 = vadd.f32 %v1314, %v1662
    %v1664 = vpop.f32.mrf.mxu0
    %1665 = vdwg.mxu0
    %1666 = vmatprep.subr.mxu0 0.0
    %1667 = vmatpush1.msra.mxu0 0.0
    %1668 = vmatprep.subr.mxu0 0.0
    %1669 = vmatpush1.msra.mxu0 0.0
    %1670 = vmatprep.subr.mxu0 0.0
    %1671 = vmatpush1.msra.mxu0 0.0
    %1672 = vmatprep.subr.mxu0 0.0
    %1673 = vmatpush1.msra.mxu0 0.0
    %1674 = vmatprep.subr.mxu0 0.0
    %1675 = vmatpush1.msra.mxu0 0.0
    %1676 = vmatprep.subr.mxu0 0.0
    %1677 = vmatpush1.msra.mxu0 0.0
    %1678 = vmatprep.subr.mxu0 0.0
    %1679 = vmatpush1.msra.mxu0 0.0
    %1680 = vmatprep.subr.mxu0 0.0
    %1681 = vmatpush1.msra.mxu0 0.0
    %1682 = vmatprep.subr.mxu0 0.0
    %1683 = vmatpush1.msra.mxu0 0.0
    %1684 = vmatprep.subr.mxu0 0.0
    %1685 = vmatpush1.msra.mxu0 0.0
    %1686 = vmatprep.subr.mxu0 0.0
    %1687 = vmatpush1.msra.mxu0 0.0
    %1688 = vmatprep.subr.mxu0 0.0
    %1689 = vmatpush1.msra.mxu0 0.0
    %1690 = vmatprep.subr.mxu0 0.0
    %1691 = vmatpush1.msra.mxu0 %v1299
    %1692 = vmatprep.subr.mxu0 0.0
    %1693 = vmatpush1.msra.mxu0 %v1298
    %1694 = vmatprep.subr.mxu0 0.0
    %1695 = vmatpush1.msra.mxu0 %v1297
    %1696 = vmatprep.subr.mxu0 0.0
    %1697 = vmatpush1.msra.mxu0 %v1296
    %1698 = vmatprep.subr.mxu0 0.0
    %1699 = vmatpush2.msra.mxu0 0.0
    %1700 = vmatprep.subr.mxu0 0.0
    %1701 = vmatpush2.msra.mxu0 0.0
    %1702 = vmatprep.subr.mxu0 0.0
    %1703 = vmatpush2.msra.mxu0 0.0
    %1704 = vmatprep.subr.mxu0 0.0
    %1705 = vmatpush2.msra.mxu0 0.0
    %1706 = vmatprep.subr.mxu0 0.0
    %1707 = vmatpush2.msra.mxu0 0.0
    %1708 = vmatprep.subr.mxu0 0.0
    %1709 = vmatpush2.msra.mxu0 0.0
    %1710 = vmatprep.subr.mxu0 0.0
    %1711 = vmatpush2.msra.mxu0 0.0
    %1712 = vmatprep.subr.mxu0 0.0
    %1713 = vmatpush2.msra.mxu0 0.0
    %1714 = vmatprep.subr.mxu0 0.0
    %1715 = vmatpush2.msra.mxu0 0.0
    %1716 = vmatprep.subr.mxu0 0.0
    %1717 = vmatpush2.msra.mxu0 0.0
    %1718 = vmatprep.subr.mxu0 0.0
    %1719 = vmatpush2.msra.mxu0 0.0
    %1720 = vmatprep.subr.mxu0 0.0
    %1721 = vmatpush2.msra.mxu0 0.0
    %1722 = vmatprep.subr.mxu0 0.0
    %1723 = vmatpush2.msra.mxu0 0.0
    %1724 = vmatprep.subr.mxu0 0.0
    %1725 = vmatpush2.msra.mxu0 0.0
    %1726 = vmatprep.subr.mxu0 0.0
    %1727 = vmatpush2.msra.mxu0 0.0
    %1728 = vmatprep.subr.mxu0 0.0
    %1729 = vmatpush2.msra.mxu0 0.0
    %1730 = vmatprep.mubr.f32.mxu0 0.0
    %1731 = vmatmul.mubr.f32.gmra.mxu0 %v1079
    %v1732 = vpop.f32.mrf.mxu0
    %v1733 = vadd.f32 %v1314, %v1732
    %v1734 = vpop.f32.mrf.mxu0
    %1735 = vdwg.mxu0
    %1736 = vmatprep.subr.mxu0 0.0
    %1737 = vmatpush1.msra.mxu0 0.0
    %1738 = vmatprep.subr.mxu0 0.0
    %1739 = vmatpush1.msra.mxu0 0.0
    %1740 = vmatprep.subr.mxu0 0.0
    %1741 = vmatpush1.msra.mxu0 0.0
    %1742 = vmatprep.subr.mxu0 0.0
    %1743 = vmatpush1.msra.mxu0 0.0
    %1744 = vmatprep.subr.mxu0 0.0
    %1745 = vmatpush1.msra.mxu0 0.0
    %1746 = vmatprep.subr.mxu0 0.0
    %1747 = vmatpush1.msra.mxu0 0.0
    %1748 = vmatprep.subr.mxu0 0.0
    %1749 = vmatpush1.msra.mxu0 0.0
    %1750 = vmatprep.subr.mxu0 0.0
    %1751 = vmatpush1.msra.mxu0 0.0
    %1752 = vmatprep.subr.mxu0 0.0
    %1753 = vmatpush1.msra.mxu0 0.0
    %1754 = vmatprep.subr.mxu0 0.0
    %1755 = vmatpush1.msra.mxu0 0.0
    %1756 = vmatprep.subr.mxu0 0.0
    %1757 = vmatpush1.msra.mxu0 0.0
    %1758 = vmatprep.subr.mxu0 0.0
    %1759 = vmatpush1.msra.mxu0 0.0
    %1760 = vmatprep.subr.mxu0 0.0
    %1761 = vmatpush1.msra.mxu0 %v1299
    %1762 = vmatprep.subr.mxu0 0.0
    %1763 = vmatpush1.msra.mxu0 %v1298
    %1764 = vmatprep.subr.mxu0 0.0
    %1765 = vmatpush1.msra.mxu0 %v1297
    %1766 = vmatprep.subr.mxu0 0.0
    %1767 = vmatpush1.msra.mxu0 %v1296
    %1768 = vmatprep.subr.mxu0 0.0
    %1769 = vmatpush2.msra.mxu0 0.0
    %1770 = vmatprep.subr.mxu0 0.0
    %1771 = vmatpush2.msra.mxu0 0.0
    %1772 = vmatprep.subr.mxu0 0.0
    %1773 = vmatpush2.msra.mxu0 0.0
    %1774 = vmatprep.subr.mxu0 0.0
    %1775 = vmatpush2.msra.mxu0 0.0
    %1776 = vmatprep.subr.mxu0 0.0
    %1777 = vmatpush2.msra.mxu0 0.0
    %1778 = vmatprep.subr.mxu0 0.0
    %1779 = vmatpush2.msra.mxu0 0.0
    %1780 = vmatprep.subr.mxu0 0.0
    %1781 = vmatpush2.msra.mxu0 0.0
    %1782 = vmatprep.subr.mxu0 0.0
    %1783 = vmatpush2.msra.mxu0 0.0
    %1784 = vmatprep.subr.mxu0 0.0
    %1785 = vmatpush2.msra.mxu0 0.0
    %1786 = vmatprep.subr.mxu0 0.0
    %1787 = vmatpush2.msra.mxu0 0.0
    %1788 = vmatprep.subr.mxu0 0.0
    %1789 = vmatpush2.msra.mxu0 0.0
    %1790 = vmatprep.subr.mxu0 0.0
    %1791 = vmatpush2.msra.mxu0 0.0
    %1792 = vmatprep.subr.mxu0 0.0
    %1793 = vmatpush2.msra.mxu0 0.0
    %1794 = vmatprep.subr.mxu0 0.0
    %1795 = vmatpush2.msra.mxu0 0.0
    %1796 = vmatprep.subr.mxu0 0.0
    %1797 = vmatpush2.msra.mxu0 0.0
    %1798 = vmatprep.subr.mxu0 0.0
    %1799 = vmatpush2.msra.mxu0 0.0
    %1800 = vmatprep.mubr.f32.mxu0 0.0
    %1801 = vmatmul.mubr.f32.gmra.mxu0 %v1182
    %v1802 = vpop.f32.mrf.mxu0
    %v1803 = vadd.f32 %v1314, %v1802
    %v1804 = vpop.f32.mrf.mxu0
    %1805 = vdwg.mxu0
    %v1806 = vrot.slane %v1280, 6
    %1807 = vrot.lane.b32.xlu0 %v1806, 32
    %v1808 = vpop.permute.xlu0 %1807
    %v1809 = vsel %vm383, %v1808, 0
    %1811 = vmatprep.subr.mxu0 0.0
    %1812 = vmatpush1.msra.mxu0 0.0
    %1813 = vmatprep.subr.mxu0 0.0
    %1814 = vmatpush1.msra.mxu0 0.0
    %1815 = vmatprep.subr.mxu0 0.0
    %1816 = vmatpush1.msra.mxu0 0.0
    %1817 = vmatprep.subr.mxu0 0.0
    %1818 = vmatpush1.msra.mxu0 0.0
    %1819 = vmatprep.subr.mxu0 0.0
    %1820 = vmatpush1.msra.mxu0 0.0
    %1821 = vmatprep.subr.mxu0 0.0
    %1822 = vmatpush1.msra.mxu0 0.0
    %1823 = vmatprep.subr.mxu0 0.0
    %1824 = vmatpush1.msra.mxu0 0.0
    %1825 = vmatprep.subr.mxu0 0.0
    %1826 = vmatpush1.msra.mxu0 0.0
    %1827 = vmatprep.subr.mxu0 0.0
    %1828 = vmatpush1.msra.mxu0 0.0
    %1829 = vmatprep.subr.mxu0 0.0
    %1830 = vmatpush1.msra.mxu0 0.0
    %1831 = vmatprep.subr.mxu0 0.0
    %1832 = vmatpush1.msra.mxu0 0.0
    %1833 = vmatprep.subr.mxu0 0.0
    %1834 = vmatpush1.msra.mxu0 0.0
    %1835 = vmatprep.subr.mxu0 0.0
    %1836 = vmatpush1.msra.mxu0 %v1299
    %1837 = vmatprep.subr.mxu0 0.0
    %1838 = vmatpush1.msra.mxu0 %v1298
    %1839 = vmatprep.subr.mxu0 0.0
    %1840 = vmatpush1.msra.mxu0 %v1297
    %1841 = vmatprep.subr.mxu0 0.0
    %1842 = vmatpush1.msra.mxu0 %v1296
    %1843 = vmatprep.subr.mxu0 0.0
    %1844 = vmatpush2.msra.mxu0 0.0
    %1845 = vmatprep.subr.mxu0 0.0
    %1846 = vmatpush2.msra.mxu0 0.0
    %1847 = vmatprep.subr.mxu0 0.0
    %1848 = vmatpush2.msra.mxu0 0.0
    %1849 = vmatprep.subr.mxu0 0.0
    %1850 = vmatpush2.msra.mxu0 0.0
    %1851 = vmatprep.subr.mxu0 0.0
    %1852 = vmatpush2.msra.mxu0 0.0
    %1853 = vmatprep.subr.mxu0 0.0
    %1854 = vmatpush2.msra.mxu0 0.0
    %1855 = vmatprep.subr.mxu0 0.0
    %1856 = vmatpush2.msra.mxu0 0.0
    %1857 = vmatprep.subr.mxu0 0.0
    %1858 = vmatpush2.msra.mxu0 0.0
    %1859 = vmatprep.subr.mxu0 0.0
    %1860 = vmatpush2.msra.mxu0 0.0
    %1861 = vmatprep.subr.mxu0 0.0
    %1862 = vmatpush2.msra.mxu0 0.0
    %1863 = vmatprep.subr.mxu0 0.0
    %1864 = vmatpush2.msra.mxu0 0.0
    %1865 = vmatprep.subr.mxu0 0.0
    %1866 = vmatpush2.msra.mxu0 0.0
    %1867 = vmatprep.subr.mxu0 0.0
    %1868 = vmatpush2.msra.mxu0 0.0
    %1869 = vmatprep.subr.mxu0 0.0
    %1870 = vmatpush2.msra.mxu0 0.0
    %1871 = vmatprep.subr.mxu0 0.0
    %1872 = vmatpush2.msra.mxu0 0.0
    %1873 = vmatprep.subr.mxu0 0.0
    %1874 = vmatpush2.msra.mxu0 0.0
    %1875 = vmatprep.mubr.f32.mxu0 0.0
    %1876 = vmatmul.mubr.f32.gmra.mxu0 %v1809
    %v1877 = vpop.f32.mrf.mxu0
    %v1878 = vadd.f32 %v1314, %v1877
    %v1879 = vpop.f32.mrf.mxu0
    %1880 = vdwg.mxu0
    %s1881 = scalar_lea.vmem %s10, 2
    %v1882 = vld [vmem:[%s1881] sm:$0x3]
    %s1883 = scalar_lea.vmem %s11, 2
    %v1884 = vld [vmem:[%s1883] sm:$0x3]
    %v1886 = vsel %vm383, %v1882, 0
    %1888 = vmatprep.subr.mxu0 0.0
    %1889 = vmatpush1.msra.mxu0 0.0
    %1890 = vmatprep.subr.mxu0 0.0
    %1891 = vmatpush1.msra.mxu0 0.0
    %1892 = vmatprep.subr.mxu0 0.0
    %1893 = vmatpush1.msra.mxu0 0.0
    %1894 = vmatprep.subr.mxu0 0.0
    %1895 = vmatpush1.msra.mxu0 0.0
    %1896 = vmatprep.subr.mxu0 0.0
    %1897 = vmatpush1.msra.mxu0 0.0
    %1898 = vmatprep.subr.mxu0 0.0
    %1899 = vmatpush1.msra.mxu0 0.0
    %1900 = vmatprep.subr.mxu0 0.0
    %1901 = vmatpush1.msra.mxu0 0.0
    %1902 = vmatprep.subr.mxu0 0.0
    %1903 = vmatpush1.msra.mxu0 0.0
    %1904 = vmatprep.subr.mxu0 0.0
    %1905 = vmatpush1.msra.mxu0 0.0
    %1906 = vmatprep.subr.mxu0 0.0
    %1907 = vmatpush1.msra.mxu0 0.0
    %1908 = vmatprep.subr.mxu0 0.0
    %1909 = vmatpush1.msra.mxu0 0.0
    %1910 = vmatprep.subr.mxu0 0.0
    %1911 = vmatpush1.msra.mxu0 0.0
    %1912 = vmatprep.subr.mxu0 0.0
    %1913 = vmatpush1.msra.mxu0 %v1307
    %1914 = vmatprep.subr.mxu0 0.0
    %1915 = vmatpush1.msra.mxu0 %v1306
    %1916 = vmatprep.subr.mxu0 0.0
    %1917 = vmatpush1.msra.mxu0 %v1305
    %1918 = vmatprep.subr.mxu0 0.0
    %1919 = vmatpush1.msra.mxu0 %v1304
    %1920 = vmatprep.subr.mxu0 0.0
    %1921 = vmatpush2.msra.mxu0 0.0
    %1922 = vmatprep.subr.mxu0 0.0
    %1923 = vmatpush2.msra.mxu0 0.0
    %1924 = vmatprep.subr.mxu0 0.0
    %1925 = vmatpush2.msra.mxu0 0.0
    %1926 = vmatprep.subr.mxu0 0.0
    %1927 = vmatpush2.msra.mxu0 0.0
    %1928 = vmatprep.subr.mxu0 0.0
    %1929 = vmatpush2.msra.mxu0 0.0
    %1930 = vmatprep.subr.mxu0 0.0
    %1931 = vmatpush2.msra.mxu0 0.0
    %1932 = vmatprep.subr.mxu0 0.0
    %1933 = vmatpush2.msra.mxu0 0.0
    %1934 = vmatprep.subr.mxu0 0.0
    %1935 = vmatpush2.msra.mxu0 0.0
    %1936 = vmatprep.subr.mxu0 0.0
    %1937 = vmatpush2.msra.mxu0 0.0
    %1938 = vmatprep.subr.mxu0 0.0
    %1939 = vmatpush2.msra.mxu0 0.0
    %1940 = vmatprep.subr.mxu0 0.0
    %1941 = vmatpush2.msra.mxu0 0.0
    %1942 = vmatprep.subr.mxu0 0.0
    %1943 = vmatpush2.msra.mxu0 0.0
    %1944 = vmatprep.subr.mxu0 0.0
    %1945 = vmatpush2.msra.mxu0 0.0
    %1946 = vmatprep.subr.mxu0 0.0
    %1947 = vmatpush2.msra.mxu0 0.0
    %1948 = vmatprep.subr.mxu0 0.0
    %1949 = vmatpush2.msra.mxu0 0.0
    %1950 = vmatprep.subr.mxu0 0.0
    %1951 = vmatpush2.msra.mxu0 0.0
    %1952 = vmatprep.mubr.f32.mxu0 0.0
    %1953 = vmatmul.mubr.f32.gmra.mxu0 %v1886
    %v1954 = vpop.f32.mrf.mxu0
    %v1955 = vadd.f32 0.0, %v1954
    %v1956 = vpop.f32.mrf.mxu0
    %1957 = vdwg.mxu0
    %v1958 = vadd.f32 %v1383, %v1955
    %v1959 = vtanh.pop %v1958
    %v1960 = vmul.f32 %v1959, 0.5
    %v1961 = vadd.f32 %v1960, 0.5
    %1963 = vrot.lane.b32.xlu0 %v1884, 32
    %v1964 = vpop.permute.xlu0 %1963
    %v1966 = vmul.f32 %v1961, %v1964
    %1968 = vrot.lane.b32.xlu0 %v1959, 64
    %v1969 = vpop.permute.xlu0 %1968
    %v1971 = vmul.f32 %v1961, %v1969
    %1973 = vrot.lane.b32.xlu0 %v1971, 32
    %v1974 = vpop.permute.xlu0 %1973
    %v1976 = vadd.f32 %v1966, %v1974
    %v1977 = vtanh.pop %v1976
    %1979 = vrot.lane.b32.xlu0 %v1977, 64
    %v1980 = vpop.permute.xlu0 %1979
    %v1982 = vmul.f32 %v1961, %v1980
    %1984 = vrot.lane.b32.xlu0 %v1982, 32
    %v1985 = vpop.permute.xlu0 %1984
    %v1986 = vsel %vm383, %v1985, 0
    %1988 = vmatprep.subr.mxu0 0.0
    %1989 = vmatpush1.msra.mxu0 0.0
    %1990 = vmatprep.subr.mxu0 0.0
    %1991 = vmatpush1.msra.mxu0 0.0
    %1992 = vmatprep.subr.mxu0 0.0
    %1993 = vmatpush1.msra.mxu0 0.0
    %1994 = vmatprep.subr.mxu0 0.0
    %1995 = vmatpush1.msra.mxu0 0.0
    %1996 = vmatprep.subr.mxu0 0.0
    %1997 = vmatpush1.msra.mxu0 0.0
    %1998 = vmatprep.subr.mxu0 0.0
    %1999 = vmatpush1.msra.mxu0 0.0
    %2000 = vmatprep.subr.mxu0 0.0
    %2001 = vmatpush1.msra.mxu0 0.0
    %2002 = vmatprep.subr.mxu0 0.0
    %2003 = vmatpush1.msra.mxu0 0.0
    %2004 = vmatprep.subr.mxu0 0.0
    %2005 = vmatpush1.msra.mxu0 0.0
    %2006 = vmatprep.subr.mxu0 0.0
    %2007 = vmatpush1.msra.mxu0 0.0
    %2008 = vmatprep.subr.mxu0 0.0
    %2009 = vmatpush1.msra.mxu0 0.0
    %2010 = vmatprep.subr.mxu0 0.0
    %2011 = vmatpush1.msra.mxu0 0.0
    %2012 = vmatprep.subr.mxu0 0.0
    %2013 = vmatpush1.msra.mxu0 %v1307
    %2014 = vmatprep.subr.mxu0 0.0
    %2015 = vmatpush1.msra.mxu0 %v1306
    %2016 = vmatprep.subr.mxu0 0.0
    %2017 = vmatpush1.msra.mxu0 %v1305
    %2018 = vmatprep.subr.mxu0 0.0
    %2019 = vmatpush1.msra.mxu0 %v1304
    %2020 = vmatprep.subr.mxu0 0.0
    %2021 = vmatpush2.msra.mxu0 0.0
    %2022 = vmatprep.subr.mxu0 0.0
    %2023 = vmatpush2.msra.mxu0 0.0
    %2024 = vmatprep.subr.mxu0 0.0
    %2025 = vmatpush2.msra.mxu0 0.0
    %2026 = vmatprep.subr.mxu0 0.0
    %2027 = vmatpush2.msra.mxu0 0.0
    %2028 = vmatprep.subr.mxu0 0.0
    %2029 = vmatpush2.msra.mxu0 0.0
    %2030 = vmatprep.subr.mxu0 0.0
    %2031 = vmatpush2.msra.mxu0 0.0
    %2032 = vmatprep.subr.mxu0 0.0
    %2033 = vmatpush2.msra.mxu0 0.0
    %2034 = vmatprep.subr.mxu0 0.0
    %2035 = vmatpush2.msra.mxu0 0.0
    %2036 = vmatprep.subr.mxu0 0.0
    %2037 = vmatpush2.msra.mxu0 0.0
    %2038 = vmatprep.subr.mxu0 0.0
    %2039 = vmatpush2.msra.mxu0 0.0
    %2040 = vmatprep.subr.mxu0 0.0
    %2041 = vmatpush2.msra.mxu0 0.0
    %2042 = vmatprep.subr.mxu0 0.0
    %2043 = vmatpush2.msra.mxu0 0.0
    %2044 = vmatprep.subr.mxu0 0.0
    %2045 = vmatpush2.msra.mxu0 0.0
    %2046 = vmatprep.subr.mxu0 0.0
    %2047 = vmatpush2.msra.mxu0 0.0
    %2048 = vmatprep.subr.mxu0 0.0
    %2049 = vmatpush2.msra.mxu0 0.0
    %2050 = vmatprep.subr.mxu0 0.0
    %2051 = vmatpush2.msra.mxu0 0.0
    %2052 = vmatprep.mubr.f32.mxu0 0.0
    %2053 = vmatmul.mubr.f32.gmra.mxu0 %v1986
    %v2054 = vpop.f32.mrf.mxu0
    %v2055 = vadd.f32 0.0, %v2054
    %v2056 = vpop.f32.mrf.mxu0
    %2057 = vdwg.mxu0
    %v2058 = vadd.f32 %v1453, %v2055
    %v2059 = vtanh.pop %v2058
    %v2060 = vmul.f32 %v2059, 0.5
    %v2061 = vadd.f32 %v2060, 0.5
    %v2062 = vmul.f32 %v2061, %v1976
    %2064 = vrot.lane.b32.xlu0 %v2059, 64
    %v2065 = vpop.permute.xlu0 %2064
    %v2067 = vmul.f32 %v2061, %v2065
    %2069 = vrot.lane.b32.xlu0 %v2067, 32
    %v2070 = vpop.permute.xlu0 %2069
    %v2072 = vadd.f32 %v2062, %v2070
    %v2073 = vtanh.pop %v2072
    %2075 = vrot.lane.b32.xlu0 %v2073, 64
    %v2076 = vpop.permute.xlu0 %2075
    %v2078 = vmul.f32 %v2061, %v2076
    %2080 = vrot.lane.b32.xlu0 %v2078, 32
    %v2081 = vpop.permute.xlu0 %2080
    %v2082 = vsel %vm383, %v2081, 0
    %2084 = vmatprep.subr.mxu0 0.0
    %2085 = vmatpush1.msra.mxu0 0.0
    %2086 = vmatprep.subr.mxu0 0.0
    %2087 = vmatpush1.msra.mxu0 0.0
    %2088 = vmatprep.subr.mxu0 0.0
    %2089 = vmatpush1.msra.mxu0 0.0
    %2090 = vmatprep.subr.mxu0 0.0
    %2091 = vmatpush1.msra.mxu0 0.0
    %2092 = vmatprep.subr.mxu0 0.0
    %2093 = vmatpush1.msra.mxu0 0.0
    %2094 = vmatprep.subr.mxu0 0.0
    %2095 = vmatpush1.msra.mxu0 0.0
    %2096 = vmatprep.subr.mxu0 0.0
    %2097 = vmatpush1.msra.mxu0 0.0
    %2098 = vmatprep.subr.mxu0 0.0
    %2099 = vmatpush1.msra.mxu0 0.0
    %2100 = vmatprep.subr.mxu0 0.0
    %2101 = vmatpush1.msra.mxu0 0.0
    %2102 = vmatprep.subr.mxu0 0.0
    %2103 = vmatpush1.msra.mxu0 0.0
    %2104 = vmatprep.subr.mxu0 0.0
    %2105 = vmatpush1.msra.mxu0 0.0
    %2106 = vmatprep.subr.mxu0 0.0
    %2107 = vmatpush1.msra.mxu0 0.0
    %2108 = vmatprep.subr.mxu0 0.0
    %2109 = vmatpush1.msra.mxu0 %v1307
    %2110 = vmatprep.subr.mxu0 0.0
    %2111 = vmatpush1.msra.mxu0 %v1306
    %2112 = vmatprep.subr.mxu0 0.0
    %2113 = vmatpush1.msra.mxu0 %v1305
    %2114 = vmatprep.subr.mxu0 0.0
    %2115 = vmatpush1.msra.mxu0 %v1304
    %2116 = vmatprep.subr.mxu0 0.0
    %2117 = vmatpush2.msra.mxu0 0.0
    %2118 = vmatprep.subr.mxu0 0.0
    %2119 = vmatpush2.msra.mxu0 0.0
    %2120 = vmatprep.subr.mxu0 0.0
    %2121 = vmatpush2.msra.mxu0 0.0
    %2122 = vmatprep.subr.mxu0 0.0
    %2123 = vmatpush2.msra.mxu0 0.0
    %2124 = vmatprep.subr.mxu0 0.0
    %2125 = vmatpush2.msra.mxu0 0.0
    %2126 = vmatprep.subr.mxu0 0.0
    %2127 = vmatpush2.msra.mxu0 0.0
    %2128 = vmatprep.subr.mxu0 0.0
    %2129 = vmatpush2.msra.mxu0 0.0
    %2130 = vmatprep.subr.mxu0 0.0
    %2131 = vmatpush2.msra.mxu0 0.0
    %2132 = vmatprep.subr.mxu0 0.0
    %2133 = vmatpush2.msra.mxu0 0.0
    %2134 = vmatprep.subr.mxu0 0.0
    %2135 = vmatpush2.msra.mxu0 0.0
    %2136 = vmatprep.subr.mxu0 0.0
    %2137 = vmatpush2.msra.mxu0 0.0
    %2138 = vmatprep.subr.mxu0 0.0
    %2139 = vmatpush2.msra.mxu0 0.0
    %2140 = vmatprep.subr.mxu0 0.0
    %2141 = vmatpush2.msra.mxu0 0.0
    %2142 = vmatprep.subr.mxu0 0.0
    %2143 = vmatpush2.msra.mxu0 0.0
    %2144 = vmatprep.subr.mxu0 0.0
    %2145 = vmatpush2.msra.mxu0 0.0
    %2146 = vmatprep.subr.mxu0 0.0
    %2147 = vmatpush2.msra.mxu0 0.0
    %2148 = vmatprep.mubr.f32.mxu0 0.0
    %2149 = vmatmul.mubr.f32.gmra.mxu0 %v2082
    %v2150 = vpop.f32.mrf.mxu0
    %v2151 = vadd.f32 0.0, %v2150
    %v2152 = vpop.f32.mrf.mxu0
    %2153 = vdwg.mxu0
    %v2154 = vadd.f32 %v1523, %v2151
    %v2155 = vtanh.pop %v2154
    %v2156 = vmul.f32 %v2155, 0.5
    %v2157 = vadd.f32 %v2156, 0.5
    %v2158 = vmul.f32 %v2157, %v2072
    %2160 = vrot.lane.b32.xlu0 %v2155, 64
    %v2161 = vpop.permute.xlu0 %2160
    %v2163 = vmul.f32 %v2157, %v2161
    %2165 = vrot.lane.b32.xlu0 %v2163, 32
    %v2166 = vpop.permute.xlu0 %2165
    %v2168 = vadd.f32 %v2158, %v2166
    %v2169 = vtanh.pop %v2168
    %2171 = vrot.lane.b32.xlu0 %v2169, 64
    %v2172 = vpop.permute.xlu0 %2171
    %v2174 = vmul.f32 %v2157, %v2172
    %2176 = vrot.lane.b32.xlu0 %v2174, 32
    %v2177 = vpop.permute.xlu0 %2176
    %v2178 = vsel %vm383, %v2177, 0
    %2180 = vmatprep.subr.mxu0 0.0
    %2181 = vmatpush1.msra.mxu0 0.0
    %2182 = vmatprep.subr.mxu0 0.0
    %2183 = vmatpush1.msra.mxu0 0.0
    %2184 = vmatprep.subr.mxu0 0.0
    %2185 = vmatpush1.msra.mxu0 0.0
    %2186 = vmatprep.subr.mxu0 0.0
    %2187 = vmatpush1.msra.mxu0 0.0
    %2188 = vmatprep.subr.mxu0 0.0
    %2189 = vmatpush1.msra.mxu0 0.0
    %2190 = vmatprep.subr.mxu0 0.0
    %2191 = vmatpush1.msra.mxu0 0.0
    %2192 = vmatprep.subr.mxu0 0.0
    %2193 = vmatpush1.msra.mxu0 0.0
    %2194 = vmatprep.subr.mxu0 0.0
    %2195 = vmatpush1.msra.mxu0 0.0
    %2196 = vmatprep.subr.mxu0 0.0
    %2197 = vmatpush1.msra.mxu0 0.0
    %2198 = vmatprep.subr.mxu0 0.0
    %2199 = vmatpush1.msra.mxu0 0.0
    %2200 = vmatprep.subr.mxu0 0.0
    %2201 = vmatpush1.msra.mxu0 0.0
    %2202 = vmatprep.subr.mxu0 0.0
    %2203 = vmatpush1.msra.mxu0 0.0
    %2204 = vmatprep.subr.mxu0 0.0
    %2205 = vmatpush1.msra.mxu0 %v1307
    %2206 = vmatprep.subr.mxu0 0.0
    %2207 = vmatpush1.msra.mxu0 %v1306
    %2208 = vmatprep.subr.mxu0 0.0
    %2209 = vmatpush1.msra.mxu0 %v1305
    %2210 = vmatprep.subr.mxu0 0.0
    %2211 = vmatpush1.msra.mxu0 %v1304
    %2212 = vmatprep.subr.mxu0 0.0
    %2213 = vmatpush2.msra.mxu0 0.0
    %2214 = vmatprep.subr.mxu0 0.0
    %2215 = vmatpush2.msra.mxu0 0.0
    %2216 = vmatprep.subr.mxu0 0.0
    %2217 = vmatpush2.msra.mxu0 0.0
    %2218 = vmatprep.subr.mxu0 0.0
    %2219 = vmatpush2.msra.mxu0 0.0
    %2220 = vmatprep.subr.mxu0 0.0
    %2221 = vmatpush2.msra.mxu0 0.0
    %2222 = vmatprep.subr.mxu0 0.0
    %2223 = vmatpush2.msra.mxu0 0.0
    %2224 = vmatprep.subr.mxu0 0.0
    %2225 = vmatpush2.msra.mxu0 0.0
    %2226 = vmatprep.subr.mxu0 0.0
    %2227 = vmatpush2.msra.mxu0 0.0
    %2228 = vmatprep.subr.mxu0 0.0
    %2229 = vmatpush2.msra.mxu0 0.0
    %2230 = vmatprep.subr.mxu0 0.0
    %2231 = vmatpush2.msra.mxu0 0.0
    %2232 = vmatprep.subr.mxu0 0.0
    %2233 = vmatpush2.msra.mxu0 0.0
    %2234 = vmatprep.subr.mxu0 0.0
    %2235 = vmatpush2.msra.mxu0 0.0
    %2236 = vmatprep.subr.mxu0 0.0
    %2237 = vmatpush2.msra.mxu0 0.0
    %2238 = vmatprep.subr.mxu0 0.0
    %2239 = vmatpush2.msra.mxu0 0.0
    %2240 = vmatprep.subr.mxu0 0.0
    %2241 = vmatpush2.msra.mxu0 0.0
    %2242 = vmatprep.subr.mxu0 0.0
    %2243 = vmatpush2.msra.mxu0 0.0
    %2244 = vmatprep.mubr.f32.mxu0 0.0
    %2245 = vmatmul.mubr.f32.gmra.mxu0 %v2178
    %v2246 = vpop.f32.mrf.mxu0
    %v2247 = vadd.f32 0.0, %v2246
    %v2248 = vpop.f32.mrf.mxu0
    %2249 = vdwg.mxu0
    %v2250 = vadd.f32 %v1593, %v2247
    %v2251 = vtanh.pop %v2250
    %v2252 = vmul.f32 %v2251, 0.5
    %v2253 = vadd.f32 %v2252, 0.5
    %v2254 = vmul.f32 %v2253, %v2168
    %2256 = vrot.lane.b32.xlu0 %v2251, 64
    %v2257 = vpop.permute.xlu0 %2256
    %v2259 = vmul.f32 %v2253, %v2257
    %2261 = vrot.lane.b32.xlu0 %v2259, 32
    %v2262 = vpop.permute.xlu0 %2261
    %v2264 = vadd.f32 %v2254, %v2262
    %v2265 = vtanh.pop %v2264
    %2267 = vrot.lane.b32.xlu0 %v2265, 64
    %v2268 = vpop.permute.xlu0 %2267
    %v2270 = vmul.f32 %v2253, %v2268
    %2272 = vrot.lane.b32.xlu0 %v2270, 32
    %v2273 = vpop.permute.xlu0 %2272
    %v2274 = vsel %vm383, %v2273, 0
    %2276 = vmatprep.subr.mxu0 0.0
    %2277 = vmatpush1.msra.mxu0 0.0
    %2278 = vmatprep.subr.mxu0 0.0
    %2279 = vmatpush1.msra.mxu0 0.0
    %2280 = vmatprep.subr.mxu0 0.0
    %2281 = vmatpush1.msra.mxu0 0.0
    %2282 = vmatprep.subr.mxu0 0.0
    %2283 = vmatpush1.msra.mxu0 0.0
    %2284 = vmatprep.subr.mxu0 0.0
    %2285 = vmatpush1.msra.mxu0 0.0
    %2286 = vmatprep.subr.mxu0 0.0
    %2287 = vmatpush1.msra.mxu0 0.0
    %2288 = vmatprep.subr.mxu0 0.0
    %2289 = vmatpush1.msra.mxu0 0.0
    %2290 = vmatprep.subr.mxu0 0.0
    %2291 = vmatpush1.msra.mxu0 0.0
    %2292 = vmatprep.subr.mxu0 0.0
    %2293 = vmatpush1.msra.mxu0 0.0
    %2294 = vmatprep.subr.mxu0 0.0
    %2295 = vmatpush1.msra.mxu0 0.0
    %2296 = vmatprep.subr.mxu0 0.0
    %2297 = vmatpush1.msra.mxu0 0.0
    %2298 = vmatprep.subr.mxu0 0.0
    %2299 = vmatpush1.msra.mxu0 0.0
    %2300 = vmatprep.subr.mxu0 0.0
    %2301 = vmatpush1.msra.mxu0 %v1307
    %2302 = vmatprep.subr.mxu0 0.0
    %2303 = vmatpush1.msra.mxu0 %v1306
    %2304 = vmatprep.subr.mxu0 0.0
    %2305 = vmatpush1.msra.mxu0 %v1305
    %2306 = vmatprep.subr.mxu0 0.0
    %2307 = vmatpush1.msra.mxu0 %v1304
    %2308 = vmatprep.subr.mxu0 0.0
    %2309 = vmatpush2.msra.mxu0 0.0
    %2310 = vmatprep.subr.mxu0 0.0
    %2311 = vmatpush2.msra.mxu0 0.0
    %2312 = vmatprep.subr.mxu0 0.0
    %2313 = vmatpush2.msra.mxu0 0.0
    %2314 = vmatprep.subr.mxu0 0.0
    %2315 = vmatpush2.msra.mxu0 0.0
    %2316 = vmatprep.subr.mxu0 0.0
    %2317 = vmatpush2.msra.mxu0 0.0
    %2318 = vmatprep.subr.mxu0 0.0
    %2319 = vmatpush2.msra.mxu0 0.0
    %2320 = vmatprep.subr.mxu0 0.0
    %2321 = vmatpush2.msra.mxu0 0.0
    %2322 = vmatprep.subr.mxu0 0.0
    %2323 = vmatpush2.msra.mxu0 0.0
    %2324 = vmatprep.subr.mxu0 0.0
    %2325 = vmatpush2.msra.mxu0 0.0
    %2326 = vmatprep.subr.mxu0 0.0
    %2327 = vmatpush2.msra.mxu0 0.0
    %2328 = vmatprep.subr.mxu0 0.0
    %2329 = vmatpush2.msra.mxu0 0.0
    %2330 = vmatprep.subr.mxu0 0.0
    %2331 = vmatpush2.msra.mxu0 0.0
    %2332 = vmatprep.subr.mxu0 0.0
    %2333 = vmatpush2.msra.mxu0 0.0
    %2334 = vmatprep.subr.mxu0 0.0
    %2335 = vmatpush2.msra.mxu0 0.0
    %2336 = vmatprep.subr.mxu0 0.0
    %2337 = vmatpush2.msra.mxu0 0.0
    %2338 = vmatprep.subr.mxu0 0.0
    %2339 = vmatpush2.msra.mxu0 0.0
    %2340 = vmatprep.mubr.f32.mxu0 0.0
    %2341 = vmatmul.mubr.f32.gmra.mxu0 %v2274
    %v2342 = vpop.f32.mrf.mxu0
    %v2343 = vadd.f32 0.0, %v2342
    %v2344 = vpop.f32.mrf.mxu0
    %2345 = vdwg.mxu0
    %v2346 = vadd.f32 %v1663, %v2343
    %v2347 = vtanh.pop %v2346
    %v2348 = vmul.f32 %v2347, 0.5
    %v2349 = vadd.f32 %v2348, 0.5
    %v2350 = vmul.f32 %v2349, %v2264
    %2352 = vrot.lane.b32.xlu0 %v2347, 64
    %v2353 = vpop.permute.xlu0 %2352
    %v2355 = vmul.f32 %v2349, %v2353
    %2357 = vrot.lane.b32.xlu0 %v2355, 32
    %v2358 = vpop.permute.xlu0 %2357
    %v2360 = vadd.f32 %v2350, %v2358
    %v2361 = vtanh.pop %v2360
    %2363 = vrot.lane.b32.xlu0 %v2361, 64
    %v2364 = vpop.permute.xlu0 %2363
    %v2366 = vmul.f32 %v2349, %v2364
    %2368 = vrot.lane.b32.xlu0 %v2366, 32
    %v2369 = vpop.permute.xlu0 %2368
    %v2370 = vsel %vm383, %v2369, 0
    %2372 = vmatprep.subr.mxu0 0.0
    %2373 = vmatpush1.msra.mxu0 0.0
    %2374 = vmatprep.subr.mxu0 0.0
    %2375 = vmatpush1.msra.mxu0 0.0
    %2376 = vmatprep.subr.mxu0 0.0
    %2377 = vmatpush1.msra.mxu0 0.0
    %2378 = vmatprep.subr.mxu0 0.0
    %2379 = vmatpush1.msra.mxu0 0.0
    %2380 = vmatprep.subr.mxu0 0.0
    %2381 = vmatpush1.msra.mxu0 0.0
    %2382 = vmatprep.subr.mxu0 0.0
    %2383 = vmatpush1.msra.mxu0 0.0
    %2384 = vmatprep.subr.mxu0 0.0
    %2385 = vmatpush1.msra.mxu0 0.0
    %2386 = vmatprep.subr.mxu0 0.0
    %2387 = vmatpush1.msra.mxu0 0.0
    %2388 = vmatprep.subr.mxu0 0.0
    %2389 = vmatpush1.msra.mxu0 0.0
    %2390 = vmatprep.subr.mxu0 0.0
    %2391 = vmatpush1.msra.mxu0 0.0
    %2392 = vmatprep.subr.mxu0 0.0
    %2393 = vmatpush1.msra.mxu0 0.0
    %2394 = vmatprep.subr.mxu0 0.0
    %2395 = vmatpush1.msra.mxu0 0.0
    %2396 = vmatprep.subr.mxu0 0.0
    %2397 = vmatpush1.msra.mxu0 %v1307
    %2398 = vmatprep.subr.mxu0 0.0
    %2399 = vmatpush1.msra.mxu0 %v1306
    %2400 = vmatprep.subr.mxu0 0.0
    %2401 = vmatpush1.msra.mxu0 %v1305
    %2402 = vmatprep.subr.mxu0 0.0
    %2403 = vmatpush1.msra.mxu0 %v1304
    %2404 = vmatprep.subr.mxu0 0.0
    %2405 = vmatpush2.msra.mxu0 0.0
    %2406 = vmatprep.subr.mxu0 0.0
    %2407 = vmatpush2.msra.mxu0 0.0
    %2408 = vmatprep.subr.mxu0 0.0
    %2409 = vmatpush2.msra.mxu0 0.0
    %2410 = vmatprep.subr.mxu0 0.0
    %2411 = vmatpush2.msra.mxu0 0.0
    %2412 = vmatprep.subr.mxu0 0.0
    %2413 = vmatpush2.msra.mxu0 0.0
    %2414 = vmatprep.subr.mxu0 0.0
    %2415 = vmatpush2.msra.mxu0 0.0
    %2416 = vmatprep.subr.mxu0 0.0
    %2417 = vmatpush2.msra.mxu0 0.0
    %2418 = vmatprep.subr.mxu0 0.0
    %2419 = vmatpush2.msra.mxu0 0.0
    %2420 = vmatprep.subr.mxu0 0.0
    %2421 = vmatpush2.msra.mxu0 0.0
    %2422 = vmatprep.subr.mxu0 0.0
    %2423 = vmatpush2.msra.mxu0 0.0
    %2424 = vmatprep.subr.mxu0 0.0
    %2425 = vmatpush2.msra.mxu0 0.0
    %2426 = vmatprep.subr.mxu0 0.0
    %2427 = vmatpush2.msra.mxu0 0.0
    %2428 = vmatprep.subr.mxu0 0.0
    %2429 = vmatpush2.msra.mxu0 0.0
    %2430 = vmatprep.subr.mxu0 0.0
    %2431 = vmatpush2.msra.mxu0 0.0
    %2432 = vmatprep.subr.mxu0 0.0
    %2433 = vmatpush2.msra.mxu0 0.0
    %2434 = vmatprep.subr.mxu0 0.0
    %2435 = vmatpush2.msra.mxu0 0.0
    %2436 = vmatprep.mubr.f32.mxu0 0.0
    %2437 = vmatmul.mubr.f32.gmra.mxu0 %v2370
    %v2438 = vpop.f32.mrf.mxu0
    %v2439 = vadd.f32 0.0, %v2438
    %v2440 = vpop.f32.mrf.mxu0
    %2441 = vdwg.mxu0
    %v2442 = vadd.f32 %v1733, %v2439
    %v2443 = vtanh.pop %v2442
    %v2444 = vmul.f32 %v2443, 0.5
    %v2445 = vadd.f32 %v2444, 0.5
    %v2446 = vmul.f32 %v2445, %v2360
    %2448 = vrot.lane.b32.xlu0 %v2443, 64
    %v2449 = vpop.permute.xlu0 %2448
    %v2451 = vmul.f32 %v2445, %v2449
    %2453 = vrot.lane.b32.xlu0 %v2451, 32
    %v2454 = vpop.permute.xlu0 %2453
    %v2456 = vadd.f32 %v2446, %v2454
    %v2457 = vtanh.pop %v2456
    %2459 = vrot.lane.b32.xlu0 %v2457, 64
    %v2460 = vpop.permute.xlu0 %2459
    %v2462 = vmul.f32 %v2445, %v2460
    %2464 = vrot.lane.b32.xlu0 %v2462, 32
    %v2465 = vpop.permute.xlu0 %2464
    %v2466 = vsel %vm383, %v2465, 0
    %2468 = vmatprep.subr.mxu0 0.0
    %2469 = vmatpush1.msra.mxu0 0.0
    %2470 = vmatprep.subr.mxu0 0.0
    %2471 = vmatpush1.msra.mxu0 0.0
    %2472 = vmatprep.subr.mxu0 0.0
    %2473 = vmatpush1.msra.mxu0 0.0
    %2474 = vmatprep.subr.mxu0 0.0
    %2475 = vmatpush1.msra.mxu0 0.0
    %2476 = vmatprep.subr.mxu0 0.0
    %2477 = vmatpush1.msra.mxu0 0.0
    %2478 = vmatprep.subr.mxu0 0.0
    %2479 = vmatpush1.msra.mxu0 0.0
    %2480 = vmatprep.subr.mxu0 0.0
    %2481 = vmatpush1.msra.mxu0 0.0
    %2482 = vmatprep.subr.mxu0 0.0
    %2483 = vmatpush1.msra.mxu0 0.0
    %2484 = vmatprep.subr.mxu0 0.0
    %2485 = vmatpush1.msra.mxu0 0.0
    %2486 = vmatprep.subr.mxu0 0.0
    %2487 = vmatpush1.msra.mxu0 0.0
    %2488 = vmatprep.subr.mxu0 0.0
    %2489 = vmatpush1.msra.mxu0 0.0
    %2490 = vmatprep.subr.mxu0 0.0
    %2491 = vmatpush1.msra.mxu0 0.0
    %2492 = vmatprep.subr.mxu0 0.0
    %2493 = vmatpush1.msra.mxu0 %v1307
    %2494 = vmatprep.subr.mxu0 0.0
    %2495 = vmatpush1.msra.mxu0 %v1306
    %2496 = vmatprep.subr.mxu0 0.0
    %2497 = vmatpush1.msra.mxu0 %v1305
    %2498 = vmatprep.subr.mxu0 0.0
    %2499 = vmatpush1.msra.mxu0 %v1304
    %2500 = vmatprep.subr.mxu0 0.0
    %2501 = vmatpush2.msra.mxu0 0.0
    %2502 = vmatprep.subr.mxu0 0.0
    %2503 = vmatpush2.msra.mxu0 0.0
    %2504 = vmatprep.subr.mxu0 0.0
    %2505 = vmatpush2.msra.mxu0 0.0
    %2506 = vmatprep.subr.mxu0 0.0
    %2507 = vmatpush2.msra.mxu0 0.0
    %2508 = vmatprep.subr.mxu0 0.0
    %2509 = vmatpush2.msra.mxu0 0.0
    %2510 = vmatprep.subr.mxu0 0.0
    %2511 = vmatpush2.msra.mxu0 0.0
    %2512 = vmatprep.subr.mxu0 0.0
    %2513 = vmatpush2.msra.mxu0 0.0
    %2514 = vmatprep.subr.mxu0 0.0
    %2515 = vmatpush2.msra.mxu0 0.0
    %2516 = vmatprep.subr.mxu0 0.0
    %2517 = vmatpush2.msra.mxu0 0.0
    %2518 = vmatprep.subr.mxu0 0.0
    %2519 = vmatpush2.msra.mxu0 0.0
    %2520 = vmatprep.subr.mxu0 0.0
    %2521 = vmatpush2.msra.mxu0 0.0
    %2522 = vmatprep.subr.mxu0 0.0
    %2523 = vmatpush2.msra.mxu0 0.0
    %2524 = vmatprep.subr.mxu0 0.0
    %2525 = vmatpush2.msra.mxu0 0.0
    %2526 = vmatprep.subr.mxu0 0.0
    %2527 = vmatpush2.msra.mxu0 0.0
    %2528 = vmatprep.subr.mxu0 0.0
    %2529 = vmatpush2.msra.mxu0 0.0
    %2530 = vmatprep.subr.mxu0 0.0
    %2531 = vmatpush2.msra.mxu0 0.0
    %2532 = vmatprep.mubr.f32.mxu0 0.0
    %2533 = vmatmul.mubr.f32.gmra.mxu0 %v2466
    %v2534 = vpop.f32.mrf.mxu0
    %v2535 = vadd.f32 0.0, %v2534
    %v2536 = vpop.f32.mrf.mxu0
    %2537 = vdwg.mxu0
    %v2538 = vadd.f32 %v1803, %v2535
    %v2539 = vtanh.pop %v2538
    %v2540 = vmul.f32 %v2539, 0.5
    %v2541 = vadd.f32 %v2540, 0.5
    %v2542 = vmul.f32 %v2541, %v2456
    %2544 = vrot.lane.b32.xlu0 %v2539, 64
    %v2545 = vpop.permute.xlu0 %2544
    %v2547 = vmul.f32 %v2541, %v2545
    %2549 = vrot.lane.b32.xlu0 %v2547, 32
    %v2550 = vpop.permute.xlu0 %2549
    %v2552 = vadd.f32 %v2542, %v2550
    %v2553 = vtanh.pop %v2552
    %2555 = vrot.lane.b32.xlu0 %v2553, 64
    %v2556 = vpop.permute.xlu0 %2555
    %v2558 = vmul.f32 %v2541, %v2556
    %2560 = vrot.lane.b32.xlu0 %v2558, 32
    %v2561 = vpop.permute.xlu0 %2560
    %v2562 = vsel %vm383, %v2561, 0
    %2564 = vmatprep.subr.mxu0 0.0
    %2565 = vmatpush1.msra.mxu0 0.0
    %2566 = vmatprep.subr.mxu0 0.0
    %2567 = vmatpush1.msra.mxu0 0.0
    %2568 = vmatprep.subr.mxu0 0.0
    %2569 = vmatpush1.msra.mxu0 0.0
    %2570 = vmatprep.subr.mxu0 0.0
    %2571 = vmatpush1.msra.mxu0 0.0
    %2572 = vmatprep.subr.mxu0 0.0
    %2573 = vmatpush1.msra.mxu0 0.0
    %2574 = vmatprep.subr.mxu0 0.0
    %2575 = vmatpush1.msra.mxu0 0.0
    %2576 = vmatprep.subr.mxu0 0.0
    %2577 = vmatpush1.msra.mxu0 0.0
    %2578 = vmatprep.subr.mxu0 0.0
    %2579 = vmatpush1.msra.mxu0 0.0
    %2580 = vmatprep.subr.mxu0 0.0
    %2581 = vmatpush1.msra.mxu0 0.0
    %2582 = vmatprep.subr.mxu0 0.0
    %2583 = vmatpush1.msra.mxu0 0.0
    %2584 = vmatprep.subr.mxu0 0.0
    %2585 = vmatpush1.msra.mxu0 0.0
    %2586 = vmatprep.subr.mxu0 0.0
    %2587 = vmatpush1.msra.mxu0 0.0
    %2588 = vmatprep.subr.mxu0 0.0
    %2589 = vmatpush1.msra.mxu0 %v1307
    %2590 = vmatprep.subr.mxu0 0.0
    %2591 = vmatpush1.msra.mxu0 %v1306
    %2592 = vmatprep.subr.mxu0 0.0
    %2593 = vmatpush1.msra.mxu0 %v1305
    %2594 = vmatprep.subr.mxu0 0.0
    %2595 = vmatpush1.msra.mxu0 %v1304
    %2596 = vmatprep.subr.mxu0 0.0
    %2597 = vmatpush2.msra.mxu0 0.0
    %2598 = vmatprep.subr.mxu0 0.0
    %2599 = vmatpush2.msra.mxu0 0.0
    %2600 = vmatprep.subr.mxu0 0.0
    %2601 = vmatpush2.msra.mxu0 0.0
    %2602 = vmatprep.subr.mxu0 0.0
    %2603 = vmatpush2.msra.mxu0 0.0
    %2604 = vmatprep.subr.mxu0 0.0
    %2605 = vmatpush2.msra.mxu0 0.0
    %2606 = vmatprep.subr.mxu0 0.0
    %2607 = vmatpush2.msra.mxu0 0.0
    %2608 = vmatprep.subr.mxu0 0.0
    %2609 = vmatpush2.msra.mxu0 0.0
    %2610 = vmatprep.subr.mxu0 0.0
    %2611 = vmatpush2.msra.mxu0 0.0
    %2612 = vmatprep.subr.mxu0 0.0
    %2613 = vmatpush2.msra.mxu0 0.0
    %2614 = vmatprep.subr.mxu0 0.0
    %2615 = vmatpush2.msra.mxu0 0.0
    %2616 = vmatprep.subr.mxu0 0.0
    %2617 = vmatpush2.msra.mxu0 0.0
    %2618 = vmatprep.subr.mxu0 0.0
    %2619 = vmatpush2.msra.mxu0 0.0
    %2620 = vmatprep.subr.mxu0 0.0
    %2621 = vmatpush2.msra.mxu0 0.0
    %2622 = vmatprep.subr.mxu0 0.0
    %2623 = vmatpush2.msra.mxu0 0.0
    %2624 = vmatprep.subr.mxu0 0.0
    %2625 = vmatpush2.msra.mxu0 0.0
    %2626 = vmatprep.subr.mxu0 0.0
    %2627 = vmatpush2.msra.mxu0 0.0
    %2628 = vmatprep.mubr.f32.mxu0 0.0
    %2629 = vmatmul.mubr.f32.gmra.mxu0 %v2562
    %v2630 = vpop.f32.mrf.mxu0
    %v2631 = vadd.f32 0.0, %v2630
    %v2632 = vpop.f32.mrf.mxu0
    %2633 = vdwg.mxu0
    %v2634 = vadd.f32 %v1878, %v2631
    %v2635 = vtanh.pop %v2634
    %v2636 = vmul.f32 %v2635, 0.5
    %v2637 = vadd.f32 %v2636, 0.5
    %v2638 = vmul.f32 %v2637, %v2552
    %2640 = vrot.lane.b32.xlu0 %v2635, 64
    %v2641 = vpop.permute.xlu0 %2640
    %v2643 = vmul.f32 %v2637, %v2641
    %2645 = vrot.lane.b32.xlu0 %v2643, 32
    %v2646 = vpop.permute.xlu0 %2645
    %v2648 = vadd.f32 %v2638, %v2646
    %v2649 = vtanh.pop %v2648
    %2651 = vrot.lane.b32.xlu0 %v2649, 64
    %v2652 = vpop.permute.xlu0 %2651
    %v2654 = vmul.f32 %v2637, %v2652
    %2656 = vrot.lane.b32.xlu0 %v2654, 32
    %v2657 = vpop.permute.xlu0 %2656
    %s2659 = scalar_lea.vmem [#allocation10], 2
    %vm2660 = vcmask 254976
    %2661 = vst.msk [vmem:[%s2659] sm:$0x3] %vm2660, %v2657
    %2663 = vrot.lane.b32.xlu0 %v2648, 96
    %v2664 = vpop.permute.xlu0 %2663
    %s2666 = scalar_lea.vmem [#allocation12], 2
    %2667 = vst.msk [vmem:[%s2666] sm:$0x3] %vm2660, %v2664
    %v2668 = vld [vmem:[%s8] sm:$0xff]
    %v2669 = vld [vmem:[%s8 + $0x8] sm:$0xff]
    %v2670 = vld [vmem:[%s8 + $0x10] sm:$0xff]
    %v2671 = vld [vmem:[%s8 + $0x18] sm:$0xff]
    %v2672 = vld [vmem:[%s9] sm:$0x1]
    %v2674 = vlaneseq
    %v2675 = vshrl.u32 %v2674, 7
    %v2676 = vsub.s32 0, %v2675
    %v2677 = vrot.slane %v2672, %v2676
    %v2679 = vsel %vm383, %v2657, 0
    %2681 = vmatprep.subr.mxu0 0.0
    %2682 = vmatpush1.msra.mxu0 0.0
    %2683 = vmatprep.subr.mxu0 0.0
    %2684 = vmatpush1.msra.mxu0 0.0
    %2685 = vmatprep.subr.mxu0 0.0
    %2686 = vmatpush1.msra.mxu0 0.0
    %2687 = vmatprep.subr.mxu0 0.0
    %2688 = vmatpush1.msra.mxu0 0.0
    %2689 = vmatprep.subr.mxu0 0.0
    %2690 = vmatpush1.msra.mxu0 0.0
    %2691 = vmatprep.subr.mxu0 0.0
    %2692 = vmatpush1.msra.mxu0 0.0
    %2693 = vmatprep.subr.mxu0 0.0
    %2694 = vmatpush1.msra.mxu0 0.0
    %2695 = vmatprep.subr.mxu0 0.0
    %2696 = vmatpush1.msra.mxu0 0.0
    %2697 = vmatprep.subr.mxu0 0.0
    %2698 = vmatpush1.msra.mxu0 0.0
    %2699 = vmatprep.subr.mxu0 0.0
    %2700 = vmatpush1.msra.mxu0 0.0
    %2701 = vmatprep.subr.mxu0 0.0
    %2702 = vmatpush1.msra.mxu0 0.0
    %2703 = vmatprep.subr.mxu0 0.0
    %2704 = vmatpush1.msra.mxu0 0.0
    %2705 = vmatprep.subr.mxu0 0.0
    %2706 = vmatpush1.msra.mxu0 %v2671
    %2707 = vmatprep.subr.mxu0 0.0
    %2708 = vmatpush1.msra.mxu0 %v2670
    %2709 = vmatprep.subr.mxu0 0.0
    %2710 = vmatpush1.msra.mxu0 %v2669
    %2711 = vmatprep.subr.mxu0 0.0
    %2712 = vmatpush1.msra.mxu0 %v2668
    %2713 = vmatprep.subr.mxu0 0.0
    %2714 = vmatpush2.msra.mxu0 0.0
    %2715 = vmatprep.subr.mxu0 0.0
    %2716 = vmatpush2.msra.mxu0 0.0
    %2717 = vmatprep.subr.mxu0 0.0
    %2718 = vmatpush2.msra.mxu0 0.0
    %2719 = vmatprep.subr.mxu0 0.0
    %2720 = vmatpush2.msra.mxu0 0.0
    %2721 = vmatprep.subr.mxu0 0.0
    %2722 = vmatpush2.msra.mxu0 0.0
    %2723 = vmatprep.subr.mxu0 0.0
    %2724 = vmatpush2.msra.mxu0 0.0
    %2725 = vmatprep.subr.mxu0 0.0
    %2726 = vmatpush2.msra.mxu0 0.0
    %2727 = vmatprep.subr.mxu0 0.0
    %2728 = vmatpush2.msra.mxu0 0.0
    %2729 = vmatprep.subr.mxu0 0.0
    %2730 = vmatpush2.msra.mxu0 0.0
    %2731 = vmatprep.subr.mxu0 0.0
    %2732 = vmatpush2.msra.mxu0 0.0
    %2733 = vmatprep.subr.mxu0 0.0
    %2734 = vmatpush2.msra.mxu0 0.0
    %2735 = vmatprep.subr.mxu0 0.0
    %2736 = vmatpush2.msra.mxu0 0.0
    %2737 = vmatprep.subr.mxu0 0.0
    %2738 = vmatpush2.msra.mxu0 0.0
    %2739 = vmatprep.subr.mxu0 0.0
    %2740 = vmatpush2.msra.mxu0 0.0
    %2741 = vmatprep.subr.mxu0 0.0
    %2742 = vmatpush2.msra.mxu0 0.0
    %2743 = vmatprep.subr.mxu0 0.0
    %2744 = vmatpush2.msra.mxu0 0.0
    %2745 = vmatprep.mubr.f32.mxu0 0.0
    %2746 = vmatmul.mubr.f32.gmra.mxu0 %v2679
    %v2747 = vpop.f32.mrf.mxu0
    %v2748 = vadd.f32 %v2677, %v2747
    %v2749 = vpop.f32.mrf.mxu0
    %2750 = vdwg.mxu0
    %vm2751 = vcmask 25600
    %v2752 = vsel %vm2751, %v2748, -inf
    %2753 = vmax.xlane.f32.xlu0 %v2752
    %v2754 = vpop.xlane.xlu0 %2753
    %v2755 = vsub.f32 %v2748, %v2754
    %v2756 = vmul.f32 %v2755, 1.442695
    %v2757 = vpow.pop %v2756
    %v2758 = vsel %vm2751, %v2757, 0.0
    %2759 = vadd.xlane.f32.xlu0 %v2758
    %v2760 = vpop.xlane.xlu0 %2759
    %v2761 = vlog2.pop %v2760
    %v2762 = vmul.f32 %v2761, 0.6931472
    %v2763 = vsub.f32 %v2755, %v2762
    %2764 = vst.msk [vmem:[#allocation9] sm:$0x3] %vm2751, %v2763
    // Predicated region
    $region54: #{tpu_custom_call.1} parent=1 // pred_check
      _
    $region55: #{tpu_custom_call.1} parent=1 // pred_check_branch
      %2766 = sbr.rel (0) target = $region57
    $region56: #{tpu_custom_call.1} parent=1 // pred_region
      %s2768 = ssub.s32 32, 32
      %2769 = vsyncadd [#allocation6], %s2768
      %s2771 = sshll.u32 [#allocation9], 4
      %s2772 = int_to_ptr.vmem [resolvable:$true] %s2771
      %2774 = dma.vmem_to_hbm [thread:$0]  %s2772, 32, %s12, [#allocation6]
    $region57: #{tpu_custom_call.1} parent=1 // pred_fallthru
      _
    // Predicated region
    $region58: #{tpu_custom_call.1} parent=1 // pred_check
      _
    $region59: #{tpu_custom_call.1} parent=1 // pred_check_branch
      %2776 = sbr.rel (0) target = $region61
    $region60: #{tpu_custom_call.1} parent=1 // pred_region
      %s2778 = ssub.s32 64, 64
      %2779 = vsyncadd [#allocation11], %s2778
      %s2780 = sshll.u32 [#allocation10], 4
      %s2781 = int_to_ptr.vmem [resolvable:$true] %s2780
      %2786 = dma.vmem_to_hbm [thread:$0]  %s2781, 64, %s13, [#allocation11], 32, 32, 2
    $region61: #{tpu_custom_call.1} parent=1 // pred_fallthru
      _
    // Predicated region
    $region62: #{tpu_custom_call.1} parent=1 // pred_check
      _
    $region63: #{tpu_custom_call.1} parent=1 // pred_check_branch
      %2788 = sbr.rel (0) target = $region65
    $region64: #{tpu_custom_call.1} parent=1 // pred_region
      %s2790 = ssub.s32 64, 64
      %2791 = vsyncadd [#allocation11], %s2790
      %s2792 = sshll.u32 [#allocation12], 4
      %s2793 = int_to_ptr.vmem [resolvable:$true] %s2792
      %2798 = dma.vmem_to_hbm [thread:$0]  %s2793, 64, %s14, [#allocation11], 32, 32, 2
    $region65: #{tpu_custom_call.1} parent=1 // pred_fallthru
      _
    // Predicated region
    $region66: #{tpu_custom_call.1} parent=1 // pred_check
      _
    $region67: #{tpu_custom_call.1} parent=1 // pred_check_branch
      %2800 = sbr.rel (0) target = $region69
    $region68: #{tpu_custom_call.1} parent=1 // pred_region
      %2801 = dma.done [#allocation6], 32
    $region69: #{tpu_custom_call.1} parent=1 // pred_fallthru
      _
    // Predicated region
    $region70: #{tpu_custom_call.1} parent=1 // pred_check
      _
    $region71: #{tpu_custom_call.1} parent=1 // pred_check_branch
      %2803 = sbr.rel (0) target = $region73
    $region72: #{tpu_custom_call.1} parent=1 // pred_region
      %2804 = dma.done [#allocation11], 64
    $region73: #{tpu_custom_call.1} parent=1 // pred_fallthru
      _
    // Predicated region
    $region74: #{tpu_custom_call.1} parent=1 // pred_check
      _
    $region75: #{tpu_custom_call.1} parent=1 // pred_check_branch
      %2806 = sbr.rel (0) target = $region77
    $region76: #{tpu_custom_call.1} parent=1 // pred_region
      %2807 = dma.done [#allocation11], 64
    $region77: #{tpu_custom_call.1} parent=1 // pred_fallthru
      _
    %2808 = vsyncpa [#allocation5], 1
    %2809 = vsyncpa [#allocation8], 1
    %2810 = vsyncpa [#allocation6], 1
    %2811 = vsyncpa [#allocation11], 1

</llo_original>
